<compile_context>
chip_gen: v6e
topology: v6e:2x2x1
jax: 0.10.0
libtpu: 0.0.40
codegen_flags: <defaults>
</compile_context>

<pallas_src>
import functools

import numpy as np
import jax
import jax.numpy as jnp
from jax.experimental import pallas as pl
from jax.experimental.pallas import tpu as pltpu

# ------------------------- small configuration --------------------------------
B = 2                       # batch
GRID_H, GRID_W = 8, 8       # current_grid_size
N = GRID_H * GRID_W         # tokens
DIM = 64                    # embedding dim C
NUM_HEADS = 4
HEAD_DIM = DIM // NUM_HEADS
SCALE = HEAD_DIM ** -0.5
LOCALITY_STRENGTH = 1.0


# ------------------------------ Pallas kernel ----------------------------------
def _gpsa_kernel(x_ref, wqkv_ref, omg_ref, gpos_ref, bp_ref, out_ref, qkv_vmem,
                 *, bblk, n, c, num_heads, scale):
    d = c // num_heads

    # One fused projection over the whole (bblk*n, c) slab:
    #   columns [0:c)           -> q  (per-head d-wide slices)
    #   columns [c:2c)          -> k
    #   columns [2c:2c+H*c)     -> per-head V @ Wproj fold (c-wide, lane friendlier)
    # bf16 inputs, f32 MXU accumulation. The result is staged in a VMEM scratch
    # so the 8-way static (batch, head) unroll loads bounded slices instead of
    # keeping the whole 96 KB projection live in vregs (spill risk).
    xf = x_ref[...].reshape(bblk * n, c)                                   # bf16
    qkv_vmem[...] = jnp.dot(xf, wqkv_ref[...],
                            preferred_element_type=jnp.float32).astype(jnp.bfloat16)

    for b in range(bblk):                                                  # static unroll
        r0 = b * n
        acc = jnp.zeros((n, c), dtype=jnp.float32)
        for h in range(num_heads):                                         # static unroll
            qh = qkv_vmem[r0:r0 + n, h * d:(h + 1) * d]                    # (n, d)  bf16
            kh = qkv_vmem[r0:r0 + n, c + h * d:c + (h + 1) * d]            # (n, d)  bf16
            vph = qkv_vmem[r0:r0 + n, 2 * c + h * c:2 * c + (h + 1) * c]   # (n, c)  bf16

            # patch scores + hand-rolled softmax; the (1 - sigmoid(gating)) gate
            # is folded into the normalizer (single EUP reciprocal). The module's
            # explicit renormalization is dropped: patch rows sum to 1 and gpos
            # rows sum to g, so blended rows sum to exactly (1-g) + g = 1.
            s = jax.lax.dot_general(qh, kh, (((1,), (1,)), ((), ())),
                                    preferred_element_type=jnp.float32) * scale
            e = jnp.exp(s - jnp.max(s, axis=-1, keepdims=True))            # (n, n) f32
            inv = pl.reciprocal(jnp.sum(e, axis=-1, keepdims=True), approx=True)
            attn = (omg_ref[h] * inv) * e + gpos_ref[h].astype(jnp.float32)

            # attn @ (V @ Wproj_h): K = n = 64, output width = c = 64.
            # (Wv and Wproj folded offline; no K=16 matmul remains.)
            acc = acc + jnp.dot(attn.astype(jnp.bfloat16), vph,
                                preferred_element_type=jnp.float32)

        out_ref[b] = acc + bp_ref[...]                                     # + proj bias


# ------------------------- one-time parameter preprocessing --------------------
def prepare_gpsa_params(wq, wk, wv, wp, bp, pos_w, pos_b, gating, rel,
                        num_heads=NUM_HEADS):
    """Done once per parameter set, NOT per forward call.
    NOTE: must be re-run after any parameter update (gating / pos_proj / linears
    are learnable), since the gate and positional softmax are baked in here."""
    C = wq.shape[0]
    d = C // num_heads

    # Fold Wv and Wproj per head:
    #   attn_h @ (x @ Wv^T)[:, hslice] @ Wp^T[hslice, :] == attn_h @ (x @ Wvp_h)
    #   with Wvp_h = Wv^T[:, hslice] @ Wp^T[hslice, :]  (C, C).
    wv_t = wv.T.astype(jnp.float32)
    wp_t = wp.T.astype(jnp.float32)
    wvp = [wv_t[:, h * d:(h + 1) * d] @ wp_t[h * d:(h + 1) * d, :]
           for h in range(num_heads)]
    wqkv = jnp.concatenate([wq.T, wk.T] + wvp, axis=1).astype(jnp.bfloat16)  # (C, 2C+H*C)
    bp2d = bp.reshape(1, C).astype(jnp.float32)                              # (1, C)

    g = jax.nn.sigmoid(gating)                                               # (H,)
    one_minus_g = (1.0 - g).astype(jnp.float32)                              # SMEM scalars

    # tiny 3 -> num_heads pos_proj on rel_indices, permuted to (H, N, N),
    # softmaxed and pre-scaled by the gate (batch invariant). Stored bf16:
    # this is the kernel's largest DMA, bf16 halves its HBM bytes.
    pos_logits = (rel @ pos_w.T + pos_b)[0].transpose(2, 0, 1)               # (H, N, N)
    gpos = (g[:, None, None] * jax.nn.softmax(pos_logits, axis=-1)
            ).astype(jnp.bfloat16)                                           # (H, N, N)
    return wqkv, one_minus_g, gpos, bp2d


def gpsa_forward(x, params):
    Bsz, Ntok, C = x.shape
    wqkv, one_minus_g, gpos, bp2d = params
    proj_w = wqkv.shape[1]              # 2C + H*C
    H = NUM_HEADS
    d = C // H

    # Ship activations in bf16 (ideally the producer already emits bf16).
    x = x.astype(jnp.bfloat16)

    # Single invocation on all generations (see header comment).
    bblk = Bsz

    kernel = functools.partial(_gpsa_kernel, bblk=bblk, n=Ntok, c=C,
                               num_heads=H, scale=SCALE)

    # Advisory cost estimate so XLA can overlap this tiny custom call.
    flops = (2 * bblk * Ntok * C * proj_w            # fused qkv / V-Wproj projection
             + Bsz * H * 2 * Ntok * Ntok * d         # q @ k^T
             + Bsz * H * 2 * Ntok * Ntok * C)        # attn @ (V Wproj)
    transcendentals = Bsz * H * (Ntok * Ntok + Ntok)  # exp + approx reciprocal
    bytes_accessed = (x.size * 2 + wqkv.size * 2 + gpos.size * 2
                      + one_minus_g.size * 4 + bp2d.size * 4
                      + Bsz * Ntok * C * 4)

    return pl.pallas_call(
        kernel,
        out_shape=jax.ShapeDtypeStruct((Bsz, Ntok, C), jnp.float32),
        grid=(1,),
        in_specs=[
            pl.BlockSpec((bblk, Ntok, C), lambda i: (0, 0, 0)),       # x (bf16)
            pl.BlockSpec((C, proj_w), lambda i: (0, 0)),              # [Wq^T|Wk^T|Wvp_h] bf16
            pl.BlockSpec(memory_space=pltpu.MemorySpace.SMEM),        # 1 - sigmoid(gating)
            pl.BlockSpec((H, Ntok, Ntok), lambda i: (0, 0, 0)),       # g * softmax(pos) bf16
            pl.BlockSpec((1, C), lambda i: (0, 0)),                   # proj bias (f32)
        ],
        out_specs=pl.BlockSpec((bblk, Ntok, C), lambda i: (0, 0, 0)),
        scratch_shapes=[pltpu.VMEM((bblk * Ntok, proj_w), jnp.bfloat16)],
        compiler_params=pltpu.CompilerParams(dimension_semantics=("arbitrary",)),
        cost_estimate=pl.CostEstimate(flops=flops,
                                      transcendentals=transcendentals,
                                      bytes_accessed=bytes_accessed),
    )(x, wqkv, one_minus_g, gpos, bp2d)
    # TODO(synk): a lane-dense (Ntok, B*C)=(64,128) output layout would turn the
    # masked vst.msk stores into full-width vst, but needs a wrapper transpose;
    # skipped since the store volume here (32 KB) makes the win marginal.


# ------------------------- rel-index / local-init setup -------------------------
def get_rel_indices(H, W):
    n = H * W
    indx = np.arange(W)[None, :] - np.arange(W)[:, None]          # (W, W)
    indx = np.tile(indx, (H, H))                                   # (N, N)
    indy = np.arange(H)[None, :] - np.arange(H)[:, None]           # (H, H)
    indy = np.repeat(np.repeat(indy, W, axis=0), W, axis=1)        # (N, N)
    indd = indx ** 2 + indy ** 2
    rel = np.zeros((1, n, n, 3), dtype=np.float32)
    rel[..., 0] = indx
    rel[..., 1] = indy
    rel[..., 2] = indd
    return rel


def local_init_pos_proj(num_heads, locality_strength=1.0):
    w = np.zeros((num_heads, 3), dtype=np.float32)
    kernel_size = int(num_heads ** 0.5)
    center = (kernel_size - 1) / 2 if kernel_size % 2 == 0 else kernel_size // 2
    for h1 in range(kernel_size):
        for h2 in range(kernel_size):
            position = h1 + kernel_size * h2
            w[position, 2] = -1.0
            w[position, 1] = 2.0 * (h1 - center)
            w[position, 0] = 2.0 * (h2 - center)
    w *= locality_strength
    return w


# ------------------------------- pure-JAX reference -----------------------------
def gpsa_reference(x, wq, wk, wv, wp, bp, pos_w, pos_b, gating, rel):
    Bsz, Ntok, C = x.shape
    d = C // NUM_HEADS
    q = (x @ wq.T).reshape(Bsz, Ntok, NUM_HEADS, d).transpose(0, 2, 1, 3)
    k = (x @ wk.T).reshape(Bsz, Ntok, NUM_HEADS, d).transpose(0, 2, 1, 3)
    v = (x @ wv.T).reshape(Bsz, Ntok, NUM_HEADS, d).transpose(0, 2, 1, 3)
    pos_score = rel @ pos_w.T + pos_b                              # (1, N, N, H)
    pos_score = jnp.broadcast_to(pos_score, (Bsz, Ntok, Ntok, NUM_HEADS)
                                 ).transpose(0, 3, 1, 2)
    patch = jax.nn.softmax(jnp.einsum('bhnd,bhmd->bhnm', q, k) * SCALE, axis=-1)
    pos = jax.nn.softmax(pos_score, axis=-1)
    g = jax.nn.sigmoid(gating).reshape(1, NUM_HEADS, 1, 1)
    attn = (1.0 - g) * patch + g * pos
    attn = attn / attn.sum(axis=-1, keepdims=True)
    out = jnp.einsum('bhnm,bhmd->bhnd', attn, v).transpose(0, 2, 1, 3
                                                           ).reshape(Bsz, Ntok, C)
    return out @ wp.T + bp


# --------------------------------------- main -----------------------------------
if __name__ == "__main__":
    key = jax.random.PRNGKey(0)
    kx, kq, kk, kp = jax.random.split(key, 4)

    x = jax.random.normal(kx, (B, N, DIM), dtype=jnp.float32)

    # deterministic parameter init mirroring GPSA.__init__ (+ local_init):
    wq = 0.02 * jax.random.normal(kq, (DIM, DIM), dtype=jnp.float32)   # trunc_normal ~ normal*0.02
    wk = 0.02 * jax.random.normal(kk, (DIM, DIM), dtype=jnp.float32)
    wv = jnp.eye(DIM, dtype=jnp.float32)                               # local_init: v.weight = I
    wp = 0.02 * jax.random.normal(kp, (DIM, DIM), dtype=jnp.float32)
    bp = jnp.zeros((DIM,), dtype=jnp.float32)
    pos_w = jnp.asarray(local_init_pos_proj(NUM_HEADS, LOCALITY_STRENGTH))
    pos_b = jnp.zeros((NUM_HEADS,), dtype=jnp.float32)
    gating = jnp.ones((NUM_HEADS,), dtype=jnp.float32)                 # gating_param = 1

    rel = jnp.asarray(get_rel_indices(GRID_H, GRID_W))                 # (1, N, N, 3)

    # one-time preprocessing (weight transposes / Wv*Wproj fold, pos softmax, gating)
    params = jax.tree_util.tree_map(
        jax.block_until_ready,
        prepare_gpsa_params(wq, wk, wv, wp, bp, pos_w, pos_b, gating, rel))

    out = jax.block_until_ready(gpsa_forward(x, params))

    ref = gpsa_reference(x, wq, wk, wv, wp, bp, pos_w, pos_b, gating, rel)
    err = float(jnp.max(jnp.abs(out - ref)))
    assert err < 1e-2, f"max abs error too large: {err}"

    print("KERNEL_OK")
</pallas_src>

<mosaic_0001>
module attributes {stable_mosaic.version = 11 : i64} {
  func.func @_gpsa_kernel(%arg0: i32, %arg1: memref<2x64x64xbf16, #tpu.memory_space<vmem>>, %arg2: memref<64x384xbf16, #tpu.memory_space<vmem>>, %arg3: memref<4xf32, #tpu.memory_space<smem>>, %arg4: memref<4x64x64xbf16, #tpu.memory_space<vmem>>, %arg5: memref<1x64xf32, #tpu.memory_space<vmem>>, %arg6: memref<2x64x64xf32, #tpu.memory_space<vmem>>, %arg7: memref<128x384xbf16, #tpu.memory_space<vmem>>) attributes {dimension_semantics = [#tpu.dimension_semantics<arbitrary>], iteration_bounds = array<i64: 1>, scalar_prefetch = 0 : i64, scratch_operands = 1 : i64, tpu.core_type = #tpu.core_type<tc>, window_params = [{pipeline_mode = #tpu.pipeline_mode<synchronous>, transform_indices = @transform_0, window_bounds = array<i64: 2, 64, 64>}, {pipeline_mode = #tpu.pipeline_mode<synchronous>, transform_indices = @transform_1, window_bounds = array<i64: 64, 384>}, {transform_indices = @transform_2, window_bounds = array<i64: 4>}, {pipeline_mode = #tpu.pipeline_mode<synchronous>, transform_indices = @transform_3, window_bounds = array<i64: 4, 64, 64>}, {pipeline_mode = #tpu.pipeline_mode<synchronous>, transform_indices = @transform_4, window_bounds = array<i64: 1, 64>}, {pipeline_mode = #tpu.pipeline_mode<synchronous>, transform_indices = @transform_5, window_bounds = array<i64: 2, 64, 64>}]} {
    %c0 = arith.constant 0 : index
    %c0_0 = arith.constant 0 : index
    %c0_1 = arith.constant 0 : index
    %0 = vector.load %arg1[%c0, %c0_0, %c0_1] : memref<2x64x64xbf16, #tpu.memory_space<vmem>>, vector<2x64x64xbf16>
    %1 = vector.shape_cast %0 : vector<2x64x64xbf16> to vector<128x64xbf16>
    %c0_2 = arith.constant 0 : index
    %c0_3 = arith.constant 0 : index
    %2 = vector.load %arg2[%c0_2, %c0_3] : memref<64x384xbf16, #tpu.memory_space<vmem>>, vector<64x384xbf16>
    %cst = arith.constant dense<0.000000e+00> : vector<128x384xf32>
    %3 = tpu.matmul %1, %2, %cst {dimension_numbers = #tpu.dot_dimension_numbers<[1], [0], [0], [1], [0, 0, 1, 1], [], []>} : vector<128x64xbf16>, vector<64x384xbf16>, vector<128x384xf32> -> vector<128x384xf32>
    %4 = arith.truncf %3 : vector<128x384xf32> to vector<128x384xbf16>
    %c0_4 = arith.constant 0 : index
    %c0_5 = arith.constant 0 : index
    %5 = vector.load %arg7[%c0_4, %c0_5] : memref<128x384xbf16, #tpu.memory_space<vmem>>, vector<128x384xbf16>
    tpu.vector_store %arg7[%c0_4, %c0_5], %4 {strides = array<i32>} : memref<128x384xbf16, #tpu.memory_space<vmem>>, vector<128x384xbf16>,
    %cst_6 = arith.constant 0.000000e+00 : f32
    %6 = vector.broadcast %cst_6 : f32 to vector<64x64xf32>
    %c0_7 = arith.constant 0 : index
    %c0_8 = arith.constant 0 : index
    %7 = vector.load %arg7[%c0_7, %c0_8] : memref<128x384xbf16, #tpu.memory_space<vmem>>, vector<64x16xbf16>
    %c0_9 = arith.constant 0 : index
    %c64 = arith.constant 64 : index
    %8 = vector.load %arg7[%c0_9, %c64] : memref<128x384xbf16, #tpu.memory_space<vmem>>, vector<64x16xbf16>
    %c0_10 = arith.constant 0 : index
    %c128 = arith.constant 128 : index
    %9 = vector.load %arg7[%c0_10, %c128] : memref<128x384xbf16, #tpu.memory_space<vmem>>, vector<64x64xbf16>
    %cst_11 = arith.constant dense<0.000000e+00> : vector<64x64xf32>
    %10 = tpu.matmul %7, %8, %cst_11 {dimension_numbers = #tpu.dot_dimension_numbers<[1], [1], [0], [0], [0, 0, 1, 0], [], []>} : vector<64x16xbf16>, vector<64x16xbf16>, vector<64x64xf32> -> vector<64x64xf32>
    %cst_12 = arith.constant 2.500000e-01 : f32
    %11 = vector.broadcast %cst_12 : f32 to vector<64x64xf32>
    %12 = arith.mulf %10, %11 : vector<64x64xf32>
    %cst_13 = arith.constant dense<0xFF800000> : vector<64xf32>
    %13 = vector.multi_reduction <maximumf>, %12, %cst_13 [1] : vector<64x64xf32> to vector<64xf32>
    %14 = vector.shape_cast %13 : vector<64xf32> to vector<64x1xf32>
    %15 = vector.broadcast %14 : vector<64x1xf32> to vector<64x64xf32>
    %16 = arith.subf %12, %15 : vector<64x64xf32>
    %17 = math.exp %16 : vector<64x64xf32>
    %cst_14 = arith.constant dense<0.000000e+00> : vector<64xf32>
    %18 = vector.multi_reduction <add>, %17, %cst_14 [1] : vector<64x64xf32> to vector<64xf32>
    %19 = vector.shape_cast %18 : vector<64xf32> to vector<64x1xf32>
    %20 = tpu.reciprocal %19 {approx = true} : vector<64x1xf32> -> vector<64x1xf32>
    %c0_15 = arith.constant 0 : index
    %21 = memref.load %arg3[%c0_15] : memref<4xf32, #tpu.memory_space<smem>>
    %22 = vector.broadcast %21 : f32 to vector<64x1xf32>
    %23 = arith.mulf %22, %20 : vector<64x1xf32>
    %24 = vector.broadcast %23 : vector<64x1xf32> to vector<64x64xf32>
    %25 = arith.mulf %24, %17 : vector<64x64xf32>
    %c0_16 = arith.constant 0 : index
    %c0_17 = arith.constant 0 : index
    %c0_18 = arith.constant 0 : index
    %26 = vector.load %arg4[%c0_16, %c0_17, %c0_18] : memref<4x64x64xbf16, #tpu.memory_space<vmem>>, vector<1x64x64xbf16>
    %27 = vector.shape_cast %26 : vector<1x64x64xbf16> to vector<64x64xbf16>
    %28 = arith.extf %27 : vector<64x64xbf16> to vector<64x64xf32>
    %29 = arith.addf %25, %28 : vector<64x64xf32>
    %30 = arith.truncf %29 : vector<64x64xf32> to vector<64x64xbf16>
    %cst_19 = arith.constant dense<0.000000e+00> : vector<64x64xf32>
    %31 = tpu.matmul %30, %9, %cst_19 {dimension_numbers = #tpu.dot_dimension_numbers<[1], [0], [0], [1], [0, 0, 1, 1], [], []>} : vector<64x64xbf16>, vector<64x64xbf16>, vector<64x64xf32> -> vector<64x64xf32>
    %32 = arith.addf %6, %31 : vector<64x64xf32>
    %c0_20 = arith.constant 0 : index
    %c16 = arith.constant 16 : index
    %33 = vector.load %arg7[%c0_20, %c16] : memref<128x384xbf16, #tpu.memory_space<vmem>>, vector<64x16xbf16>
    %c0_21 = arith.constant 0 : index
    %c80 = arith.constant 80 : index
    %34 = vector.load %arg7[%c0_21, %c80] : memref<128x384xbf16, #tpu.memory_space<vmem>>, vector<64x16xbf16>
    %c0_22 = arith.constant 0 : index
    %c192 = arith.constant 192 : index
    %35 = vector.load %arg7[%c0_22, %c192] : memref<128x384xbf16, #tpu.memory_space<vmem>>, vector<64x64xbf16>
    %cst_23 = arith.constant dense<0.000000e+00> : vector<64x64xf32>
    %36 = tpu.matmul %33, %34, %cst_23 {dimension_numbers = #tpu.dot_dimension_numbers<[1], [1], [0], [0], [0, 0, 1, 0], [], []>} : vector<64x16xbf16>, vector<64x16xbf16>, vector<64x64xf32> -> vector<64x64xf32>
    %cst_24 = arith.constant 2.500000e-01 : f32
    %37 = vector.broadcast %cst_24 : f32 to vector<64x64xf32>
    %38 = arith.mulf %36, %37 : vector<64x64xf32>
    %cst_25 = arith.constant dense<0xFF800000> : vector<64xf32>
    %39 = vector.multi_reduction <maximumf>, %38, %cst_25 [1] : vector<64x64xf32> to vector<64xf32>
    %40 = vector.shape_cast %39 : vector<64xf32> to vector<64x1xf32>
    %41 = vector.broadcast %40 : vector<64x1xf32> to vector<64x64xf32>
    %42 = arith.subf %38, %41 : vector<64x64xf32>
    %43 = math.exp %42 : vector<64x64xf32>
    %cst_26 = arith.constant dense<0.000000e+00> : vector<64xf32>
    %44 = vector.multi_reduction <add>, %43, %cst_26 [1] : vector<64x64xf32> to vector<64xf32>
    %45 = vector.shape_cast %44 : vector<64xf32> to vector<64x1xf32>
    %46 = tpu.reciprocal %45 {approx = true} : vector<64x1xf32> -> vector<64x1xf32>
    %c1 = arith.constant 1 : index
    %47 = memref.load %arg3[%c1] : memref<4xf32, #tpu.memory_space<smem>>
    %48 = vector.broadcast %47 : f32 to vector<64x1xf32>
    %49 = arith.mulf %48, %46 : vector<64x1xf32>
    %50 = vector.broadcast %49 : vector<64x1xf32> to vector<64x64xf32>
    %51 = arith.mulf %50, %43 : vector<64x64xf32>
    %c1_27 = arith.constant 1 : index
    %c0_28 = arith.constant 0 : index
    %c0_29 = arith.constant 0 : index
    %52 = vector.load %arg4[%c1_27, %c0_28, %c0_29] : memref<4x64x64xbf16, #tpu.memory_space<vmem>>, vector<1x64x64xbf16>
    %53 = vector.shape_cast %52 : vector<1x64x64xbf16> to vector<64x64xbf16>
    %54 = arith.extf %53 : vector<64x64xbf16> to vector<64x64xf32>
    %55 = arith.addf %51, %54 : vector<64x64xf32>
    %56 = arith.truncf %55 : vector<64x64xf32> to vector<64x64xbf16>
    %cst_30 = arith.constant dense<0.000000e+00> : vector<64x64xf32>
    %57 = tpu.matmul %56, %35, %cst_30 {dimension_numbers = #tpu.dot_dimension_numbers<[1], [0], [0], [1], [0, 0, 1, 1], [], []>} : vector<64x64xbf16>, vector<64x64xbf16>, vector<64x64xf32> -> vector<64x64xf32>
    %58 = arith.addf %32, %57 : vector<64x64xf32>
    %c0_31 = arith.constant 0 : index
    %c32 = arith.constant 32 : index
    %59 = vector.load %arg7[%c0_31, %c32] : memref<128x384xbf16, #tpu.memory_space<vmem>>, vector<64x16xbf16>
    %c0_32 = arith.constant 0 : index
    %c96 = arith.constant 96 : index
    %60 = vector.load %arg7[%c0_32, %c96] : memref<128x384xbf16, #tpu.memory_space<vmem>>, vector<64x16xbf16>
    %c0_33 = arith.constant 0 : index
    %c256 = arith.constant 256 : index
    %61 = vector.load %arg7[%c0_33, %c256] : memref<128x384xbf16, #tpu.memory_space<vmem>>, vector<64x64xbf16>
    %cst_34 = arith.constant dense<0.000000e+00> : vector<64x64xf32>
    %62 = tpu.matmul %59, %60, %cst_34 {dimension_numbers = #tpu.dot_dimension_numbers<[1], [1], [0], [0], [0, 0, 1, 0], [], []>} : vector<64x16xbf16>, vector<64x16xbf16>, vector<64x64xf32> -> vector<64x64xf32>
    %cst_35 = arith.constant 2.500000e-01 : f32
    %63 = vector.broadcast %cst_35 : f32 to vector<64x64xf32>
    %64 = arith.mulf %62, %63 : vector<64x64xf32>
    %cst_36 = arith.constant dense<0xFF800000> : vector<64xf32>
    %65 = vector.multi_reduction <maximumf>, %64, %cst_36 [1] : vector<64x64xf32> to vector<64xf32>
    %66 = vector.shape_cast %65 : vector<64xf32> to vector<64x1xf32>
    %67 = vector.broadcast %66 : vector<64x1xf32> to vector<64x64xf32>
    %68 = arith.subf %64, %67 : vector<64x64xf32>
    %69 = math.exp %68 : vector<64x64xf32>
    %cst_37 = arith.constant dense<0.000000e+00> : vector<64xf32>
    %70 = vector.multi_reduction <add>, %69, %cst_37 [1] : vector<64x64xf32> to vector<64xf32>
    %71 = vector.shape_cast %70 : vector<64xf32> to vector<64x1xf32>
    %72 = tpu.reciprocal %71 {approx = true} : vector<64x1xf32> -> vector<64x1xf32>
    %c2 = arith.constant 2 : index
    %73 = memref.load %arg3[%c2] : memref<4xf32, #tpu.memory_space<smem>>
    %74 = vector.broadcast %73 : f32 to vector<64x1xf32>
    %75 = arith.mulf %74, %72 : vector<64x1xf32>
    %76 = vector.broadcast %75 : vector<64x1xf32> to vector<64x64xf32>
    %77 = arith.mulf %76, %69 : vector<64x64xf32>
    %c2_38 = arith.constant 2 : index
    %c0_39 = arith.constant 0 : index
    %c0_40 = arith.constant 0 : index
    %78 = vector.load %arg4[%c2_38, %c0_39, %c0_40] : memref<4x64x64xbf16, #tpu.memory_space<vmem>>, vector<1x64x64xbf16>
    %79 = vector.shape_cast %78 : vector<1x64x64xbf16> to vector<64x64xbf16>
    %80 = arith.extf %79 : vector<64x64xbf16> to vector<64x64xf32>
    %81 = arith.addf %77, %80 : vector<64x64xf32>
    %82 = arith.truncf %81 : vector<64x64xf32> to vector<64x64xbf16>
    %cst_41 = arith.constant dense<0.000000e+00> : vector<64x64xf32>
    %83 = tpu.matmul %82, %61, %cst_41 {dimension_numbers = #tpu.dot_dimension_numbers<[1], [0], [0], [1], [0, 0, 1, 1], [], []>} : vector<64x64xbf16>, vector<64x64xbf16>, vector<64x64xf32> -> vector<64x64xf32>
    %84 = arith.addf %58, %83 : vector<64x64xf32>
    %c0_42 = arith.constant 0 : index
    %c48 = arith.constant 48 : index
    %85 = vector.load %arg7[%c0_42, %c48] : memref<128x384xbf16, #tpu.memory_space<vmem>>, vector<64x16xbf16>
    %c0_43 = arith.constant 0 : index
    %c112 = arith.constant 112 : index
    %86 = vector.load %arg7[%c0_43, %c112] : memref<128x384xbf16, #tpu.memory_space<vmem>>, vector<64x16xbf16>
    %c0_44 = arith.constant 0 : index
    %c320 = arith.constant 320 : index
    %87 = vector.load %arg7[%c0_44, %c320] : memref<128x384xbf16, #tpu.memory_space<vmem>>, vector<64x64xbf16>
    %cst_45 = arith.constant dense<0.000000e+00> : vector<64x64xf32>
    %88 = tpu.matmul %85, %86, %cst_45 {dimension_numbers = #tpu.dot_dimension_numbers<[1], [1], [0], [0], [0, 0, 1, 0], [], []>} : vector<64x16xbf16>, vector<64x16xbf16>, vector<64x64xf32> -> vector<64x64xf32>
    %cst_46 = arith.constant 2.500000e-01 : f32
    %89 = vector.broadcast %cst_46 : f32 to vector<64x64xf32>
    %90 = arith.mulf %88, %89 : vector<64x64xf32>
    %cst_47 = arith.constant dense<0xFF800000> : vector<64xf32>
    %91 = vector.multi_reduction <maximumf>, %90, %cst_47 [1] : vector<64x64xf32> to vector<64xf32>
    %92 = vector.shape_cast %91 : vector<64xf32> to vector<64x1xf32>
    %93 = vector.broadcast %92 : vector<64x1xf32> to vector<64x64xf32>
    %94 = arith.subf %90, %93 : vector<64x64xf32>
    %95 = math.exp %94 : vector<64x64xf32>
    %cst_48 = arith.constant dense<0.000000e+00> : vector<64xf32>
    %96 = vector.multi_reduction <add>, %95, %cst_48 [1] : vector<64x64xf32> to vector<64xf32>
    %97 = vector.shape_cast %96 : vector<64xf32> to vector<64x1xf32>
    %98 = tpu.reciprocal %97 {approx = true} : vector<64x1xf32> -> vector<64x1xf32>
    %c3 = arith.constant 3 : index
    %99 = memref.load %arg3[%c3] : memref<4xf32, #tpu.memory_space<smem>>
    %100 = vector.broadcast %99 : f32 to vector<64x1xf32>
    %101 = arith.mulf %100, %98 : vector<64x1xf32>
    %102 = vector.broadcast %101 : vector<64x1xf32> to vector<64x64xf32>
    %103 = arith.mulf %102, %95 : vector<64x64xf32>
    %c3_49 = arith.constant 3 : index
    %c0_50 = arith.constant 0 : index
    %c0_51 = arith.constant 0 : index
    %104 = vector.load %arg4[%c3_49, %c0_50, %c0_51] : memref<4x64x64xbf16, #tpu.memory_space<vmem>>, vector<1x64x64xbf16>
    %105 = vector.shape_cast %104 : vector<1x64x64xbf16> to vector<64x64xbf16>
    %106 = arith.extf %105 : vector<64x64xbf16> to vector<64x64xf32>
    %107 = arith.addf %103, %106 : vector<64x64xf32>
    %108 = arith.truncf %107 : vector<64x64xf32> to vector<64x64xbf16>
    %cst_52 = arith.constant dense<0.000000e+00> : vector<64x64xf32>
    %109 = tpu.matmul %108, %87, %cst_52 {dimension_numbers = #tpu.dot_dimension_numbers<[1], [0], [0], [1], [0, 0, 1, 1], [], []>} : vector<64x64xbf16>, vector<64x64xbf16>, vector<64x64xf32> -> vector<64x64xf32>
    %110 = arith.addf %84, %109 : vector<64x64xf32>
    %c0_53 = arith.constant 0 : index
    %c0_54 = arith.constant 0 : index
    %111 = vector.load %arg5[%c0_53, %c0_54] : memref<1x64xf32, #tpu.memory_space<vmem>>, vector<1x64xf32>
    %112 = vector.broadcast %111 : vector<1x64xf32> to vector<64x64xf32>
    %113 = arith.addf %110, %112 : vector<64x64xf32>
    %c0_55 = arith.constant 0 : index
    %c0_56 = arith.constant 0 : index
    %c0_57 = arith.constant 0 : index
    %114 = vector.load %arg6[%c0_55, %c0_56, %c0_57] : memref<2x64x64xf32, #tpu.memory_space<vmem>>, vector<1x64x64xf32>
    %115 = vector.shape_cast %114 : vector<1x64x64xf32> to vector<64x64xf32>
    %116 = vector.shape_cast %113 : vector<64x64xf32> to vector<1x64x64xf32>
    tpu.vector_store %arg6[%c0_55, %c0_56, %c0_57], %116 {strides = array<i32>} : memref<2x64x64xf32, #tpu.memory_space<vmem>>, vector<1x64x64xf32>,
    %cst_58 = arith.constant 0.000000e+00 : f32
    %117 = vector.broadcast %cst_58 : f32 to vector<64x64xf32>
    %c64_59 = arith.constant 64 : index
    %c0_60 = arith.constant 0 : index
    %118 = vector.load %arg7[%c64_59, %c0_60] : memref<128x384xbf16, #tpu.memory_space<vmem>>, vector<64x16xbf16>
    %c64_61 = arith.constant 64 : index
    %c64_62 = arith.constant 64 : index
    %119 = vector.load %arg7[%c64_61, %c64_62] : memref<128x384xbf16, #tpu.memory_space<vmem>>, vector<64x16xbf16>
    %c64_63 = arith.constant 64 : index
    %c128_64 = arith.constant 128 : index
    %120 = vector.load %arg7[%c64_63, %c128_64] : memref<128x384xbf16, #tpu.memory_space<vmem>>, vector<64x64xbf16>
    %cst_65 = arith.constant dense<0.000000e+00> : vector<64x64xf32>
    %121 = tpu.matmul %118, %119, %cst_65 {dimension_numbers = #tpu.dot_dimension_numbers<[1], [1], [0], [0], [0, 0, 1, 0], [], []>} : vector<64x16xbf16>, vector<64x16xbf16>, vector<64x64xf32> -> vector<64x64xf32>
    %cst_66 = arith.constant 2.500000e-01 : f32
    %122 = vector.broadcast %cst_66 : f32 to vector<64x64xf32>
    %123 = arith.mulf %121, %122 : vector<64x64xf32>
    %cst_67 = arith.constant dense<0xFF800000> : vector<64xf32>
    %124 = vector.multi_reduction <maximumf>, %123, %cst_67 [1] : vector<64x64xf32> to vector<64xf32>
    %125 = vector.shape_cast %124 : vector<64xf32> to vector<64x1xf32>
    %126 = vector.broadcast %125 : vector<64x1xf32> to vector<64x64xf32>
    %127 = arith.subf %123, %126 : vector<64x64xf32>
    %128 = math.exp %127 : vector<64x64xf32>
    %cst_68 = arith.constant dense<0.000000e+00> : vector<64xf32>
    %129 = vector.multi_reduction <add>, %128, %cst_68 [1] : vector<64x64xf32> to vector<64xf32>
    %130 = vector.shape_cast %129 : vector<64xf32> to vector<64x1xf32>
    %131 = tpu.reciprocal %130 {approx = true} : vector<64x1xf32> -> vector<64x1xf32>
    %c0_69 = arith.constant 0 : index
    %132 = memref.load %arg3[%c0_69] : memref<4xf32, #tpu.memory_space<smem>>
    %133 = vector.broadcast %132 : f32 to vector<64x1xf32>
    %134 = arith.mulf %133, %131 : vector<64x1xf32>
    %135 = vector.broadcast %134 : vector<64x1xf32> to vector<64x64xf32>
    %136 = arith.mulf %135, %128 : vector<64x64xf32>
    %c0_70 = arith.constant 0 : index
    %c0_71 = arith.constant 0 : index
    %c0_72 = arith.constant 0 : index
    %137 = vector.load %arg4[%c0_70, %c0_71, %c0_72] : memref<4x64x64xbf16, #tpu.memory_space<vmem>>, vector<1x64x64xbf16>
    %138 = vector.shape_cast %137 : vector<1x64x64xbf16> to vector<64x64xbf16>
    %139 = arith.extf %138 : vector<64x64xbf16> to vector<64x64xf32>
    %140 = arith.addf %136, %139 : vector<64x64xf32>
    %141 = arith.truncf %140 : vector<64x64xf32> to vector<64x64xbf16>
    %cst_73 = arith.constant dense<0.000000e+00> : vector<64x64xf32>
    %142 = tpu.matmul %141, %120, %cst_73 {dimension_numbers = #tpu.dot_dimension_numbers<[1], [0], [0], [1], [0, 0, 1, 1], [], []>} : vector<64x64xbf16>, vector<64x64xbf16>, vector<64x64xf32> -> vector<64x64xf32>
    %143 = arith.addf %117, %142 : vector<64x64xf32>
    %c64_74 = arith.constant 64 : index
    %c16_75 = arith.constant 16 : index
    %144 = vector.load %arg7[%c64_74, %c16_75] : memref<128x384xbf16, #tpu.memory_space<vmem>>, vector<64x16xbf16>
    %c64_76 = arith.constant 64 : index
    %c80_77 = arith.constant 80 : index
    %145 = vector.load %arg7[%c64_76, %c80_77] : memref<128x384xbf16, #tpu.memory_space<vmem>>, vector<64x16xbf16>
    %c64_78 = arith.constant 64 : index
    %c192_79 = arith.constant 192 : index
    %146 = vector.load %arg7[%c64_78, %c192_79] : memref<128x384xbf16, #tpu.memory_space<vmem>>, vector<64x64xbf16>
    %cst_80 = arith.constant dense<0.000000e+00> : vector<64x64xf32>
    %147 = tpu.matmul %144, %145, %cst_80 {dimension_numbers = #tpu.dot_dimension_numbers<[1], [1], [0], [0], [0, 0, 1, 0], [], []>} : vector<64x16xbf16>, vector<64x16xbf16>, vector<64x64xf32> -> vector<64x64xf32>
    %cst_81 = arith.constant 2.500000e-01 : f32
    %148 = vector.broadcast %cst_81 : f32 to vector<64x64xf32>
    %149 = arith.mulf %147, %148 : vector<64x64xf32>
    %cst_82 = arith.constant dense<0xFF800000> : vector<64xf32>
    %150 = vector.multi_reduction <maximumf>, %149, %cst_82 [1] : vector<64x64xf32> to vector<64xf32>
    %151 = vector.shape_cast %150 : vector<64xf32> to vector<64x1xf32>
    %152 = vector.broadcast %151 : vector<64x1xf32> to vector<64x64xf32>
    %153 = arith.subf %149, %152 : vector<64x64xf32>
    %154 = math.exp %153 : vector<64x64xf32>
    %cst_83 = arith.constant dense<0.000000e+00> : vector<64xf32>
    %155 = vector.multi_reduction <add>, %154, %cst_83 [1] : vector<64x64xf32> to vector<64xf32>
    %156 = vector.shape_cast %155 : vector<64xf32> to vector<64x1xf32>
    %157 = tpu.reciprocal %156 {approx = true} : vector<64x1xf32> -> vector<64x1xf32>
    %c1_84 = arith.constant 1 : index
    %158 = memref.load %arg3[%c1_84] : memref<4xf32, #tpu.memory_space<smem>>
    %159 = vector.broadcast %158 : f32 to vector<64x1xf32>
    %160 = arith.mulf %159, %157 : vector<64x1xf32>
    %161 = vector.broadcast %160 : vector<64x1xf32> to vector<64x64xf32>
    %162 = arith.mulf %161, %154 : vector<64x64xf32>
    %c1_85 = arith.constant 1 : index
    %c0_86 = arith.constant 0 : index
    %c0_87 = arith.constant 0 : index
    %163 = vector.load %arg4[%c1_85, %c0_86, %c0_87] : memref<4x64x64xbf16, #tpu.memory_space<vmem>>, vector<1x64x64xbf16>
    %164 = vector.shape_cast %163 : vector<1x64x64xbf16> to vector<64x64xbf16>
    %165 = arith.extf %164 : vector<64x64xbf16> to vector<64x64xf32>
    %166 = arith.addf %162, %165 : vector<64x64xf32>
    %167 = arith.truncf %166 : vector<64x64xf32> to vector<64x64xbf16>
    %cst_88 = arith.constant dense<0.000000e+00> : vector<64x64xf32>
    %168 = tpu.matmul %167, %146, %cst_88 {dimension_numbers = #tpu.dot_dimension_numbers<[1], [0], [0], [1], [0, 0, 1, 1], [], []>} : vector<64x64xbf16>, vector<64x64xbf16>, vector<64x64xf32> -> vector<64x64xf32>
    %169 = arith.addf %143, %168 : vector<64x64xf32>
    %c64_89 = arith.constant 64 : index
    %c32_90 = arith.constant 32 : index
    %170 = vector.load %arg7[%c64_89, %c32_90] : memref<128x384xbf16, #tpu.memory_space<vmem>>, vector<64x16xbf16>
    %c64_91 = arith.constant 64 : index
    %c96_92 = arith.constant 96 : index
    %171 = vector.load %arg7[%c64_91, %c96_92] : memref<128x384xbf16, #tpu.memory_space<vmem>>, vector<64x16xbf16>
    %c64_93 = arith.constant 64 : index
    %c256_94 = arith.constant 256 : index
    %172 = vector.load %arg7[%c64_93, %c256_94] : memref<128x384xbf16, #tpu.memory_space<vmem>>, vector<64x64xbf16>
    %cst_95 = arith.constant dense<0.000000e+00> : vector<64x64xf32>
    %173 = tpu.matmul %170, %171, %cst_95 {dimension_numbers = #tpu.dot_dimension_numbers<[1], [1], [0], [0], [0, 0, 1, 0], [], []>} : vector<64x16xbf16>, vector<64x16xbf16>, vector<64x64xf32> -> vector<64x64xf32>
    %cst_96 = arith.constant 2.500000e-01 : f32
    %174 = vector.broadcast %cst_96 : f32 to vector<64x64xf32>
    %175 = arith.mulf %173, %174 : vector<64x64xf32>
    %cst_97 = arith.constant dense<0xFF800000> : vector<64xf32>
    %176 = vector.multi_reduction <maximumf>, %175, %cst_97 [1] : vector<64x64xf32> to vector<64xf32>
    %177 = vector.shape_cast %176 : vector<64xf32> to vector<64x1xf32>
    %178 = vector.broadcast %177 : vector<64x1xf32> to vector<64x64xf32>
    %179 = arith.subf %175, %178 : vector<64x64xf32>
    %180 = math.exp %179 : vector<64x64xf32>
    %cst_98 = arith.constant dense<0.000000e+00> : vector<64xf32>
    %181 = vector.multi_reduction <add>, %180, %cst_98 [1] : vector<64x64xf32> to vector<64xf32>
    %182 = vector.shape_cast %181 : vector<64xf32> to vector<64x1xf32>
    %183 = tpu.reciprocal %182 {approx = true} : vector<64x1xf32> -> vector<64x1xf32>
    %c2_99 = arith.constant 2 : index
    %184 = memref.load %arg3[%c2_99] : memref<4xf32, #tpu.memory_space<smem>>
    %185 = vector.broadcast %184 : f32 to vector<64x1xf32>
    %186 = arith.mulf %185, %183 : vector<64x1xf32>
    %187 = vector.broadcast %186 : vector<64x1xf32> to vector<64x64xf32>
    %188 = arith.mulf %187, %180 : vector<64x64xf32>
    %c2_100 = arith.constant 2 : index
    %c0_101 = arith.constant 0 : index
    %c0_102 = arith.constant 0 : index
    %189 = vector.load %arg4[%c2_100, %c0_101, %c0_102] : memref<4x64x64xbf16, #tpu.memory_space<vmem>>, vector<1x64x64xbf16>
    %190 = vector.shape_cast %189 : vector<1x64x64xbf16> to vector<64x64xbf16>
    %191 = arith.extf %190 : vector<64x64xbf16> to vector<64x64xf32>
    %192 = arith.addf %188, %191 : vector<64x64xf32>
    %193 = arith.truncf %192 : vector<64x64xf32> to vector<64x64xbf16>
    %cst_103 = arith.constant dense<0.000000e+00> : vector<64x64xf32>
    %194 = tpu.matmul %193, %172, %cst_103 {dimension_numbers = #tpu.dot_dimension_numbers<[1], [0], [0], [1], [0, 0, 1, 1], [], []>} : vector<64x64xbf16>, vector<64x64xbf16>, vector<64x64xf32> -> vector<64x64xf32>
    %195 = arith.addf %169, %194 : vector<64x64xf32>
    %c64_104 = arith.constant 64 : index
    %c48_105 = arith.constant 48 : index
    %196 = vector.load %arg7[%c64_104, %c48_105] : memref<128x384xbf16, #tpu.memory_space<vmem>>, vector<64x16xbf16>
    %c64_106 = arith.constant 64 : index
    %c112_107 = arith.constant 112 : index
    %197 = vector.load %arg7[%c64_106, %c112_107] : memref<128x384xbf16, #tpu.memory_space<vmem>>, vector<64x16xbf16>
    %c64_108 = arith.constant 64 : index
    %c320_109 = arith.constant 320 : index
    %198 = vector.load %arg7[%c64_108, %c320_109] : memref<128x384xbf16, #tpu.memory_space<vmem>>, vector<64x64xbf16>
    %cst_110 = arith.constant dense<0.000000e+00> : vector<64x64xf32>
    %199 = tpu.matmul %196, %197, %cst_110 {dimension_numbers = #tpu.dot_dimension_numbers<[1], [1], [0], [0], [0, 0, 1, 0], [], []>} : vector<64x16xbf16>, vector<64x16xbf16>, vector<64x64xf32> -> vector<64x64xf32>
    %cst_111 = arith.constant 2.500000e-01 : f32
    %200 = vector.broadcast %cst_111 : f32 to vector<64x64xf32>
    %201 = arith.mulf %199, %200 : vector<64x64xf32>
    %cst_112 = arith.constant dense<0xFF800000> : vector<64xf32>
    %202 = vector.multi_reduction <maximumf>, %201, %cst_112 [1] : vector<64x64xf32> to vector<64xf32>
    %203 = vector.shape_cast %202 : vector<64xf32> to vector<64x1xf32>
    %204 = vector.broadcast %203 : vector<64x1xf32> to vector<64x64xf32>
    %205 = arith.subf %201, %204 : vector<64x64xf32>
    %206 = math.exp %205 : vector<64x64xf32>
    %cst_113 = arith.constant dense<0.000000e+00> : vector<64xf32>
    %207 = vector.multi_reduction <add>, %206, %cst_113 [1] : vector<64x64xf32> to vector<64xf32>
    %208 = vector.shape_cast %207 : vector<64xf32> to vector<64x1xf32>
    %209 = tpu.reciprocal %208 {approx = true} : vector<64x1xf32> -> vector<64x1xf32>
    %c3_114 = arith.constant 3 : index
    %210 = memref.load %arg3[%c3_114] : memref<4xf32, #tpu.memory_space<smem>>
    %211 = vector.broadcast %210 : f32 to vector<64x1xf32>
    %212 = arith.mulf %211, %209 : vector<64x1xf32>
    %213 = vector.broadcast %212 : vector<64x1xf32> to vector<64x64xf32>
    %214 = arith.mulf %213, %206 : vector<64x64xf32>
    %c3_115 = arith.constant 3 : index
    %c0_116 = arith.constant 0 : index
    %c0_117 = arith.constant 0 : index
    %215 = vector.load %arg4[%c3_115, %c0_116, %c0_117] : memref<4x64x64xbf16, #tpu.memory_space<vmem>>, vector<1x64x64xbf16>
    %216 = vector.shape_cast %215 : vector<1x64x64xbf16> to vector<64x64xbf16>
    %217 = arith.extf %216 : vector<64x64xbf16> to vector<64x64xf32>
    %218 = arith.addf %214, %217 : vector<64x64xf32>
    %219 = arith.truncf %218 : vector<64x64xf32> to vector<64x64xbf16>
    %cst_118 = arith.constant dense<0.000000e+00> : vector<64x64xf32>
    %220 = tpu.matmul %219, %198, %cst_118 {dimension_numbers = #tpu.dot_dimension_numbers<[1], [0], [0], [1], [0, 0, 1, 1], [], []>} : vector<64x64xbf16>, vector<64x64xbf16>, vector<64x64xf32> -> vector<64x64xf32>
    %221 = arith.addf %195, %220 : vector<64x64xf32>
    %c0_119 = arith.constant 0 : index
    %c0_120 = arith.constant 0 : index
    %222 = vector.load %arg5[%c0_119, %c0_120] : memref<1x64xf32, #tpu.memory_space<vmem>>, vector<1x64xf32>
    %223 = vector.broadcast %222 : vector<1x64xf32> to vector<64x64xf32>
    %224 = arith.addf %221, %223 : vector<64x64xf32>
    %c1_121 = arith.constant 1 : index
    %c0_122 = arith.constant 0 : index
    %c0_123 = arith.constant 0 : index
    %225 = vector.load %arg6[%c1_121, %c0_122, %c0_123] : memref<2x64x64xf32, #tpu.memory_space<vmem>>, vector<1x64x64xf32>
    %226 = vector.shape_cast %225 : vector<1x64x64xf32> to vector<64x64xf32>
    %227 = vector.shape_cast %224 : vector<64x64xf32> to vector<1x64x64xf32>
    tpu.vector_store %arg6[%c1_121, %c0_122, %c0_123], %227 {strides = array<i32>} : memref<2x64x64xf32, #tpu.memory_space<vmem>>, vector<1x64x64xf32>,
    return
  }
  func.func @transform_0(%arg0: i32) -> (i32, i32, i32) {
    %c0_i32 = arith.constant 0 : i32
    %c0_i32_0 = arith.constant 0 : i32
    %c0_i32_1 = arith.constant 0 : i32
    %c0_i32_2 = arith.constant 0 : i32
    return %c0_i32, %c0_i32_0, %c0_i32_1 : i32, i32, i32
  }
  func.func @transform_1(%arg0: i32) -> (i32, i32) {
    %c0_i32 = arith.constant 0 : i32
    %c0_i32_0 = arith.constant 0 : i32
    %c0_i32_1 = arith.constant 0 : i32
    return %c0_i32, %c0_i32_0 : i32, i32
  }
  func.func @transform_2(%arg0: i32) -> i32 {
    %c0_i32 = arith.constant 0 : i32
    %c0_i32_0 = arith.constant 0 : i32
    return %c0_i32 : i32
  }
  func.func @transform_3(%arg0: i32) -> (i32, i32, i32) {
    %c0_i32 = arith.constant 0 : i32
    %c0_i32_0 = arith.constant 0 : i32
    %c0_i32_1 = arith.constant 0 : i32
    %c0_i32_2 = arith.constant 0 : i32
    return %c0_i32, %c0_i32_0, %c0_i32_1 : i32, i32, i32
  }
  func.func @transform_4(%arg0: i32) -> (i32, i32) {
    %c0_i32 = arith.constant 0 : i32
    %c0_i32_0 = arith.constant 0 : i32
    %c0_i32_1 = arith.constant 0 : i32
    return %c0_i32, %c0_i32_0 : i32, i32
  }
  func.func @transform_5(%arg0: i32) -> (i32, i32, i32) {
    %c0_i32 = arith.constant 0 : i32
    %c0_i32_0 = arith.constant 0 : i32
    %c0_i32_1 = arith.constant 0 : i32
    %c0_i32_2 = arith.constant 0 : i32
    return %c0_i32, %c0_i32_0, %c0_i32_1 : i32, i32, i32
  }
}

</mosaic_0001>

<llo_original>
// kernel: tpu_custom_call.1
$region0: #{tpu_custom_call.1}
  #allocation0 [shape = 'u32[]', space=smem, size = 0x4, offset = 0x4, fixed_abs, tag = 'smem constant byte address 0x4 - core index']
  #allocation1 [shape = 'u32[144,128]{1,0:T(1,128)}', space=vmem, size = 0x12000, scoped, tag = 'internal scratch']
  #allocation2 [shape = 'bf16[128,384]{1,0:T(8,128)(2,1)}', space=vmem, size = 0x18000, scoped, tag = 'scratch operand']
  %s0 = inlined_call_operand.hbm [shape: bf16[2,64,64], index: 0, kind: input, shape index: {}]
  %s1 = inlined_call_operand.hbm [shape: bf16[64,384], index: 1, kind: input, shape index: {}]
  %s2 = inlined_call_operand.vmem [shape: f32[4], index: 2, kind: input, shape index: {}]
  %s3 = inlined_call_operand.hbm [shape: bf16[4,64,64], index: 3, kind: input, shape index: {}]
  %s4 = inlined_call_operand.vmem [shape: f32[1,64], index: 4, kind: input, shape index: {}]
  %s5 = inlined_call_operand.hbm [shape: f32[2,64,64], index: 5, kind: output, shape index: {}]
  %s6 = sld [smem:[#allocation0]]
  $region46: #{tpu_custom_call.1} parent=0
    _
  %s8 = ssub.s32 1, %s6
  %s9 = scalar_select 0, %s8, %s6
  $region1: #{tpu_custom_call.1} parent=0
    #allocation3 [shape = 'u8[32768]{0}', space=vmem, size = 0x8000, scoped, tag = 'input window, operand 0, single buffered']
    #allocation4 [shape = 's32[1]{0}', space=sflag, size = 0x4, scoped, tag = 'scoped memory for tpu_custom_call.1']
    #allocation5 [shape = 's32[1]{0}', space=sflag, size = 0x4, scoped, tag = 'scoped memory for tpu_custom_call.1']
    #allocation6 [shape = 's32[1]{0}', space=sflag, size = 0x4, scoped, tag = 'scoped memory for tpu_custom_call.1']
    #allocation7 [shape = 'u8[49152]{0}', space=vmem, size = 0xc000, scoped, tag = 'input window, operand 1, single buffered']
    #allocation8 [shape = 's32[1]{0}', space=sflag, size = 0x4, scoped, tag = 'scoped memory for tpu_custom_call.1']
    #allocation9 [shape = 'u8[512]{0}', space=smem, size = 0x200, scoped, tag = 'input window, operand 2, single buffered']
    #allocation10 [shape = 'u8[65536]{0}', space=vmem, size = 0x10000, scoped, tag = 'input window, operand 3, single buffered']
    #allocation11 [shape = 'u8[65536]{0}', space=vmem, size = 0x10000, scoped, tag = 'output window, operand 0, single buffered']
    %10 = vsyncpa [#allocation4], 0
    %11 = vsyncpa [#allocation8], 0
    %12 = vsyncpa [#allocation6], 0
    %13 = vsyncpa [#allocation5], 0
    // Predicated region
    $region2: #{tpu_custom_call.1} parent=1 // pred_check
      _
    $region3: #{tpu_custom_call.1} parent=1 // pred_check_branch
      %15 = sbr.rel (0) target = $region5
    $region4: #{tpu_custom_call.1} parent=1 // pred_region
      %s17 = ssub.s32 1024, 1024
      %18 = vsyncadd [#allocation4], %s17
      %s19 = sshll.u32 [#allocation3], 4
      %s20 = int_to_ptr.vmem [resolvable:$true] %s19
      %25 = dma.hbm_to_vmem [thread:$0]  %s0, 1024, %s20, [#allocation4], 64, 64, 4
    $region5: #{tpu_custom_call.1} parent=1 // pred_fallthru
      _
    // Predicated region
    $region6: #{tpu_custom_call.1} parent=1 // pred_check
      _
    $region7: #{tpu_custom_call.1} parent=1 // pred_check_branch
      %27 = sbr.rel (0) target = $region9
    $region8: #{tpu_custom_call.1} parent=1 // pred_region
      %s29 = ssub.s32 1536, 1536
      %30 = vsyncadd [#allocation8], %s29
      %s31 = sshll.u32 [#allocation7], 4
      %s32 = int_to_ptr.vmem [resolvable:$true] %s31
      %37 = dma.hbm_to_vmem [thread:$0]  %s1, 1536, %s32, [#allocation8], 192, 192, 12
    $region9: #{tpu_custom_call.1} parent=1 // pred_fallthru
      _
    // Predicated region
    $region10: #{tpu_custom_call.1} parent=1 // pred_check
      _
    $region11: #{tpu_custom_call.1} parent=1 // pred_check_branch
      %39 = sbr.rel (0) target = $region13
    $region12: #{tpu_custom_call.1} parent=1 // pred_region
      %s41 = ssub.s32 16, 16
      %42 = vsyncadd [#allocation6], %s41
      %s44 = sshll.u32 %s2, 4
      %s45 = int_to_ptr.vmem [resolvable:$true] %s44
      %47 = dma.vmem_to_smem %s45, 16, [#allocation9], [#allocation6]
    $region13: #{tpu_custom_call.1} parent=1 // pred_fallthru
      _
    // Predicated region
    $region14: #{tpu_custom_call.1} parent=1 // pred_check
      _
    $region15: #{tpu_custom_call.1} parent=1 // pred_check_branch
      %49 = sbr.rel (0) target = $region17
    $region16: #{tpu_custom_call.1} parent=1 // pred_region
      %s51 = ssub.s32 2048, 2048
      %52 = vsyncadd [#allocation8], %s51
      %s53 = sshll.u32 [#allocation10], 4
      %s54 = int_to_ptr.vmem [resolvable:$true] %s53
      %59 = dma.hbm_to_vmem [thread:$0]  %s3, 2048, %s54, [#allocation8], 64, 64, 4
    $region17: #{tpu_custom_call.1} parent=1 // pred_fallthru
      _
    // Predicated region
    $region18: #{tpu_custom_call.1} parent=1 // pred_check
      _
    $region19: #{tpu_custom_call.1} parent=1 // pred_check_branch
      %61 = sbr.rel (0) target = $region21
    $region20: #{tpu_custom_call.1} parent=1 // pred_region
      _
    $region21: #{tpu_custom_call.1} parent=1 // pred_fallthru
      _
    // Predicated region
    $region22: #{tpu_custom_call.1} parent=1 // pred_check
      _
    $region23: #{tpu_custom_call.1} parent=1 // pred_check_branch
      %63 = sbr.rel (0) target = $region25
    $region24: #{tpu_custom_call.1} parent=1 // pred_region
      %64 = dma.done [#allocation4], 1024
    $region25: #{tpu_custom_call.1} parent=1 // pred_fallthru
      _
    // Predicated region
    $region26: #{tpu_custom_call.1} parent=1 // pred_check
      _
    $region27: #{tpu_custom_call.1} parent=1 // pred_check_branch
      %66 = sbr.rel (0) target = $region29
    $region28: #{tpu_custom_call.1} parent=1 // pred_region
      %67 = dma.done [#allocation8], 1536
    $region29: #{tpu_custom_call.1} parent=1 // pred_fallthru
      _
    // Predicated region
    $region30: #{tpu_custom_call.1} parent=1 // pred_check
      _
    $region31: #{tpu_custom_call.1} parent=1 // pred_check_branch
      %69 = sbr.rel (0) target = $region33
    $region32: #{tpu_custom_call.1} parent=1 // pred_region
      %70 = dma.done [#allocation6], 16
    $region33: #{tpu_custom_call.1} parent=1 // pred_fallthru
      _
    // Predicated region
    $region34: #{tpu_custom_call.1} parent=1 // pred_check
      _
    $region35: #{tpu_custom_call.1} parent=1 // pred_check_branch
      %72 = sbr.rel (0) target = $region37
    $region36: #{tpu_custom_call.1} parent=1 // pred_region
      %73 = dma.done [#allocation8], 2048
    $region37: #{tpu_custom_call.1} parent=1 // pred_fallthru
      _
    %74 = sfence
    %v76 = vld [vmem:[#allocation3] sm:$0xf]
    %v77 = vld [vmem:[#allocation3 + $0x4] sm:$0xf]
    %v78 = vld [vmem:[#allocation3 + $0x8] sm:$0xf]
    %v79 = vld [vmem:[#allocation3 + $0xc] sm:$0xf]
    %v80 = vld [vmem:[#allocation3 + $0x10] sm:$0xf]
    %v81 = vld [vmem:[#allocation3 + $0x14] sm:$0xf]
    %v82 = vld [vmem:[#allocation3 + $0x18] sm:$0xf]
    %v83 = vld [vmem:[#allocation3 + $0x1c] sm:$0xf]
    %v84 = vld [vmem:[#allocation3 + $0x20] sm:$0xf]
    %v85 = vld [vmem:[#allocation3 + $0x24] sm:$0xf]
    %v86 = vld [vmem:[#allocation3 + $0x28] sm:$0xf]
    %v87 = vld [vmem:[#allocation3 + $0x2c] sm:$0xf]
    %v88 = vld [vmem:[#allocation3 + $0x30] sm:$0xf]
    %v89 = vld [vmem:[#allocation3 + $0x34] sm:$0xf]
    %v90 = vld [vmem:[#allocation3 + $0x38] sm:$0xf]
    %v91 = vld [vmem:[#allocation3 + $0x3c] sm:$0xf]
    %v92 = vld [vmem:[#allocation7] sm:$0xff]
    %v93 = vld [vmem:[#allocation7 + $0x8] sm:$0xf]
    %v94 = vld [vmem:[#allocation7 + $0xc] sm:$0xff]
    %v95 = vld [vmem:[#allocation7 + $0x14] sm:$0xf]
    %v96 = vld [vmem:[#allocation7 + $0x18] sm:$0xff]
    %v97 = vld [vmem:[#allocation7 + $0x20] sm:$0xf]
    %v98 = vld [vmem:[#allocation7 + $0x24] sm:$0xff]
    %v99 = vld [vmem:[#allocation7 + $0x2c] sm:$0xf]
    %v100 = vld [vmem:[#allocation7 + $0x30] sm:$0xff]
    %v101 = vld [vmem:[#allocation7 + $0x38] sm:$0xf]
    %v102 = vld [vmem:[#allocation7 + $0x3c] sm:$0xff]
    %v103 = vld [vmem:[#allocation7 + $0x44] sm:$0xf]
    %v104 = vld [vmem:[#allocation7 + $0x48] sm:$0xff]
    %v105 = vld [vmem:[#allocation7 + $0x50] sm:$0xf]
    %v106 = vld [vmem:[#allocation7 + $0x54] sm:$0xff]
    %v107 = vld [vmem:[#allocation7 + $0x5c] sm:$0xf]
    %v124 = vunpack.c.l.b16 %v76
    %v125 = vunpack.c.l.b16 %v77
    %v126 = vunpack.c.l.b16 %v78
    %v127 = vunpack.c.l.b16 %v79
    %v128 = vunpack.c.l.b16 %v80
    %v129 = vunpack.c.l.b16 %v81
    %v130 = vunpack.c.l.b16 %v82
    %v131 = vunpack.c.l.b16 %v83
    %v132 = vunpack.c.l.b16 %v84
    %v133 = vunpack.c.l.b16 %v85
    %v134 = vunpack.c.l.b16 %v86
    %v135 = vunpack.c.l.b16 %v87
    %v136 = vunpack.c.l.b16 %v88
    %v137 = vunpack.c.l.b16 %v89
    %v138 = vunpack.c.l.b16 %v90
    %v139 = vunpack.c.l.b16 %v91
    %v140 = vpack.c.b16 %v125, %v124
    %v141 = vpack.c.b16 %v127, %v126
    %v142 = vpack.c.b16 %v129, %v128
    %v143 = vpack.c.b16 %v131, %v130
    %v144 = vpack.c.b16 %v133, %v132
    %v145 = vpack.c.b16 %v135, %v134
    %v146 = vpack.c.b16 %v137, %v136
    %v147 = vpack.c.b16 %v139, %v138
    %v164 = vunpack.c.l.b16 %v92
    %v165 = vunpack.c.h.b16 %v92
    %v166 = vunpack.c.l.b16 %v93
    %v167 = vunpack.c.l.b16 %v94
    %v168 = vunpack.c.h.b16 %v94
    %v169 = vunpack.c.l.b16 %v95
    %v170 = vunpack.c.l.b16 %v96
    %v171 = vunpack.c.h.b16 %v96
    %v172 = vunpack.c.l.b16 %v97
    %v173 = vunpack.c.l.b16 %v98
    %v174 = vunpack.c.h.b16 %v98
    %v175 = vunpack.c.l.b16 %v99
    %v176 = vunpack.c.l.b16 %v100
    %v177 = vunpack.c.h.b16 %v100
    %v178 = vunpack.c.l.b16 %v101
    %v179 = vunpack.c.l.b16 %v102
    %v180 = vunpack.c.h.b16 %v102
    %v181 = vunpack.c.l.b16 %v103
    %v182 = vunpack.c.l.b16 %v104
    %v183 = vunpack.c.h.b16 %v104
    %v184 = vunpack.c.l.b16 %v105
    %v185 = vunpack.c.l.b16 %v106
    %v186 = vunpack.c.h.b16 %v106
    %v187 = vunpack.c.l.b16 %v107
    %v188 = vpack.c.b16 %v167, %v164
    %v189 = vpack.c.b16 %v168, %v165
    %v190 = vpack.c.b16 %v169, %v166
    %v191 = vpack.c.b16 %v173, %v170
    %v192 = vpack.c.b16 %v174, %v171
    %v193 = vpack.c.b16 %v175, %v172
    %v194 = vpack.c.b16 %v179, %v176
    %v195 = vpack.c.b16 %v180, %v177
    %v196 = vpack.c.b16 %v181, %v178
    %v197 = vpack.c.b16 %v185, %v182
    %v198 = vpack.c.b16 %v186, %v183
    %v199 = vpack.c.b16 %v187, %v184
    %vm212 = vcmask 523264
    %v214 = vsel %vm212, %v140, 0
    %v217 = vsel %vm212, %v141, 0
    %v220 = vsel %vm212, %v142, 0
    %v223 = vsel %vm212, %v143, 0
    %v226 = vsel %vm212, %v144, 0
    %v229 = vsel %vm212, %v145, 0
    %v232 = vsel %vm212, %v146, 0
    %v235 = vsel %vm212, %v147, 0
    %237 = vmatprep.subr.bf16.mxu0 0
    %238 = vmatpush1.bf16.msra.mxu0 0
    %239 = vmatprep.subr.bf16.mxu0 0
    %240 = vmatpush1.bf16.msra.mxu0 0
    %241 = vmatprep.subr.bf16.mxu0 0
    %242 = vmatpush1.bf16.msra.mxu0 0
    %243 = vmatprep.subr.bf16.mxu0 0
    %244 = vmatpush1.bf16.msra.mxu0 0
    %245 = vmatprep.subr.bf16.mxu0 %v198
    %246 = vmatpush1.bf16.msra.mxu0 %v197
    %247 = vmatprep.subr.bf16.mxu0 %v195
    %248 = vmatpush1.bf16.msra.mxu0 %v194
    %249 = vmatprep.subr.bf16.mxu0 %v192
    %250 = vmatpush1.bf16.msra.mxu0 %v191
    %251 = vmatprep.subr.bf16.mxu0 %v189
    %252 = vmatpush1.bf16.msra.mxu0 %v188
    %253 = vmatprep.subr.bf16.mxu0 0
    %254 = vmatpush2.bf16.msra.mxu0 0
    %255 = vmatprep.subr.bf16.mxu0 0
    %256 = vmatpush2.bf16.msra.mxu0 0
    %257 = vmatprep.subr.bf16.mxu0 0
    %258 = vmatpush2.bf16.msra.mxu0 0
    %259 = vmatprep.subr.bf16.mxu0 0
    %260 = vmatpush2.bf16.msra.mxu0 0
    %261 = vmatprep.subr.bf16.mxu0 0
    %262 = vmatpush2.bf16.msra.mxu0 0
    %263 = vmatprep.subr.bf16.mxu0 0
    %264 = vmatpush2.bf16.msra.mxu0 0
    %265 = vmatprep.subr.bf16.mxu0 0
    %266 = vmatpush2.bf16.msra.mxu0 0
    %267 = vmatprep.subr.bf16.mxu0 0
    %268 = vmatpush2.bf16.msra.mxu0 0
    %269 = vmatprep.mubr.bf16.mxu0 0
    %270 = vmatmul.mubr.bf16.gmra.mxu0 %v214
    %v271 = vpop.f32.mrf.mxu0
    %v272 = vadd.f32 0.0, %v271
    %v273 = vpop.f32.mrf.mxu0
    %v274 = vadd.f32 0.0, %v273
    %v275 = vpop.f32.mrf.mxu0
    %v276 = vadd.f32 0.0, %v275
    %v277 = vpop.f32.mrf.mxu0
    %v278 = vadd.f32 0.0, %v277
    %279 = vmatprep.mubr.bf16.mxu0 0
    %280 = vmatmul.mubr.bf16.gmra.mxu0 %v217
    %v281 = vpop.f32.mrf.mxu0
    %v282 = vadd.f32 0.0, %v281
    %v283 = vpop.f32.mrf.mxu0
    %v284 = vadd.f32 0.0, %v283
    %v285 = vpop.f32.mrf.mxu0
    %v286 = vadd.f32 0.0, %v285
    %v287 = vpop.f32.mrf.mxu0
    %v288 = vadd.f32 0.0, %v287
    %289 = vmatprep.mubr.bf16.mxu0 0
    %290 = vmatmul.mubr.bf16.gmra.mxu0 %v220
    %v291 = vpop.f32.mrf.mxu0
    %v292 = vadd.f32 0.0, %v291
    %v293 = vpop.f32.mrf.mxu0
    %v294 = vadd.f32 0.0, %v293
    %v295 = vpop.f32.mrf.mxu0
    %v296 = vadd.f32 0.0, %v295
    %v297 = vpop.f32.mrf.mxu0
    %v298 = vadd.f32 0.0, %v297
    %299 = vmatprep.mubr.bf16.mxu0 0
    %300 = vmatmul.mubr.bf16.gmra.mxu0 %v223
    %v301 = vpop.f32.mrf.mxu0
    %v302 = vadd.f32 0.0, %v301
    %v303 = vpop.f32.mrf.mxu0
    %v304 = vadd.f32 0.0, %v303
    %v305 = vpop.f32.mrf.mxu0
    %v306 = vadd.f32 0.0, %v305
    %v307 = vpop.f32.mrf.mxu0
    %v308 = vadd.f32 0.0, %v307
    %309 = vmatprep.mubr.bf16.mxu0 0
    %310 = vmatmul.mubr.bf16.gmra.mxu0 %v226
    %v311 = vpop.f32.mrf.mxu0
    %v312 = vadd.f32 0.0, %v311
    %v313 = vpop.f32.mrf.mxu0
    %v314 = vadd.f32 0.0, %v313
    %v315 = vpop.f32.mrf.mxu0
    %v316 = vadd.f32 0.0, %v315
    %v317 = vpop.f32.mrf.mxu0
    %v318 = vadd.f32 0.0, %v317
    %319 = vmatprep.mubr.bf16.mxu0 0
    %320 = vmatmul.mubr.bf16.gmra.mxu0 %v229
    %v321 = vpop.f32.mrf.mxu0
    %v322 = vadd.f32 0.0, %v321
    %v323 = vpop.f32.mrf.mxu0
    %v324 = vadd.f32 0.0, %v323
    %v325 = vpop.f32.mrf.mxu0
    %v326 = vadd.f32 0.0, %v325
    %v327 = vpop.f32.mrf.mxu0
    %v328 = vadd.f32 0.0, %v327
    %329 = vmatprep.mubr.bf16.mxu0 0
    %330 = vmatmul.mubr.bf16.gmra.mxu0 %v232
    %v331 = vpop.f32.mrf.mxu0
    %v332 = vadd.f32 0.0, %v331
    %v333 = vpop.f32.mrf.mxu0
    %v334 = vadd.f32 0.0, %v333
    %v335 = vpop.f32.mrf.mxu0
    %v336 = vadd.f32 0.0, %v335
    %v337 = vpop.f32.mrf.mxu0
    %v338 = vadd.f32 0.0, %v337
    %339 = vmatprep.mubr.bf16.mxu0 0
    %340 = vmatmul.mubr.bf16.gmra.mxu0 %v235
    %v341 = vpop.f32.mrf.mxu0
    %v342 = vadd.f32 0.0, %v341
    %v343 = vpop.f32.mrf.mxu0
    %v344 = vadd.f32 0.0, %v343
    %v345 = vpop.f32.mrf.mxu0
    %v346 = vadd.f32 0.0, %v345
    %v347 = vpop.f32.mrf.mxu0
    %v348 = vadd.f32 0.0, %v347
    %349 = vdwg.mxu0
    %350 = vmatprep.subr.bf16.mxu0 0
    %351 = vmatpush1.bf16.msra.mxu0 0
    %352 = vmatprep.subr.bf16.mxu0 0
    %353 = vmatpush1.bf16.msra.mxu0 0
    %354 = vmatprep.subr.bf16.mxu0 0
    %355 = vmatpush1.bf16.msra.mxu0 0
    %356 = vmatprep.subr.bf16.mxu0 0
    %357 = vmatpush1.bf16.msra.mxu0 0
    %358 = vmatprep.subr.bf16.mxu0 0
    %359 = vmatpush1.bf16.msra.mxu0 %v199
    %360 = vmatprep.subr.bf16.mxu0 0
    %361 = vmatpush1.bf16.msra.mxu0 %v196
    %362 = vmatprep.subr.bf16.mxu0 0
    %363 = vmatpush1.bf16.msra.mxu0 %v193
    %364 = vmatprep.subr.bf16.mxu0 0
    %365 = vmatpush1.bf16.msra.mxu0 %v190
    %366 = vmatprep.subr.bf16.mxu0 0
    %367 = vmatpush2.bf16.msra.mxu0 0
    %368 = vmatprep.subr.bf16.mxu0 0
    %369 = vmatpush2.bf16.msra.mxu0 0
    %370 = vmatprep.subr.bf16.mxu0 0
    %371 = vmatpush2.bf16.msra.mxu0 0
    %372 = vmatprep.subr.bf16.mxu0 0
    %373 = vmatpush2.bf16.msra.mxu0 0
    %374 = vmatprep.subr.bf16.mxu0 0
    %375 = vmatpush2.bf16.msra.mxu0 0
    %376 = vmatprep.subr.bf16.mxu0 0
    %377 = vmatpush2.bf16.msra.mxu0 0
    %378 = vmatprep.subr.bf16.mxu0 0
    %379 = vmatpush2.bf16.msra.mxu0 0
    %380 = vmatprep.subr.bf16.mxu0 0
    %381 = vmatpush2.bf16.msra.mxu0 0
    %382 = vmatprep.mubr.bf16.mxu0 0
    %383 = vmatmul.mubr.bf16.gmra.mxu0 %v214
    %v384 = vpop.f32.mrf.mxu0
    %v385 = vadd.f32 0.0, %v384
    %v386 = vpop.f32.mrf.mxu0
    %v387 = vpop.f32.mrf.mxu0
    %v388 = vadd.f32 0.0, %v387
    %v389 = vpop.f32.mrf.mxu0
    %390 = vmatprep.mubr.bf16.mxu0 0
    %391 = vmatmul.mubr.bf16.gmra.mxu0 %v217
    %v392 = vpop.f32.mrf.mxu0
    %v393 = vadd.f32 0.0, %v392
    %v394 = vpop.f32.mrf.mxu0
    %v395 = vpop.f32.mrf.mxu0
    %v396 = vadd.f32 0.0, %v395
    %v397 = vpop.f32.mrf.mxu0
    %398 = vmatprep.mubr.bf16.mxu0 0
    %399 = vmatmul.mubr.bf16.gmra.mxu0 %v220
    %v400 = vpop.f32.mrf.mxu0
    %v401 = vadd.f32 0.0, %v400
    %v402 = vpop.f32.mrf.mxu0
    %v403 = vpop.f32.mrf.mxu0
    %v404 = vadd.f32 0.0, %v403
    %v405 = vpop.f32.mrf.mxu0
    %406 = vmatprep.mubr.bf16.mxu0 0
    %407 = vmatmul.mubr.bf16.gmra.mxu0 %v223
    %v408 = vpop.f32.mrf.mxu0
    %v409 = vadd.f32 0.0, %v408
    %v410 = vpop.f32.mrf.mxu0
    %v411 = vpop.f32.mrf.mxu0
    %v412 = vadd.f32 0.0, %v411
    %v413 = vpop.f32.mrf.mxu0
    %414 = vmatprep.mubr.bf16.mxu0 0
    %415 = vmatmul.mubr.bf16.gmra.mxu0 %v226
    %v416 = vpop.f32.mrf.mxu0
    %v417 = vadd.f32 0.0, %v416
    %v418 = vpop.f32.mrf.mxu0
    %v419 = vpop.f32.mrf.mxu0
    %v420 = vadd.f32 0.0, %v419
    %v421 = vpop.f32.mrf.mxu0
    %422 = vmatprep.mubr.bf16.mxu0 0
    %423 = vmatmul.mubr.bf16.gmra.mxu0 %v229
    %v424 = vpop.f32.mrf.mxu0
    %v425 = vadd.f32 0.0, %v424
    %v426 = vpop.f32.mrf.mxu0
    %v427 = vpop.f32.mrf.mxu0
    %v428 = vadd.f32 0.0, %v427
    %v429 = vpop.f32.mrf.mxu0
    %430 = vmatprep.mubr.bf16.mxu0 0
    %431 = vmatmul.mubr.bf16.gmra.mxu0 %v232
    %v432 = vpop.f32.mrf.mxu0
    %v433 = vadd.f32 0.0, %v432
    %v434 = vpop.f32.mrf.mxu0
    %v435 = vpop.f32.mrf.mxu0
    %v436 = vadd.f32 0.0, %v435
    %v437 = vpop.f32.mrf.mxu0
    %438 = vmatprep.mubr.bf16.mxu0 0
    %439 = vmatmul.mubr.bf16.gmra.mxu0 %v235
    %v440 = vpop.f32.mrf.mxu0
    %v441 = vadd.f32 0.0, %v440
    %v442 = vpop.f32.mrf.mxu0
    %v443 = vpop.f32.mrf.mxu0
    %v444 = vadd.f32 0.0, %v443
    %v445 = vpop.f32.mrf.mxu0
    %446 = vdwg.mxu0
    %v447 = vpack.c.bf16 %v276, %v272
    %v448 = vpack.c.bf16 %v278, %v274
    %v449 = vpack.c.bf16 %v388, %v385
    %v450 = vpack.c.bf16 %v286, %v282
    %v451 = vpack.c.bf16 %v288, %v284
    %v452 = vpack.c.bf16 %v396, %v393
    %v453 = vpack.c.bf16 %v296, %v292
    %v454 = vpack.c.bf16 %v298, %v294
    %v455 = vpack.c.bf16 %v404, %v401
    %v456 = vpack.c.bf16 %v306, %v302
    %v457 = vpack.c.bf16 %v308, %v304
    %v458 = vpack.c.bf16 %v412, %v409
    %v459 = vpack.c.bf16 %v316, %v312
    %v460 = vpack.c.bf16 %v318, %v314
    %v461 = vpack.c.bf16 %v420, %v417
    %v462 = vpack.c.bf16 %v326, %v322
    %v463 = vpack.c.bf16 %v328, %v324
    %v464 = vpack.c.bf16 %v428, %v425
    %v465 = vpack.c.bf16 %v336, %v332
    %v466 = vpack.c.bf16 %v338, %v334
    %v467 = vpack.c.bf16 %v436, %v433
    %v468 = vpack.c.bf16 %v346, %v342
    %v469 = vpack.c.bf16 %v348, %v344
    %v470 = vpack.c.bf16 %v444, %v441
    %v495 = vunpack.c.l.b16 %v447
    %v496 = vunpack.c.l.b16 %v448
    %v497 = vunpack.c.l.b16 %v449
    %v498 = vunpack.c.h.b16 %v447
    %v499 = vunpack.c.h.b16 %v448
    %v500 = vunpack.c.h.b16 %v449
    %v501 = vunpack.c.l.b16 %v450
    %v502 = vunpack.c.l.b16 %v451
    %v503 = vunpack.c.l.b16 %v452
    %v504 = vunpack.c.h.b16 %v450
    %v505 = vunpack.c.h.b16 %v451
    %v506 = vunpack.c.h.b16 %v452
    %v507 = vunpack.c.l.b16 %v453
    %v508 = vunpack.c.l.b16 %v454
    %v509 = vunpack.c.l.b16 %v455
    %v510 = vunpack.c.h.b16 %v453
    %v511 = vunpack.c.h.b16 %v454
    %v512 = vunpack.c.h.b16 %v455
    %v513 = vunpack.c.l.b16 %v456
    %v514 = vunpack.c.l.b16 %v457
    %v515 = vunpack.c.l.b16 %v458
    %v516 = vunpack.c.h.b16 %v456
    %v517 = vunpack.c.h.b16 %v457
    %v518 = vunpack.c.h.b16 %v458
    %v519 = vunpack.c.l.b16 %v459
    %v520 = vunpack.c.l.b16 %v460
    %v521 = vunpack.c.l.b16 %v461
    %v522 = vunpack.c.h.b16 %v459
    %v523 = vunpack.c.h.b16 %v460
    %v524 = vunpack.c.h.b16 %v461
    %v525 = vunpack.c.l.b16 %v462
    %v526 = vunpack.c.l.b16 %v463
    %v527 = vunpack.c.l.b16 %v464
    %v528 = vunpack.c.h.b16 %v462
    %v529 = vunpack.c.h.b16 %v463
    %v530 = vunpack.c.h.b16 %v464
    %v531 = vunpack.c.l.b16 %v465
    %v532 = vunpack.c.l.b16 %v466
    %v533 = vunpack.c.l.b16 %v467
    %v534 = vunpack.c.h.b16 %v465
    %v535 = vunpack.c.h.b16 %v466
    %v536 = vunpack.c.h.b16 %v467
    %v537 = vunpack.c.l.b16 %v468
    %v538 = vunpack.c.l.b16 %v469
    %v539 = vunpack.c.l.b16 %v470
    %v540 = vunpack.c.h.b16 %v468
    %v541 = vunpack.c.h.b16 %v469
    %v542 = vunpack.c.h.b16 %v470
    %v543 = vpack.c.b16 %v496, %v495
    %v544 = vpack.c.b16 %v497, %v497
    %v545 = vpack.c.b16 %v499, %v498
    %v546 = vpack.c.b16 %v500, %v500
    %v547 = vpack.c.b16 %v502, %v501
    %v548 = vpack.c.b16 %v503, %v503
    %v549 = vpack.c.b16 %v505, %v504
    %v550 = vpack.c.b16 %v506, %v506
    %v551 = vpack.c.b16 %v508, %v507
    %v552 = vpack.c.b16 %v509, %v509
    %v553 = vpack.c.b16 %v511, %v510
    %v554 = vpack.c.b16 %v512, %v512
    %v555 = vpack.c.b16 %v514, %v513
    %v556 = vpack.c.b16 %v515, %v515
    %v557 = vpack.c.b16 %v517, %v516
    %v558 = vpack.c.b16 %v518, %v518
    %v559 = vpack.c.b16 %v520, %v519
    %v560 = vpack.c.b16 %v521, %v521
    %v561 = vpack.c.b16 %v523, %v522
    %v562 = vpack.c.b16 %v524, %v524
    %v563 = vpack.c.b16 %v526, %v525
    %v564 = vpack.c.b16 %v527, %v527
    %v565 = vpack.c.b16 %v529, %v528
    %v566 = vpack.c.b16 %v530, %v530
    %v567 = vpack.c.b16 %v532, %v531
    %v568 = vpack.c.b16 %v533, %v533
    %v569 = vpack.c.b16 %v535, %v534
    %v570 = vpack.c.b16 %v536, %v536
    %v571 = vpack.c.b16 %v538, %v537
    %v572 = vpack.c.b16 %v539, %v539
    %v573 = vpack.c.b16 %v541, %v540
    %v574 = vpack.c.b16 %v542, %v542
    %607 = vst [vmem:[#allocation2] sm:$0xff] %v543
    %608 = vst [vmem:[#allocation2 + $0x8] sm:$0xf] %v544
    %609 = vst [vmem:[#allocation2 + $0xc] sm:$0xff] %v545
    %610 = vst [vmem:[#allocation2 + $0x14] sm:$0xf] %v546
    %611 = vst [vmem:[#allocation2 + $0x18] sm:$0xff] %v547
    %612 = vst [vmem:[#allocation2 + $0x20] sm:$0xf] %v548
    %613 = vst [vmem:[#allocation2 + $0x24] sm:$0xff] %v549
    %614 = vst [vmem:[#allocation2 + $0x2c] sm:$0xf] %v550
    %615 = vst [vmem:[#allocation2 + $0x30] sm:$0xff] %v551
    %616 = vst [vmem:[#allocation2 + $0x38] sm:$0xf] %v552
    %617 = vst [vmem:[#allocation2 + $0x3c] sm:$0xff] %v553
    %618 = vst [vmem:[#allocation2 + $0x44] sm:$0xf] %v554
    %619 = vst [vmem:[#allocation2 + $0x48] sm:$0xff] %v555
    %620 = vst [vmem:[#allocation2 + $0x50] sm:$0xf] %v556
    %621 = vst [vmem:[#allocation2 + $0x54] sm:$0xff] %v557
    %622 = vst [vmem:[#allocation2 + $0x5c] sm:$0xf] %v558
    %623 = vst [vmem:[#allocation2 + $0x60] sm:$0xff] %v559
    %624 = vst [vmem:[#allocation2 + $0x68] sm:$0xf] %v560
    %625 = vst [vmem:[#allocation2 + $0x6c] sm:$0xff] %v561
    %626 = vst [vmem:[#allocation2 + $0x74] sm:$0xf] %v562
    %627 = vst [vmem:[#allocation2 + $0x78] sm:$0xff] %v563
    %628 = vst [vmem:[#allocation2 + $0x80] sm:$0xf] %v564
    %629 = vst [vmem:[#allocation2 + $0x84] sm:$0xff] %v565
    %630 = vst [vmem:[#allocation2 + $0x8c] sm:$0xf] %v566
    %631 = vst [vmem:[#allocation2 + $0x90] sm:$0xff] %v567
    %632 = vst [vmem:[#allocation2 + $0x98] sm:$0xf] %v568
    %633 = vst [vmem:[#allocation2 + $0x9c] sm:$0xff] %v569
    %634 = vst [vmem:[#allocation2 + $0xa4] sm:$0xf] %v570
    %635 = vst [vmem:[#allocation2 + $0xa8] sm:$0xff] %v571
    %636 = vst [vmem:[#allocation2 + $0xb0] sm:$0xf] %v572
    %637 = vst [vmem:[#allocation2 + $0xb4] sm:$0xff] %v573
    %638 = vst [vmem:[#allocation2 + $0xbc] sm:$0xf] %v574
    %v639 = vld [vmem:[#allocation2] sm:$0xf]
    %v640 = vld [vmem:[#allocation2 + $0xc] sm:$0xf]
    %v641 = vld [vmem:[#allocation2 + $0x18] sm:$0xf]
    %v642 = vld [vmem:[#allocation2 + $0x24] sm:$0xf]
    %v643 = vld [vmem:[#allocation2 + $0x30] sm:$0xf]
    %v644 = vld [vmem:[#allocation2 + $0x3c] sm:$0xf]
    %v645 = vld [vmem:[#allocation2 + $0x48] sm:$0xf]
    %v646 = vld [vmem:[#allocation2 + $0x54] sm:$0xf]
    %v647 = vld [vmem:[#allocation2 + $0x4] sm:$0xf]
    %v648 = vld [vmem:[#allocation2 + $0x10] sm:$0xf]
    %v649 = vld [vmem:[#allocation2 + $0x1c] sm:$0xf]
    %v650 = vld [vmem:[#allocation2 + $0x28] sm:$0xf]
    %v651 = vld [vmem:[#allocation2 + $0x34] sm:$0xf]
    %v652 = vld [vmem:[#allocation2 + $0x40] sm:$0xf]
    %v653 = vld [vmem:[#allocation2 + $0x4c] sm:$0xf]
    %v654 = vld [vmem:[#allocation2 + $0x58] sm:$0xf]
    %v663 = vunpack.c.l.b16 %v639
    %v664 = vunpack.c.l.b16 %v640
    %v665 = vunpack.c.l.b16 %v641
    %v666 = vunpack.c.l.b16 %v642
    %v667 = vunpack.c.l.b16 %v643
    %v668 = vunpack.c.l.b16 %v644
    %v669 = vunpack.c.l.b16 %v645
    %v670 = vunpack.c.l.b16 %v646
    %v671 = vpack.c.b16 %v664, %v663
    %v672 = vpack.c.b16 %v666, %v665
    %v673 = vpack.c.b16 %v668, %v667
    %v674 = vpack.c.b16 %v670, %v669
    %675 = vrot.lane.b32.xlu0 %v671, 64
    %v676 = vpop.permute.xlu0 %675
    %677 = vrot.lane.b32.xlu0 %v672, 64
    %v678 = vpop.permute.xlu0 %677
    %679 = vrot.lane.b32.xlu0 %v673, 64
    %v680 = vpop.permute.xlu0 %679
    %681 = vrot.lane.b32.xlu0 %v674, 64
    %v682 = vpop.permute.xlu0 %681
    %vm683 = vcmask 130048
    %v685 = vsel %vm683, %v671, 0
    %v688 = vsel %vm683, %v672, 0
    %v691 = vsel %vm683, %v673, 0
    %v694 = vsel %vm683, %v674, 0
    %v697 = vsel %vm683, %v676, 0
    %v700 = vsel %vm683, %v678, 0
    %v703 = vsel %vm683, %v680, 0
    %v706 = vsel %vm683, %v682, 0
    %708 = vmatprep.subr.bf16.mxu0 0
    %709 = vmatpush1.bf16.xpose.msra.mxu0 0
    %710 = vmatprep.subr.bf16.mxu0 0
    %711 = vmatpush1.bf16.xpose.msra.mxu0 0
    %712 = vmatprep.subr.bf16.mxu0 0
    %713 = vmatpush1.bf16.xpose.msra.mxu0 0
    %714 = vmatprep.subr.bf16.mxu0 0
    %715 = vmatpush1.bf16.xpose.msra.mxu0 0
    %716 = vmatprep.subr.bf16.mxu0 0
    %717 = vmatpush1.bf16.xpose.msra.mxu0 %v706
    %718 = vmatprep.subr.bf16.mxu0 0
    %719 = vmatpush1.bf16.xpose.msra.mxu0 %v703
    %720 = vmatprep.subr.bf16.mxu0 0
    %721 = vmatpush1.bf16.xpose.msra.mxu0 %v700
    %722 = vmatprep.subr.bf16.mxu0 0
    %723 = vmatpush1.bf16.xpose.msra.mxu0 %v697
    %724 = vmatprep.subr.bf16.mxu0 0
    %725 = vmatpush2.bf16.xpose.msra.mxu0 0
    %726 = vmatprep.subr.bf16.mxu0 0
    %727 = vmatpush2.bf16.xpose.msra.mxu0 0
    %728 = vmatprep.subr.bf16.mxu0 0
    %729 = vmatpush2.bf16.xpose.msra.mxu0 0
    %730 = vmatprep.subr.bf16.mxu0 0
    %731 = vmatpush2.bf16.xpose.msra.mxu0 0
    %732 = vmatprep.subr.bf16.mxu0 0
    %733 = vmatpush2.bf16.xpose.msra.mxu0 0
    %734 = vmatprep.subr.bf16.mxu0 0
    %735 = vmatpush2.bf16.xpose.msra.mxu0 0
    %736 = vmatprep.subr.bf16.mxu0 0
    %737 = vmatpush2.bf16.xpose.msra.mxu0 0
    %738 = vmatprep.subr.bf16.mxu0 0
    %739 = vmatpush2.bf16.xpose.msra.mxu0 0
    %740 = vmatprep.mubr.bf16.mxu0 0
    %741 = vmatmul.mubr.bf16.gmra.mxu0 %v685
    %v742 = vpop.f32.mrf.mxu0
    %v743 = vadd.f32 0.0, %v742
    %v744 = vpop.f32.mrf.mxu0
    %v745 = vpop.f32.mrf.mxu0
    %v746 = vadd.f32 0.0, %v745
    %v747 = vpop.f32.mrf.mxu0
    %748 = vmatprep.mubr.bf16.mxu0 0
    %749 = vmatmul.mubr.bf16.gmra.mxu0 %v688
    %v750 = vpop.f32.mrf.mxu0
    %v751 = vadd.f32 0.0, %v750
    %v752 = vpop.f32.mrf.mxu0
    %v753 = vpop.f32.mrf.mxu0
    %v754 = vadd.f32 0.0, %v753
    %v755 = vpop.f32.mrf.mxu0
    %756 = vmatprep.mubr.bf16.mxu0 0
    %757 = vmatmul.mubr.bf16.gmra.mxu0 %v691
    %v758 = vpop.f32.mrf.mxu0
    %v759 = vadd.f32 0.0, %v758
    %v760 = vpop.f32.mrf.mxu0
    %v761 = vpop.f32.mrf.mxu0
    %v762 = vadd.f32 0.0, %v761
    %v763 = vpop.f32.mrf.mxu0
    %764 = vmatprep.mubr.bf16.mxu0 0
    %765 = vmatmul.mubr.bf16.gmra.mxu0 %v694
    %v766 = vpop.f32.mrf.mxu0
    %v767 = vadd.f32 0.0, %v766
    %v768 = vpop.f32.mrf.mxu0
    %v769 = vpop.f32.mrf.mxu0
    %v770 = vadd.f32 0.0, %v769
    %v771 = vpop.f32.mrf.mxu0
    %772 = vdwg.mxu0
    %v773 = vmul.f32 %v743, 0.25
    %v774 = vmul.f32 %v746, 0.25
    %v775 = vmul.f32 %v751, 0.25
    %v776 = vmul.f32 %v754, 0.25
    %v777 = vmul.f32 %v759, 0.25
    %v778 = vmul.f32 %v762, 0.25
    %v779 = vmul.f32 %v767, 0.25
    %v780 = vmul.f32 %v770, 0.25
    %v781 = vsel %vm212, %v773, -inf
    %782 = vmax.xlane.f32.xlu0 %v781
    %v783 = vpop.xlane.xlu0 %782
    %v784 = vsel %vm212, %v774, -inf
    %785 = vmax.xlane.f32.xlu0 %v784
    %v786 = vpop.xlane.xlu0 %785
    %v787 = vsel %vm212, %v775, -inf
    %788 = vmax.xlane.f32.xlu0 %v787
    %v789 = vpop.xlane.xlu0 %788
    %v790 = vsel %vm212, %v776, -inf
    %791 = vmax.xlane.f32.xlu0 %v790
    %v792 = vpop.xlane.xlu0 %791
    %v793 = vsel %vm212, %v777, -inf
    %794 = vmax.xlane.f32.xlu0 %v793
    %v795 = vpop.xlane.xlu0 %794
    %v796 = vsel %vm212, %v778, -inf
    %797 = vmax.xlane.f32.xlu0 %v796
    %v798 = vpop.xlane.xlu0 %797
    %v799 = vsel %vm212, %v779, -inf
    %800 = vmax.xlane.f32.xlu0 %v799
    %v801 = vpop.xlane.xlu0 %800
    %v802 = vsel %vm212, %v780, -inf
    %803 = vmax.xlane.f32.xlu0 %v802
    %v804 = vpop.xlane.xlu0 %803
    %v805 = vsub.f32 %v773, %v783
    %v806 = vsub.f32 %v774, %v786
    %v807 = vsub.f32 %v775, %v789
    %v808 = vsub.f32 %v776, %v792
    %v809 = vsub.f32 %v777, %v795
    %v810 = vsub.f32 %v778, %v798
    %v811 = vsub.f32 %v779, %v801
    %v812 = vsub.f32 %v780, %v804
    %v813 = vmul.f32 %v805, 1.442695
    %v814 = vpow.pop %v813
    %v815 = vmul.f32 %v806, 1.442695
    %v816 = vpow.pop %v815
    %v817 = vmul.f32 %v807, 1.442695
    %v818 = vpow.pop %v817
    %v819 = vmul.f32 %v808, 1.442695
    %v820 = vpow.pop %v819
    %v821 = vmul.f32 %v809, 1.442695
    %v822 = vpow.pop %v821
    %v823 = vmul.f32 %v810, 1.442695
    %v824 = vpow.pop %v823
    %v825 = vmul.f32 %v811, 1.442695
    %v826 = vpow.pop %v825
    %v827 = vmul.f32 %v812, 1.442695
    %v828 = vpow.pop %v827
    %v829 = vsel %vm212, %v814, 0.0
    %830 = vadd.xlane.f32.xlu0 %v829
    %v831 = vpop.xlane.xlu0 %830
    %v832 = vsel %vm212, %v816, 0.0
    %833 = vadd.xlane.f32.xlu0 %v832
    %v834 = vpop.xlane.xlu0 %833
    %v835 = vsel %vm212, %v818, 0.0
    %836 = vadd.xlane.f32.xlu0 %v835
    %v837 = vpop.xlane.xlu0 %836
    %v838 = vsel %vm212, %v820, 0.0
    %839 = vadd.xlane.f32.xlu0 %v838
    %v840 = vpop.xlane.xlu0 %839
    %v841 = vsel %vm212, %v822, 0.0
    %842 = vadd.xlane.f32.xlu0 %v841
    %v843 = vpop.xlane.xlu0 %842
    %v844 = vsel %vm212, %v824, 0.0
    %845 = vadd.xlane.f32.xlu0 %v844
    %v846 = vpop.xlane.xlu0 %845
    %v847 = vsel %vm212, %v826, 0.0
    %848 = vadd.xlane.f32.xlu0 %v847
    %v849 = vpop.xlane.xlu0 %848
    %v850 = vsel %vm212, %v828, 0.0
    %851 = vadd.xlane.f32.xlu0 %v850
    %v852 = vpop.xlane.xlu0 %851
    %v853 = vrcp.pop %v831
    %v854 = vrcp.pop %v834
    %v855 = vrcp.pop %v837
    %v856 = vrcp.pop %v840
    %v857 = vrcp.pop %v843
    %v858 = vrcp.pop %v846
    %v859 = vrcp.pop %v849
    %v860 = vrcp.pop %v852
    %s861 = sld [smem:[#allocation9]]
    %v862 = vstv %s861
    %v863 = vmul.f32 %v862, %v853
    %v864 = vmul.f32 %v862, %v854
    %v865 = vmul.f32 %v862, %v855
    %v866 = vmul.f32 %v862, %v856
    %v867 = vmul.f32 %v862, %v857
    %v868 = vmul.f32 %v862, %v858
    %v869 = vmul.f32 %v862, %v859
    %v870 = vmul.f32 %v862, %v860
    %v871 = vmul.f32 %v863, %v814
    %v872 = vmul.f32 %v864, %v816
    %v873 = vmul.f32 %v865, %v818
    %v874 = vmul.f32 %v866, %v820
    %v875 = vmul.f32 %v867, %v822
    %v876 = vmul.f32 %v868, %v824
    %v877 = vmul.f32 %v869, %v826
    %v878 = vmul.f32 %v870, %v828
    %v879 = vld [vmem:[#allocation10] sm:$0xf]
    %v880 = vld [vmem:[#allocation10 + $0x4] sm:$0xf]
    %v881 = vld [vmem:[#allocation10 + $0x8] sm:$0xf]
    %v882 = vld [vmem:[#allocation10 + $0xc] sm:$0xf]
    %v883 = vld [vmem:[#allocation10 + $0x10] sm:$0xf]
    %v884 = vld [vmem:[#allocation10 + $0x14] sm:$0xf]
    %v885 = vld [vmem:[#allocation10 + $0x18] sm:$0xf]
    %v886 = vld [vmem:[#allocation10 + $0x1c] sm:$0xf]
    %v887 = vunpack.c.l.bf16 %v879
    %v888 = vunpack.c.l.bf16 %v880
    %v889 = vunpack.c.l.bf16 %v881
    %v890 = vunpack.c.l.bf16 %v882
    %v891 = vunpack.c.l.bf16 %v883
    %v892 = vunpack.c.l.bf16 %v884
    %v893 = vunpack.c.l.bf16 %v885
    %v894 = vunpack.c.l.bf16 %v886
    %v895 = vadd.f32 %v871, %v887
    %v896 = vadd.f32 %v872, %v888
    %v897 = vadd.f32 %v873, %v889
    %v898 = vadd.f32 %v874, %v890
    %v899 = vadd.f32 %v875, %v891
    %v900 = vadd.f32 %v876, %v892
    %v901 = vadd.f32 %v877, %v893
    %v902 = vadd.f32 %v878, %v894
    %v903 = vpack.c.bf16 %v896, %v895
    %v904 = vpack.c.bf16 %v898, %v897
    %v905 = vpack.c.bf16 %v900, %v899
    %v906 = vpack.c.bf16 %v902, %v901
    %907 = vrot.lane.b32.xlu0 %v671, 112
    %v908 = vpop.permute.xlu0 %907
    %909 = vrot.lane.b32.xlu0 %v672, 112
    %v910 = vpop.permute.xlu0 %909
    %911 = vrot.lane.b32.xlu0 %v673, 112
    %v912 = vpop.permute.xlu0 %911
    %913 = vrot.lane.b32.xlu0 %v674, 112
    %v914 = vpop.permute.xlu0 %913
    %915 = vrot.lane.b32.xlu0 %v671, 48
    %v916 = vpop.permute.xlu0 %915
    %917 = vrot.lane.b32.xlu0 %v672, 48
    %v918 = vpop.permute.xlu0 %917
    %919 = vrot.lane.b32.xlu0 %v673, 48
    %v920 = vpop.permute.xlu0 %919
    %921 = vrot.lane.b32.xlu0 %v674, 48
    %v922 = vpop.permute.xlu0 %921
    %v924 = vsel %vm683, %v908, 0
    %v927 = vsel %vm683, %v910, 0
    %v930 = vsel %vm683, %v912, 0
    %v933 = vsel %vm683, %v914, 0
    %v936 = vsel %vm683, %v916, 0
    %v939 = vsel %vm683, %v918, 0
    %v942 = vsel %vm683, %v920, 0
    %v945 = vsel %vm683, %v922, 0
    %947 = vmatprep.subr.bf16.mxu0 0
    %948 = vmatpush1.bf16.xpose.msra.mxu0 0
    %949 = vmatprep.subr.bf16.mxu0 0
    %950 = vmatpush1.bf16.xpose.msra.mxu0 0
    %951 = vmatprep.subr.bf16.mxu0 0
    %952 = vmatpush1.bf16.xpose.msra.mxu0 0
    %953 = vmatprep.subr.bf16.mxu0 0
    %954 = vmatpush1.bf16.xpose.msra.mxu0 0
    %955 = vmatprep.subr.bf16.mxu0 0
    %956 = vmatpush1.bf16.xpose.msra.mxu0 %v945
    %957 = vmatprep.subr.bf16.mxu0 0
    %958 = vmatpush1.bf16.xpose.msra.mxu0 %v942
    %959 = vmatprep.subr.bf16.mxu0 0
    %960 = vmatpush1.bf16.xpose.msra.mxu0 %v939
    %961 = vmatprep.subr.bf16.mxu0 0
    %962 = vmatpush1.bf16.xpose.msra.mxu0 %v936
    %963 = vmatprep.subr.bf16.mxu0 0
    %964 = vmatpush2.bf16.xpose.msra.mxu0 0
    %965 = vmatprep.subr.bf16.mxu0 0
    %966 = vmatpush2.bf16.xpose.msra.mxu0 0
    %967 = vmatprep.subr.bf16.mxu0 0
    %968 = vmatpush2.bf16.xpose.msra.mxu0 0
    %969 = vmatprep.subr.bf16.mxu0 0
    %970 = vmatpush2.bf16.xpose.msra.mxu0 0
    %971 = vmatprep.subr.bf16.mxu0 0
    %972 = vmatpush2.bf16.xpose.msra.mxu0 0
    %973 = vmatprep.subr.bf16.mxu0 0
    %974 = vmatpush2.bf16.xpose.msra.mxu0 0
    %975 = vmatprep.subr.bf16.mxu0 0
    %976 = vmatpush2.bf16.xpose.msra.mxu0 0
    %977 = vmatprep.subr.bf16.mxu0 0
    %978 = vmatpush2.bf16.xpose.msra.mxu0 0
    %979 = vmatprep.mubr.bf16.mxu0 0
    %980 = vmatmul.mubr.bf16.gmra.mxu0 %v924
    %v981 = vpop.f32.mrf.mxu0
    %v982 = vadd.f32 0.0, %v981
    %v983 = vpop.f32.mrf.mxu0
    %v984 = vpop.f32.mrf.mxu0
    %v985 = vadd.f32 0.0, %v984
    %v986 = vpop.f32.mrf.mxu0
    %987 = vmatprep.mubr.bf16.mxu0 0
    %988 = vmatmul.mubr.bf16.gmra.mxu0 %v927
    %v989 = vpop.f32.mrf.mxu0
    %v990 = vadd.f32 0.0, %v989
    %v991 = vpop.f32.mrf.mxu0
    %v992 = vpop.f32.mrf.mxu0
    %v993 = vadd.f32 0.0, %v992
    %v994 = vpop.f32.mrf.mxu0
    %995 = vmatprep.mubr.bf16.mxu0 0
    %996 = vmatmul.mubr.bf16.gmra.mxu0 %v930
    %v997 = vpop.f32.mrf.mxu0
    %v998 = vadd.f32 0.0, %v997
    %v999 = vpop.f32.mrf.mxu0
    %v1000 = vpop.f32.mrf.mxu0
    %v1001 = vadd.f32 0.0, %v1000
    %v1002 = vpop.f32.mrf.mxu0
    %1003 = vmatprep.mubr.bf16.mxu0 0
    %1004 = vmatmul.mubr.bf16.gmra.mxu0 %v933
    %v1005 = vpop.f32.mrf.mxu0
    %v1006 = vadd.f32 0.0, %v1005
    %v1007 = vpop.f32.mrf.mxu0
    %v1008 = vpop.f32.mrf.mxu0
    %v1009 = vadd.f32 0.0, %v1008
    %v1010 = vpop.f32.mrf.mxu0
    %1011 = vdwg.mxu0
    %v1012 = vmul.f32 %v982, 0.25
    %v1013 = vmul.f32 %v985, 0.25
    %v1014 = vmul.f32 %v990, 0.25
    %v1015 = vmul.f32 %v993, 0.25
    %v1016 = vmul.f32 %v998, 0.25
    %v1017 = vmul.f32 %v1001, 0.25
    %v1018 = vmul.f32 %v1006, 0.25
    %v1019 = vmul.f32 %v1009, 0.25
    %v1020 = vsel %vm212, %v1012, -inf
    %1021 = vmax.xlane.f32.xlu0 %v1020
    %v1022 = vpop.xlane.xlu0 %1021
    %v1023 = vsel %vm212, %v1013, -inf
    %1024 = vmax.xlane.f32.xlu0 %v1023
    %v1025 = vpop.xlane.xlu0 %1024
    %v1026 = vsel %vm212, %v1014, -inf
    %1027 = vmax.xlane.f32.xlu0 %v1026
    %v1028 = vpop.xlane.xlu0 %1027
    %v1029 = vsel %vm212, %v1015, -inf
    %1030 = vmax.xlane.f32.xlu0 %v1029
    %v1031 = vpop.xlane.xlu0 %1030
    %v1032 = vsel %vm212, %v1016, -inf
    %1033 = vmax.xlane.f32.xlu0 %v1032
    %v1034 = vpop.xlane.xlu0 %1033
    %v1035 = vsel %vm212, %v1017, -inf
    %1036 = vmax.xlane.f32.xlu0 %v1035
    %v1037 = vpop.xlane.xlu0 %1036
    %v1038 = vsel %vm212, %v1018, -inf
    %1039 = vmax.xlane.f32.xlu0 %v1038
    %v1040 = vpop.xlane.xlu0 %1039
    %v1041 = vsel %vm212, %v1019, -inf
    %1042 = vmax.xlane.f32.xlu0 %v1041
    %v1043 = vpop.xlane.xlu0 %1042
    %v1044 = vsub.f32 %v1012, %v1022
    %v1045 = vsub.f32 %v1013, %v1025
    %v1046 = vsub.f32 %v1014, %v1028
    %v1047 = vsub.f32 %v1015, %v1031
    %v1048 = vsub.f32 %v1016, %v1034
    %v1049 = vsub.f32 %v1017, %v1037
    %v1050 = vsub.f32 %v1018, %v1040
    %v1051 = vsub.f32 %v1019, %v1043
    %v1052 = vmul.f32 %v1044, 1.442695
    %v1053 = vpow.pop %v1052
    %v1054 = vmul.f32 %v1045, 1.442695
    %v1055 = vpow.pop %v1054
    %v1056 = vmul.f32 %v1046, 1.442695
    %v1057 = vpow.pop %v1056
    %v1058 = vmul.f32 %v1047, 1.442695
    %v1059 = vpow.pop %v1058
    %v1060 = vmul.f32 %v1048, 1.442695
    %v1061 = vpow.pop %v1060
    %v1062 = vmul.f32 %v1049, 1.442695
    %v1063 = vpow.pop %v1062
    %v1064 = vmul.f32 %v1050, 1.442695
    %v1065 = vpow.pop %v1064
    %v1066 = vmul.f32 %v1051, 1.442695
    %v1067 = vpow.pop %v1066
    %v1068 = vsel %vm212, %v1053, 0.0
    %1069 = vadd.xlane.f32.xlu0 %v1068
    %v1070 = vpop.xlane.xlu0 %1069
    %v1071 = vsel %vm212, %v1055, 0.0
    %1072 = vadd.xlane.f32.xlu0 %v1071
    %v1073 = vpop.xlane.xlu0 %1072
    %v1074 = vsel %vm212, %v1057, 0.0
    %1075 = vadd.xlane.f32.xlu0 %v1074
    %v1076 = vpop.xlane.xlu0 %1075
    %v1077 = vsel %vm212, %v1059, 0.0
    %1078 = vadd.xlane.f32.xlu0 %v1077
    %v1079 = vpop.xlane.xlu0 %1078
    %v1080 = vsel %vm212, %v1061, 0.0
    %1081 = vadd.xlane.f32.xlu0 %v1080
    %v1082 = vpop.xlane.xlu0 %1081
    %v1083 = vsel %vm212, %v1063, 0.0
    %1084 = vadd.xlane.f32.xlu0 %v1083
    %v1085 = vpop.xlane.xlu0 %1084
    %v1086 = vsel %vm212, %v1065, 0.0
    %1087 = vadd.xlane.f32.xlu0 %v1086
    %v1088 = vpop.xlane.xlu0 %1087
    %v1089 = vsel %vm212, %v1067, 0.0
    %1090 = vadd.xlane.f32.xlu0 %v1089
    %v1091 = vpop.xlane.xlu0 %1090
    %v1092 = vrcp.pop %v1070
    %v1093 = vrcp.pop %v1073
    %v1094 = vrcp.pop %v1076
    %v1095 = vrcp.pop %v1079
    %v1096 = vrcp.pop %v1082
    %v1097 = vrcp.pop %v1085
    %v1098 = vrcp.pop %v1088
    %v1099 = vrcp.pop %v1091
    %s1100 = sld [smem:[#allocation9 + $0x1]]
    %v1101 = vstv %s1100
    %v1102 = vmul.f32 %v1101, %v1092
    %v1103 = vmul.f32 %v1101, %v1093
    %v1104 = vmul.f32 %v1101, %v1094
    %v1105 = vmul.f32 %v1101, %v1095
    %v1106 = vmul.f32 %v1101, %v1096
    %v1107 = vmul.f32 %v1101, %v1097
    %v1108 = vmul.f32 %v1101, %v1098
    %v1109 = vmul.f32 %v1101, %v1099
    %v1110 = vmul.f32 %v1102, %v1053
    %v1111 = vmul.f32 %v1103, %v1055
    %v1112 = vmul.f32 %v1104, %v1057
    %v1113 = vmul.f32 %v1105, %v1059
    %v1114 = vmul.f32 %v1106, %v1061
    %v1115 = vmul.f32 %v1107, %v1063
    %v1116 = vmul.f32 %v1108, %v1065
    %v1117 = vmul.f32 %v1109, %v1067
    %s1118 = scalar_lea.vmem [#allocation10], 32
    %v1119 = vld [vmem:[%s1118] sm:$0xf]
    %v1120 = vld [vmem:[%s1118 + $0x4] sm:$0xf]
    %v1121 = vld [vmem:[%s1118 + $0x8] sm:$0xf]
    %v1122 = vld [vmem:[%s1118 + $0xc] sm:$0xf]
    %v1123 = vld [vmem:[%s1118 + $0x10] sm:$0xf]
    %v1124 = vld [vmem:[%s1118 + $0x14] sm:$0xf]
    %v1125 = vld [vmem:[%s1118 + $0x18] sm:$0xf]
    %v1126 = vld [vmem:[%s1118 + $0x1c] sm:$0xf]
    %v1127 = vunpack.c.l.bf16 %v1119
    %v1128 = vunpack.c.l.bf16 %v1120
    %v1129 = vunpack.c.l.bf16 %v1121
    %v1130 = vunpack.c.l.bf16 %v1122
    %v1131 = vunpack.c.l.bf16 %v1123
    %v1132 = vunpack.c.l.bf16 %v1124
    %v1133 = vunpack.c.l.bf16 %v1125
    %v1134 = vunpack.c.l.bf16 %v1126
    %v1135 = vadd.f32 %v1110, %v1127
    %v1136 = vadd.f32 %v1111, %v1128
    %v1137 = vadd.f32 %v1112, %v1129
    %v1138 = vadd.f32 %v1113, %v1130
    %v1139 = vadd.f32 %v1114, %v1131
    %v1140 = vadd.f32 %v1115, %v1132
    %v1141 = vadd.f32 %v1116, %v1133
    %v1142 = vadd.f32 %v1117, %v1134
    %v1143 = vpack.c.bf16 %v1136, %v1135
    %v1144 = vpack.c.bf16 %v1138, %v1137
    %v1145 = vpack.c.bf16 %v1140, %v1139
    %v1146 = vpack.c.bf16 %v1142, %v1141
    %v1155 = vunpack.c.l.b16 %v647
    %v1156 = vunpack.c.l.b16 %v648
    %v1157 = vunpack.c.l.b16 %v649
    %v1158 = vunpack.c.l.b16 %v650
    %v1159 = vunpack.c.l.b16 %v651
    %v1160 = vunpack.c.l.b16 %v652
    %v1161 = vunpack.c.l.b16 %v653
    %v1162 = vunpack.c.l.b16 %v654
    %v1163 = vpack.c.b16 %v1156, %v1155
    %v1164 = vpack.c.b16 %v1158, %v1157
    %v1165 = vpack.c.b16 %v1160, %v1159
    %v1166 = vpack.c.b16 %v1162, %v1161
    %1167 = vrot.lane.b32.xlu0 %v1163, 64
    %v1168 = vpop.permute.xlu0 %1167
    %1169 = vrot.lane.b32.xlu0 %v1164, 64
    %v1170 = vpop.permute.xlu0 %1169
    %1171 = vrot.lane.b32.xlu0 %v1165, 64
    %v1172 = vpop.permute.xlu0 %1171
    %1173 = vrot.lane.b32.xlu0 %v1166, 64
    %v1174 = vpop.permute.xlu0 %1173
    %v1180 = vsel %vm212, %v1143, 0
    %v1183 = vsel %vm212, %v1144, 0
    %v1186 = vsel %vm212, %v1145, 0
    %v1189 = vsel %vm212, %v1146, 0
    %1191 = vmatprep.subr.bf16.mxu0 0
    %1192 = vmatpush1.bf16.msra.mxu0 0
    %1193 = vmatprep.subr.bf16.mxu0 0
    %1194 = vmatpush1.bf16.msra.mxu0 0
    %1195 = vmatprep.subr.bf16.mxu0 0
    %1196 = vmatpush1.bf16.msra.mxu0 0
    %1197 = vmatprep.subr.bf16.mxu0 0
    %1198 = vmatpush1.bf16.msra.mxu0 0
    %1199 = vmatprep.subr.bf16.mxu0 0
    %1200 = vmatpush1.bf16.msra.mxu0 %v1174
    %1201 = vmatprep.subr.bf16.mxu0 0
    %1202 = vmatpush1.bf16.msra.mxu0 %v1172
    %1203 = vmatprep.subr.bf16.mxu0 0
    %1204 = vmatpush1.bf16.msra.mxu0 %v1170
    %1205 = vmatprep.subr.bf16.mxu0 0
    %1206 = vmatpush1.bf16.msra.mxu0 %v1168
    %1207 = vmatprep.subr.bf16.mxu0 0
    %1208 = vmatpush2.bf16.msra.mxu0 0
    %1209 = vmatprep.subr.bf16.mxu0 0
    %1210 = vmatpush2.bf16.msra.mxu0 0
    %1211 = vmatprep.subr.bf16.mxu0 0
    %1212 = vmatpush2.bf16.msra.mxu0 0
    %1213 = vmatprep.subr.bf16.mxu0 0
    %1214 = vmatpush2.bf16.msra.mxu0 0
    %1215 = vmatprep.subr.bf16.mxu0 0
    %1216 = vmatpush2.bf16.msra.mxu0 0
    %1217 = vmatprep.subr.bf16.mxu0 0
    %1218 = vmatpush2.bf16.msra.mxu0 0
    %1219 = vmatprep.subr.bf16.mxu0 0
    %1220 = vmatpush2.bf16.msra.mxu0 0
    %1221 = vmatprep.subr.bf16.mxu0 0
    %1222 = vmatpush2.bf16.msra.mxu0 0
    %1223 = vmatprep.mubr.bf16.mxu0 0
    %1224 = vmatmul.mubr.bf16.gmra.mxu0 %v1180
    %v1225 = vpop.f32.mrf.mxu0
    %v1226 = vadd.f32 0.0, %v1225
    %v1227 = vpop.f32.mrf.mxu0
    %v1228 = vpop.f32.mrf.mxu0
    %v1229 = vadd.f32 0.0, %v1228
    %v1230 = vpop.f32.mrf.mxu0
    %1231 = vmatprep.mubr.bf16.mxu0 0
    %1232 = vmatmul.mubr.bf16.gmra.mxu0 %v1183
    %v1233 = vpop.f32.mrf.mxu0
    %v1234 = vadd.f32 0.0, %v1233
    %v1235 = vpop.f32.mrf.mxu0
    %v1236 = vpop.f32.mrf.mxu0
    %v1237 = vadd.f32 0.0, %v1236
    %v1238 = vpop.f32.mrf.mxu0
    %1239 = vmatprep.mubr.bf16.mxu0 0
    %1240 = vmatmul.mubr.bf16.gmra.mxu0 %v1186
    %v1241 = vpop.f32.mrf.mxu0
    %v1242 = vadd.f32 0.0, %v1241
    %v1243 = vpop.f32.mrf.mxu0
    %v1244 = vpop.f32.mrf.mxu0
    %v1245 = vadd.f32 0.0, %v1244
    %v1246 = vpop.f32.mrf.mxu0
    %1247 = vmatprep.mubr.bf16.mxu0 0
    %1248 = vmatmul.mubr.bf16.gmra.mxu0 %v1189
    %v1249 = vpop.f32.mrf.mxu0
    %v1250 = vadd.f32 0.0, %v1249
    %v1251 = vpop.f32.mrf.mxu0
    %v1252 = vpop.f32.mrf.mxu0
    %v1253 = vadd.f32 0.0, %v1252
    %v1254 = vpop.f32.mrf.mxu0
    %1255 = vdwg.mxu0
    %v1261 = vsel %vm212, %v903, 0
    %v1264 = vsel %vm212, %v904, 0
    %v1267 = vsel %vm212, %v905, 0
    %v1270 = vsel %vm212, %v906, 0
    %1272 = vmatprep.subr.bf16.mxu0 0
    %1273 = vmatpush1.bf16.msra.mxu0 0
    %1274 = vmatprep.subr.bf16.mxu0 0
    %1275 = vmatpush1.bf16.msra.mxu0 0
    %1276 = vmatprep.subr.bf16.mxu0 0
    %1277 = vmatpush1.bf16.msra.mxu0 0
    %1278 = vmatprep.subr.bf16.mxu0 0
    %1279 = vmatpush1.bf16.msra.mxu0 0
    %1280 = vmatprep.subr.bf16.mxu0 0
    %1281 = vmatpush1.bf16.msra.mxu0 %v1166
    %1282 = vmatprep.subr.bf16.mxu0 0
    %1283 = vmatpush1.bf16.msra.mxu0 %v1165
    %1284 = vmatprep.subr.bf16.mxu0 0
    %1285 = vmatpush1.bf16.msra.mxu0 %v1164
    %1286 = vmatprep.subr.bf16.mxu0 0
    %1287 = vmatpush1.bf16.msra.mxu0 %v1163
    %1288 = vmatprep.subr.bf16.mxu0 0
    %1289 = vmatpush2.bf16.msra.mxu0 0
    %1290 = vmatprep.subr.bf16.mxu0 0
    %1291 = vmatpush2.bf16.msra.mxu0 0
    %1292 = vmatprep.subr.bf16.mxu0 0
    %1293 = vmatpush2.bf16.msra.mxu0 0
    %1294 = vmatprep.subr.bf16.mxu0 0
    %1295 = vmatpush2.bf16.msra.mxu0 0
    %1296 = vmatprep.subr.bf16.mxu0 0
    %1297 = vmatpush2.bf16.msra.mxu0 0
    %1298 = vmatprep.subr.bf16.mxu0 0
    %1299 = vmatpush2.bf16.msra.mxu0 0
    %1300 = vmatprep.subr.bf16.mxu0 0
    %1301 = vmatpush2.bf16.msra.mxu0 0
    %1302 = vmatprep.subr.bf16.mxu0 0
    %1303 = vmatpush2.bf16.msra.mxu0 0
    %1304 = vmatprep.mubr.bf16.mxu0 0
    %1305 = vmatmul.mubr.bf16.gmra.mxu0 %v1261
    %v1306 = vpop.f32.mrf.mxu0
    %v1307 = vadd.f32 %v1226, %v1306
    %v1308 = vpop.f32.mrf.mxu0
    %v1309 = vpop.f32.mrf.mxu0
    %v1310 = vadd.f32 %v1229, %v1309
    %v1311 = vpop.f32.mrf.mxu0
    %1312 = vmatprep.mubr.bf16.mxu0 0
    %1313 = vmatmul.mubr.bf16.gmra.mxu0 %v1264
    %v1314 = vpop.f32.mrf.mxu0
    %v1315 = vadd.f32 %v1234, %v1314
    %v1316 = vpop.f32.mrf.mxu0
    %v1317 = vpop.f32.mrf.mxu0
    %v1318 = vadd.f32 %v1237, %v1317
    %v1319 = vpop.f32.mrf.mxu0
    %1320 = vmatprep.mubr.bf16.mxu0 0
    %1321 = vmatmul.mubr.bf16.gmra.mxu0 %v1267
    %v1322 = vpop.f32.mrf.mxu0
    %v1323 = vadd.f32 %v1242, %v1322
    %v1324 = vpop.f32.mrf.mxu0
    %v1325 = vpop.f32.mrf.mxu0
    %v1326 = vadd.f32 %v1245, %v1325
    %v1327 = vpop.f32.mrf.mxu0
    %1328 = vmatprep.mubr.bf16.mxu0 0
    %1329 = vmatmul.mubr.bf16.gmra.mxu0 %v1270
    %v1330 = vpop.f32.mrf.mxu0
    %v1331 = vadd.f32 %v1250, %v1330
    %v1332 = vpop.f32.mrf.mxu0
    %v1333 = vpop.f32.mrf.mxu0
    %v1334 = vadd.f32 %v1253, %v1333
    %v1335 = vpop.f32.mrf.mxu0
    %1336 = vdwg.mxu0
    %v1337 = vld [vmem:[#allocation2 + $0x8] sm:$0xf]
    %v1338 = vld [vmem:[#allocation2 + $0x14] sm:$0xf]
    %v1339 = vld [vmem:[#allocation2 + $0x20] sm:$0xf]
    %v1340 = vld [vmem:[#allocation2 + $0x2c] sm:$0xf]
    %v1341 = vld [vmem:[#allocation2 + $0x38] sm:$0xf]
    %v1342 = vld [vmem:[#allocation2 + $0x44] sm:$0xf]
    %v1343 = vld [vmem:[#allocation2 + $0x50] sm:$0xf]
    %v1344 = vld [vmem:[#allocation2 + $0x5c] sm:$0xf]
    %1345 = vrot.lane.b32.xlu0 %v671, 96
    %v1346 = vpop.permute.xlu0 %1345
    %1347 = vrot.lane.b32.xlu0 %v672, 96
    %v1348 = vpop.permute.xlu0 %1347
    %1349 = vrot.lane.b32.xlu0 %v673, 96
    %v1350 = vpop.permute.xlu0 %1349
    %1351 = vrot.lane.b32.xlu0 %v674, 96
    %v1352 = vpop.permute.xlu0 %1351
    %1353 = vrot.lane.b32.xlu0 %v671, 32
    %v1354 = vpop.permute.xlu0 %1353
    %1355 = vrot.lane.b32.xlu0 %v672, 32
    %v1356 = vpop.permute.xlu0 %1355
    %1357 = vrot.lane.b32.xlu0 %v673, 32
    %v1358 = vpop.permute.xlu0 %1357
    %1359 = vrot.lane.b32.xlu0 %v674, 32
    %v1360 = vpop.permute.xlu0 %1359
    %v1362 = vsel %vm683, %v1346, 0
    %v1365 = vsel %vm683, %v1348, 0
    %v1368 = vsel %vm683, %v1350, 0
    %v1371 = vsel %vm683, %v1352, 0
    %v1374 = vsel %vm683, %v1354, 0
    %v1377 = vsel %vm683, %v1356, 0
    %v1380 = vsel %vm683, %v1358, 0
    %v1383 = vsel %vm683, %v1360, 0
    %1385 = vmatprep.subr.bf16.mxu0 0
    %1386 = vmatpush1.bf16.xpose.msra.mxu0 0
    %1387 = vmatprep.subr.bf16.mxu0 0
    %1388 = vmatpush1.bf16.xpose.msra.mxu0 0
    %1389 = vmatprep.subr.bf16.mxu0 0
    %1390 = vmatpush1.bf16.xpose.msra.mxu0 0
    %1391 = vmatprep.subr.bf16.mxu0 0
    %1392 = vmatpush1.bf16.xpose.msra.mxu0 0
    %1393 = vmatprep.subr.bf16.mxu0 0
    %1394 = vmatpush1.bf16.xpose.msra.mxu0 %v1383
    %1395 = vmatprep.subr.bf16.mxu0 0
    %1396 = vmatpush1.bf16.xpose.msra.mxu0 %v1380
    %1397 = vmatprep.subr.bf16.mxu0 0
    %1398 = vmatpush1.bf16.xpose.msra.mxu0 %v1377
    %1399 = vmatprep.subr.bf16.mxu0 0
    %1400 = vmatpush1.bf16.xpose.msra.mxu0 %v1374
    %1401 = vmatprep.subr.bf16.mxu0 0
    %1402 = vmatpush2.bf16.xpose.msra.mxu0 0
    %1403 = vmatprep.subr.bf16.mxu0 0
    %1404 = vmatpush2.bf16.xpose.msra.mxu0 0
    %1405 = vmatprep.subr.bf16.mxu0 0
    %1406 = vmatpush2.bf16.xpose.msra.mxu0 0
    %1407 = vmatprep.subr.bf16.mxu0 0
    %1408 = vmatpush2.bf16.xpose.msra.mxu0 0
    %1409 = vmatprep.subr.bf16.mxu0 0
    %1410 = vmatpush2.bf16.xpose.msra.mxu0 0
    %1411 = vmatprep.subr.bf16.mxu0 0
    %1412 = vmatpush2.bf16.xpose.msra.mxu0 0
    %1413 = vmatprep.subr.bf16.mxu0 0
    %1414 = vmatpush2.bf16.xpose.msra.mxu0 0
    %1415 = vmatprep.subr.bf16.mxu0 0
    %1416 = vmatpush2.bf16.xpose.msra.mxu0 0
    %1417 = vmatprep.mubr.bf16.mxu0 0
    %1418 = vmatmul.mubr.bf16.gmra.mxu0 %v1362
    %v1419 = vpop.f32.mrf.mxu0
    %v1420 = vadd.f32 0.0, %v1419
    %v1421 = vpop.f32.mrf.mxu0
    %v1422 = vpop.f32.mrf.mxu0
    %v1423 = vadd.f32 0.0, %v1422
    %v1424 = vpop.f32.mrf.mxu0
    %1425 = vmatprep.mubr.bf16.mxu0 0
    %1426 = vmatmul.mubr.bf16.gmra.mxu0 %v1365
    %v1427 = vpop.f32.mrf.mxu0
    %v1428 = vadd.f32 0.0, %v1427
    %v1429 = vpop.f32.mrf.mxu0
    %v1430 = vpop.f32.mrf.mxu0
    %v1431 = vadd.f32 0.0, %v1430
    %v1432 = vpop.f32.mrf.mxu0
    %1433 = vmatprep.mubr.bf16.mxu0 0
    %1434 = vmatmul.mubr.bf16.gmra.mxu0 %v1368
    %v1435 = vpop.f32.mrf.mxu0
    %v1436 = vadd.f32 0.0, %v1435
    %v1437 = vpop.f32.mrf.mxu0
    %v1438 = vpop.f32.mrf.mxu0
    %v1439 = vadd.f32 0.0, %v1438
    %v1440 = vpop.f32.mrf.mxu0
    %1441 = vmatprep.mubr.bf16.mxu0 0
    %1442 = vmatmul.mubr.bf16.gmra.mxu0 %v1371
    %v1443 = vpop.f32.mrf.mxu0
    %v1444 = vadd.f32 0.0, %v1443
    %v1445 = vpop.f32.mrf.mxu0
    %v1446 = vpop.f32.mrf.mxu0
    %v1447 = vadd.f32 0.0, %v1446
    %v1448 = vpop.f32.mrf.mxu0
    %1449 = vdwg.mxu0
    %v1450 = vmul.f32 %v1420, 0.25
    %v1451 = vmul.f32 %v1423, 0.25
    %v1452 = vmul.f32 %v1428, 0.25
    %v1453 = vmul.f32 %v1431, 0.25
    %v1454 = vmul.f32 %v1436, 0.25
    %v1455 = vmul.f32 %v1439, 0.25
    %v1456 = vmul.f32 %v1444, 0.25
    %v1457 = vmul.f32 %v1447, 0.25
    %v1458 = vsel %vm212, %v1450, -inf
    %1459 = vmax.xlane.f32.xlu0 %v1458
    %v1460 = vpop.xlane.xlu0 %1459
    %v1461 = vsel %vm212, %v1451, -inf
    %1462 = vmax.xlane.f32.xlu0 %v1461
    %v1463 = vpop.xlane.xlu0 %1462
    %v1464 = vsel %vm212, %v1452, -inf
    %1465 = vmax.xlane.f32.xlu0 %v1464
    %v1466 = vpop.xlane.xlu0 %1465
    %v1467 = vsel %vm212, %v1453, -inf
    %1468 = vmax.xlane.f32.xlu0 %v1467
    %v1469 = vpop.xlane.xlu0 %1468
    %v1470 = vsel %vm212, %v1454, -inf
    %1471 = vmax.xlane.f32.xlu0 %v1470
    %v1472 = vpop.xlane.xlu0 %1471
    %v1473 = vsel %vm212, %v1455, -inf
    %1474 = vmax.xlane.f32.xlu0 %v1473
    %v1475 = vpop.xlane.xlu0 %1474
    %v1476 = vsel %vm212, %v1456, -inf
    %1477 = vmax.xlane.f32.xlu0 %v1476
    %v1478 = vpop.xlane.xlu0 %1477
    %v1479 = vsel %vm212, %v1457, -inf
    %1480 = vmax.xlane.f32.xlu0 %v1479
    %v1481 = vpop.xlane.xlu0 %1480
    %v1482 = vsub.f32 %v1450, %v1460
    %v1483 = vsub.f32 %v1451, %v1463
    %v1484 = vsub.f32 %v1452, %v1466
    %v1485 = vsub.f32 %v1453, %v1469
    %v1486 = vsub.f32 %v1454, %v1472
    %v1487 = vsub.f32 %v1455, %v1475
    %v1488 = vsub.f32 %v1456, %v1478
    %v1489 = vsub.f32 %v1457, %v1481
    %v1490 = vmul.f32 %v1482, 1.442695
    %v1491 = vpow.pop %v1490
    %v1492 = vmul.f32 %v1483, 1.442695
    %v1493 = vpow.pop %v1492
    %v1494 = vmul.f32 %v1484, 1.442695
    %v1495 = vpow.pop %v1494
    %v1496 = vmul.f32 %v1485, 1.442695
    %v1497 = vpow.pop %v1496
    %v1498 = vmul.f32 %v1486, 1.442695
    %v1499 = vpow.pop %v1498
    %v1500 = vmul.f32 %v1487, 1.442695
    %v1501 = vpow.pop %v1500
    %v1502 = vmul.f32 %v1488, 1.442695
    %v1503 = vpow.pop %v1502
    %v1504 = vmul.f32 %v1489, 1.442695
    %v1505 = vpow.pop %v1504
    %v1506 = vsel %vm212, %v1491, 0.0
    %1507 = vadd.xlane.f32.xlu0 %v1506
    %v1508 = vpop.xlane.xlu0 %1507
    %v1509 = vsel %vm212, %v1493, 0.0
    %1510 = vadd.xlane.f32.xlu0 %v1509
    %v1511 = vpop.xlane.xlu0 %1510
    %v1512 = vsel %vm212, %v1495, 0.0
    %1513 = vadd.xlane.f32.xlu0 %v1512
    %v1514 = vpop.xlane.xlu0 %1513
    %v1515 = vsel %vm212, %v1497, 0.0
    %1516 = vadd.xlane.f32.xlu0 %v1515
    %v1517 = vpop.xlane.xlu0 %1516
    %v1518 = vsel %vm212, %v1499, 0.0
    %1519 = vadd.xlane.f32.xlu0 %v1518
    %v1520 = vpop.xlane.xlu0 %1519
    %v1521 = vsel %vm212, %v1501, 0.0
    %1522 = vadd.xlane.f32.xlu0 %v1521
    %v1523 = vpop.xlane.xlu0 %1522
    %v1524 = vsel %vm212, %v1503, 0.0
    %1525 = vadd.xlane.f32.xlu0 %v1524
    %v1526 = vpop.xlane.xlu0 %1525
    %v1527 = vsel %vm212, %v1505, 0.0
    %1528 = vadd.xlane.f32.xlu0 %v1527
    %v1529 = vpop.xlane.xlu0 %1528
    %v1530 = vrcp.pop %v1508
    %v1531 = vrcp.pop %v1511
    %v1532 = vrcp.pop %v1514
    %v1533 = vrcp.pop %v1517
    %v1534 = vrcp.pop %v1520
    %v1535 = vrcp.pop %v1523
    %v1536 = vrcp.pop %v1526
    %v1537 = vrcp.pop %v1529
    %s1538 = sld [smem:[#allocation9 + $0x2]]
    %v1539 = vstv %s1538
    %v1540 = vmul.f32 %v1539, %v1530
    %v1541 = vmul.f32 %v1539, %v1531
    %v1542 = vmul.f32 %v1539, %v1532
    %v1543 = vmul.f32 %v1539, %v1533
    %v1544 = vmul.f32 %v1539, %v1534
    %v1545 = vmul.f32 %v1539, %v1535
    %v1546 = vmul.f32 %v1539, %v1536
    %v1547 = vmul.f32 %v1539, %v1537
    %v1548 = vmul.f32 %v1540, %v1491
    %v1549 = vmul.f32 %v1541, %v1493
    %v1550 = vmul.f32 %v1542, %v1495
    %v1551 = vmul.f32 %v1543, %v1497
    %v1552 = vmul.f32 %v1544, %v1499
    %v1553 = vmul.f32 %v1545, %v1501
    %v1554 = vmul.f32 %v1546, %v1503
    %v1555 = vmul.f32 %v1547, %v1505
    %s1556 = scalar_lea.vmem [#allocation10], 64
    %v1557 = vld [vmem:[%s1556] sm:$0xf]
    %v1558 = vld [vmem:[%s1556 + $0x4] sm:$0xf]
    %v1559 = vld [vmem:[%s1556 + $0x8] sm:$0xf]
    %v1560 = vld [vmem:[%s1556 + $0xc] sm:$0xf]
    %v1561 = vld [vmem:[%s1556 + $0x10] sm:$0xf]
    %v1562 = vld [vmem:[%s1556 + $0x14] sm:$0xf]
    %v1563 = vld [vmem:[%s1556 + $0x18] sm:$0xf]
    %v1564 = vld [vmem:[%s1556 + $0x1c] sm:$0xf]
    %v1565 = vunpack.c.l.bf16 %v1557
    %v1566 = vunpack.c.l.bf16 %v1558
    %v1567 = vunpack.c.l.bf16 %v1559
    %v1568 = vunpack.c.l.bf16 %v1560
    %v1569 = vunpack.c.l.bf16 %v1561
    %v1570 = vunpack.c.l.bf16 %v1562
    %v1571 = vunpack.c.l.bf16 %v1563
    %v1572 = vunpack.c.l.bf16 %v1564
    %v1573 = vadd.f32 %v1548, %v1565
    %v1574 = vadd.f32 %v1549, %v1566
    %v1575 = vadd.f32 %v1550, %v1567
    %v1576 = vadd.f32 %v1551, %v1568
    %v1577 = vadd.f32 %v1552, %v1569
    %v1578 = vadd.f32 %v1553, %v1570
    %v1579 = vadd.f32 %v1554, %v1571
    %v1580 = vadd.f32 %v1555, %v1572
    %v1581 = vpack.c.bf16 %v1574, %v1573
    %v1582 = vpack.c.bf16 %v1576, %v1575
    %v1583 = vpack.c.bf16 %v1578, %v1577
    %v1584 = vpack.c.bf16 %v1580, %v1579
    %v1593 = vunpack.c.l.b16 %v1337
    %v1594 = vunpack.c.l.b16 %v1338
    %v1595 = vunpack.c.l.b16 %v1339
    %v1596 = vunpack.c.l.b16 %v1340
    %v1597 = vunpack.c.l.b16 %v1341
    %v1598 = vunpack.c.l.b16 %v1342
    %v1599 = vunpack.c.l.b16 %v1343
    %v1600 = vunpack.c.l.b16 %v1344
    %v1601 = vpack.c.b16 %v1594, %v1593
    %v1602 = vpack.c.b16 %v1596, %v1595
    %v1603 = vpack.c.b16 %v1598, %v1597
    %v1604 = vpack.c.b16 %v1600, %v1599
    %v1610 = vsel %vm212, %v1581, 0
    %v1613 = vsel %vm212, %v1582, 0
    %v1616 = vsel %vm212, %v1583, 0
    %v1619 = vsel %vm212, %v1584, 0
    %1621 = vmatprep.subr.bf16.mxu0 0
    %1622 = vmatpush1.bf16.msra.mxu0 0
    %1623 = vmatprep.subr.bf16.mxu0 0
    %1624 = vmatpush1.bf16.msra.mxu0 0
    %1625 = vmatprep.subr.bf16.mxu0 0
    %1626 = vmatpush1.bf16.msra.mxu0 0
    %1627 = vmatprep.subr.bf16.mxu0 0
    %1628 = vmatpush1.bf16.msra.mxu0 0
    %1629 = vmatprep.subr.bf16.mxu0 0
    %1630 = vmatpush1.bf16.msra.mxu0 %v1604
    %1631 = vmatprep.subr.bf16.mxu0 0
    %1632 = vmatpush1.bf16.msra.mxu0 %v1603
    %1633 = vmatprep.subr.bf16.mxu0 0
    %1634 = vmatpush1.bf16.msra.mxu0 %v1602
    %1635 = vmatprep.subr.bf16.mxu0 0
    %1636 = vmatpush1.bf16.msra.mxu0 %v1601
    %1637 = vmatprep.subr.bf16.mxu0 0
    %1638 = vmatpush2.bf16.msra.mxu0 0
    %1639 = vmatprep.subr.bf16.mxu0 0
    %1640 = vmatpush2.bf16.msra.mxu0 0
    %1641 = vmatprep.subr.bf16.mxu0 0
    %1642 = vmatpush2.bf16.msra.mxu0 0
    %1643 = vmatprep.subr.bf16.mxu0 0
    %1644 = vmatpush2.bf16.msra.mxu0 0
    %1645 = vmatprep.subr.bf16.mxu0 0
    %1646 = vmatpush2.bf16.msra.mxu0 0
    %1647 = vmatprep.subr.bf16.mxu0 0
    %1648 = vmatpush2.bf16.msra.mxu0 0
    %1649 = vmatprep.subr.bf16.mxu0 0
    %1650 = vmatpush2.bf16.msra.mxu0 0
    %1651 = vmatprep.subr.bf16.mxu0 0
    %1652 = vmatpush2.bf16.msra.mxu0 0
    %1653 = vmatprep.mubr.bf16.mxu0 0
    %1654 = vmatmul.mubr.bf16.gmra.mxu0 %v1610
    %v1655 = vpop.f32.mrf.mxu0
    %v1656 = vadd.f32 0.0, %v1655
    %v1657 = vpop.f32.mrf.mxu0
    %v1658 = vpop.f32.mrf.mxu0
    %v1659 = vadd.f32 0.0, %v1658
    %v1660 = vpop.f32.mrf.mxu0
    %1661 = vmatprep.mubr.bf16.mxu0 0
    %1662 = vmatmul.mubr.bf16.gmra.mxu0 %v1613
    %v1663 = vpop.f32.mrf.mxu0
    %v1664 = vadd.f32 0.0, %v1663
    %v1665 = vpop.f32.mrf.mxu0
    %v1666 = vpop.f32.mrf.mxu0
    %v1667 = vadd.f32 0.0, %v1666
    %v1668 = vpop.f32.mrf.mxu0
    %1669 = vmatprep.mubr.bf16.mxu0 0
    %1670 = vmatmul.mubr.bf16.gmra.mxu0 %v1616
    %v1671 = vpop.f32.mrf.mxu0
    %v1672 = vadd.f32 0.0, %v1671
    %v1673 = vpop.f32.mrf.mxu0
    %v1674 = vpop.f32.mrf.mxu0
    %v1675 = vadd.f32 0.0, %v1674
    %v1676 = vpop.f32.mrf.mxu0
    %1677 = vmatprep.mubr.bf16.mxu0 0
    %1678 = vmatmul.mubr.bf16.gmra.mxu0 %v1619
    %v1679 = vpop.f32.mrf.mxu0
    %v1680 = vadd.f32 0.0, %v1679
    %v1681 = vpop.f32.mrf.mxu0
    %v1682 = vpop.f32.mrf.mxu0
    %v1683 = vadd.f32 0.0, %v1682
    %v1684 = vpop.f32.mrf.mxu0
    %1685 = vdwg.mxu0
    %v1686 = vadd.f32 %v1307, %v1656
    %v1687 = vadd.f32 %v1310, %v1659
    %v1688 = vadd.f32 %v1315, %v1664
    %v1689 = vadd.f32 %v1318, %v1667
    %v1690 = vadd.f32 %v1323, %v1672
    %v1691 = vadd.f32 %v1326, %v1675
    %v1692 = vadd.f32 %v1331, %v1680
    %v1693 = vadd.f32 %v1334, %v1683
    %1694 = vrot.lane.b32.xlu0 %v671, 80
    %v1695 = vpop.permute.xlu0 %1694
    %1696 = vrot.lane.b32.xlu0 %v672, 80
    %v1697 = vpop.permute.xlu0 %1696
    %1698 = vrot.lane.b32.xlu0 %v673, 80
    %v1699 = vpop.permute.xlu0 %1698
    %1700 = vrot.lane.b32.xlu0 %v674, 80
    %v1701 = vpop.permute.xlu0 %1700
    %1702 = vrot.lane.b32.xlu0 %v671, 16
    %v1703 = vpop.permute.xlu0 %1702
    %1704 = vrot.lane.b32.xlu0 %v672, 16
    %v1705 = vpop.permute.xlu0 %1704
    %1706 = vrot.lane.b32.xlu0 %v673, 16
    %v1707 = vpop.permute.xlu0 %1706
    %1708 = vrot.lane.b32.xlu0 %v674, 16
    %v1709 = vpop.permute.xlu0 %1708
    %v1711 = vsel %vm683, %v1695, 0
    %v1714 = vsel %vm683, %v1697, 0
    %v1717 = vsel %vm683, %v1699, 0
    %v1720 = vsel %vm683, %v1701, 0
    %v1723 = vsel %vm683, %v1703, 0
    %v1726 = vsel %vm683, %v1705, 0
    %v1729 = vsel %vm683, %v1707, 0
    %v1732 = vsel %vm683, %v1709, 0
    %1734 = vmatprep.subr.bf16.mxu0 0
    %1735 = vmatpush1.bf16.xpose.msra.mxu0 0
    %1736 = vmatprep.subr.bf16.mxu0 0
    %1737 = vmatpush1.bf16.xpose.msra.mxu0 0
    %1738 = vmatprep.subr.bf16.mxu0 0
    %1739 = vmatpush1.bf16.xpose.msra.mxu0 0
    %1740 = vmatprep.subr.bf16.mxu0 0
    %1741 = vmatpush1.bf16.xpose.msra.mxu0 0
    %1742 = vmatprep.subr.bf16.mxu0 0
    %1743 = vmatpush1.bf16.xpose.msra.mxu0 %v1732
    %1744 = vmatprep.subr.bf16.mxu0 0
    %1745 = vmatpush1.bf16.xpose.msra.mxu0 %v1729
    %1746 = vmatprep.subr.bf16.mxu0 0
    %1747 = vmatpush1.bf16.xpose.msra.mxu0 %v1726
    %1748 = vmatprep.subr.bf16.mxu0 0
    %1749 = vmatpush1.bf16.xpose.msra.mxu0 %v1723
    %1750 = vmatprep.subr.bf16.mxu0 0
    %1751 = vmatpush2.bf16.xpose.msra.mxu0 0
    %1752 = vmatprep.subr.bf16.mxu0 0
    %1753 = vmatpush2.bf16.xpose.msra.mxu0 0
    %1754 = vmatprep.subr.bf16.mxu0 0
    %1755 = vmatpush2.bf16.xpose.msra.mxu0 0
    %1756 = vmatprep.subr.bf16.mxu0 0
    %1757 = vmatpush2.bf16.xpose.msra.mxu0 0
    %1758 = vmatprep.subr.bf16.mxu0 0
    %1759 = vmatpush2.bf16.xpose.msra.mxu0 0
    %1760 = vmatprep.subr.bf16.mxu0 0
    %1761 = vmatpush2.bf16.xpose.msra.mxu0 0
    %1762 = vmatprep.subr.bf16.mxu0 0
    %1763 = vmatpush2.bf16.xpose.msra.mxu0 0
    %1764 = vmatprep.subr.bf16.mxu0 0
    %1765 = vmatpush2.bf16.xpose.msra.mxu0 0
    %1766 = vmatprep.mubr.bf16.mxu0 0
    %1767 = vmatmul.mubr.bf16.gmra.mxu0 %v1711
    %v1768 = vpop.f32.mrf.mxu0
    %v1769 = vadd.f32 0.0, %v1768
    %v1770 = vpop.f32.mrf.mxu0
    %v1771 = vpop.f32.mrf.mxu0
    %v1772 = vadd.f32 0.0, %v1771
    %v1773 = vpop.f32.mrf.mxu0
    %1774 = vmatprep.mubr.bf16.mxu0 0
    %1775 = vmatmul.mubr.bf16.gmra.mxu0 %v1714
    %v1776 = vpop.f32.mrf.mxu0
    %v1777 = vadd.f32 0.0, %v1776
    %v1778 = vpop.f32.mrf.mxu0
    %v1779 = vpop.f32.mrf.mxu0
    %v1780 = vadd.f32 0.0, %v1779
    %v1781 = vpop.f32.mrf.mxu0
    %1782 = vmatprep.mubr.bf16.mxu0 0
    %1783 = vmatmul.mubr.bf16.gmra.mxu0 %v1717
    %v1784 = vpop.f32.mrf.mxu0
    %v1785 = vadd.f32 0.0, %v1784
    %v1786 = vpop.f32.mrf.mxu0
    %v1787 = vpop.f32.mrf.mxu0
    %v1788 = vadd.f32 0.0, %v1787
    %v1789 = vpop.f32.mrf.mxu0
    %1790 = vmatprep.mubr.bf16.mxu0 0
    %1791 = vmatmul.mubr.bf16.gmra.mxu0 %v1720
    %v1792 = vpop.f32.mrf.mxu0
    %v1793 = vadd.f32 0.0, %v1792
    %v1794 = vpop.f32.mrf.mxu0
    %v1795 = vpop.f32.mrf.mxu0
    %v1796 = vadd.f32 0.0, %v1795
    %v1797 = vpop.f32.mrf.mxu0
    %1798 = vdwg.mxu0
    %v1799 = vmul.f32 %v1769, 0.25
    %v1800 = vmul.f32 %v1772, 0.25
    %v1801 = vmul.f32 %v1777, 0.25
    %v1802 = vmul.f32 %v1780, 0.25
    %v1803 = vmul.f32 %v1785, 0.25
    %v1804 = vmul.f32 %v1788, 0.25
    %v1805 = vmul.f32 %v1793, 0.25
    %v1806 = vmul.f32 %v1796, 0.25
    %v1807 = vsel %vm212, %v1799, -inf
    %1808 = vmax.xlane.f32.xlu0 %v1807
    %v1809 = vpop.xlane.xlu0 %1808
    %v1810 = vsel %vm212, %v1800, -inf
    %1811 = vmax.xlane.f32.xlu0 %v1810
    %v1812 = vpop.xlane.xlu0 %1811
    %v1813 = vsel %vm212, %v1801, -inf
    %1814 = vmax.xlane.f32.xlu0 %v1813
    %v1815 = vpop.xlane.xlu0 %1814
    %v1816 = vsel %vm212, %v1802, -inf
    %1817 = vmax.xlane.f32.xlu0 %v1816
    %v1818 = vpop.xlane.xlu0 %1817
    %v1819 = vsel %vm212, %v1803, -inf
    %1820 = vmax.xlane.f32.xlu0 %v1819
    %v1821 = vpop.xlane.xlu0 %1820
    %v1822 = vsel %vm212, %v1804, -inf
    %1823 = vmax.xlane.f32.xlu0 %v1822
    %v1824 = vpop.xlane.xlu0 %1823
    %v1825 = vsel %vm212, %v1805, -inf
    %1826 = vmax.xlane.f32.xlu0 %v1825
    %v1827 = vpop.xlane.xlu0 %1826
    %v1828 = vsel %vm212, %v1806, -inf
    %1829 = vmax.xlane.f32.xlu0 %v1828
    %v1830 = vpop.xlane.xlu0 %1829
    %v1831 = vsub.f32 %v1799, %v1809
    %v1832 = vsub.f32 %v1800, %v1812
    %v1833 = vsub.f32 %v1801, %v1815
    %v1834 = vsub.f32 %v1802, %v1818
    %v1835 = vsub.f32 %v1803, %v1821
    %v1836 = vsub.f32 %v1804, %v1824
    %v1837 = vsub.f32 %v1805, %v1827
    %v1838 = vsub.f32 %v1806, %v1830
    %v1839 = vmul.f32 %v1831, 1.442695
    %v1840 = vpow.pop %v1839
    %v1841 = vmul.f32 %v1832, 1.442695
    %v1842 = vpow.pop %v1841
    %v1843 = vmul.f32 %v1833, 1.442695
    %v1844 = vpow.pop %v1843
    %v1845 = vmul.f32 %v1834, 1.442695
    %v1846 = vpow.pop %v1845
    %v1847 = vmul.f32 %v1835, 1.442695
    %v1848 = vpow.pop %v1847
    %v1849 = vmul.f32 %v1836, 1.442695
    %v1850 = vpow.pop %v1849
    %v1851 = vmul.f32 %v1837, 1.442695
    %v1852 = vpow.pop %v1851
    %v1853 = vmul.f32 %v1838, 1.442695
    %v1854 = vpow.pop %v1853
    %v1855 = vsel %vm212, %v1840, 0.0
    %1856 = vadd.xlane.f32.xlu0 %v1855
    %v1857 = vpop.xlane.xlu0 %1856
    %v1858 = vsel %vm212, %v1842, 0.0
    %1859 = vadd.xlane.f32.xlu0 %v1858
    %v1860 = vpop.xlane.xlu0 %1859
    %v1861 = vsel %vm212, %v1844, 0.0
    %1862 = vadd.xlane.f32.xlu0 %v1861
    %v1863 = vpop.xlane.xlu0 %1862
    %v1864 = vsel %vm212, %v1846, 0.0
    %1865 = vadd.xlane.f32.xlu0 %v1864
    %v1866 = vpop.xlane.xlu0 %1865
    %v1867 = vsel %vm212, %v1848, 0.0
    %1868 = vadd.xlane.f32.xlu0 %v1867
    %v1869 = vpop.xlane.xlu0 %1868
    %v1870 = vsel %vm212, %v1850, 0.0
    %1871 = vadd.xlane.f32.xlu0 %v1870
    %v1872 = vpop.xlane.xlu0 %1871
    %v1873 = vsel %vm212, %v1852, 0.0
    %1874 = vadd.xlane.f32.xlu0 %v1873
    %v1875 = vpop.xlane.xlu0 %1874
    %v1876 = vsel %vm212, %v1854, 0.0
    %1877 = vadd.xlane.f32.xlu0 %v1876
    %v1878 = vpop.xlane.xlu0 %1877
    %v1879 = vrcp.pop %v1857
    %v1880 = vrcp.pop %v1860
    %v1881 = vrcp.pop %v1863
    %v1882 = vrcp.pop %v1866
    %v1883 = vrcp.pop %v1869
    %v1884 = vrcp.pop %v1872
    %v1885 = vrcp.pop %v1875
    %v1886 = vrcp.pop %v1878
    %s1887 = sld [smem:[#allocation9 + $0x3]]
    %v1888 = vstv %s1887
    %v1889 = vmul.f32 %v1888, %v1879
    %v1890 = vmul.f32 %v1888, %v1880
    %v1891 = vmul.f32 %v1888, %v1881
    %v1892 = vmul.f32 %v1888, %v1882
    %v1893 = vmul.f32 %v1888, %v1883
    %v1894 = vmul.f32 %v1888, %v1884
    %v1895 = vmul.f32 %v1888, %v1885
    %v1896 = vmul.f32 %v1888, %v1886
    %v1897 = vmul.f32 %v1889, %v1840
    %v1898 = vmul.f32 %v1890, %v1842
    %v1899 = vmul.f32 %v1891, %v1844
    %v1900 = vmul.f32 %v1892, %v1846
    %v1901 = vmul.f32 %v1893, %v1848
    %v1902 = vmul.f32 %v1894, %v1850
    %v1903 = vmul.f32 %v1895, %v1852
    %v1904 = vmul.f32 %v1896, %v1854
    %s1905 = scalar_lea.vmem [#allocation10], 96
    %v1906 = vld [vmem:[%s1905] sm:$0xf]
    %v1907 = vld [vmem:[%s1905 + $0x4] sm:$0xf]
    %v1908 = vld [vmem:[%s1905 + $0x8] sm:$0xf]
    %v1909 = vld [vmem:[%s1905 + $0xc] sm:$0xf]
    %v1910 = vld [vmem:[%s1905 + $0x10] sm:$0xf]
    %v1911 = vld [vmem:[%s1905 + $0x14] sm:$0xf]
    %v1912 = vld [vmem:[%s1905 + $0x18] sm:$0xf]
    %v1913 = vld [vmem:[%s1905 + $0x1c] sm:$0xf]
    %v1914 = vunpack.c.l.bf16 %v1906
    %v1915 = vunpack.c.l.bf16 %v1907
    %v1916 = vunpack.c.l.bf16 %v1908
    %v1917 = vunpack.c.l.bf16 %v1909
    %v1918 = vunpack.c.l.bf16 %v1910
    %v1919 = vunpack.c.l.bf16 %v1911
    %v1920 = vunpack.c.l.bf16 %v1912
    %v1921 = vunpack.c.l.bf16 %v1913
    %v1922 = vadd.f32 %v1897, %v1914
    %v1923 = vadd.f32 %v1898, %v1915
    %v1924 = vadd.f32 %v1899, %v1916
    %v1925 = vadd.f32 %v1900, %v1917
    %v1926 = vadd.f32 %v1901, %v1918
    %v1927 = vadd.f32 %v1902, %v1919
    %v1928 = vadd.f32 %v1903, %v1920
    %v1929 = vadd.f32 %v1904, %v1921
    %v1930 = vpack.c.bf16 %v1923, %v1922
    %v1931 = vpack.c.bf16 %v1925, %v1924
    %v1932 = vpack.c.bf16 %v1927, %v1926
    %v1933 = vpack.c.bf16 %v1929, %v1928
    %1934 = vrot.lane.b32.xlu0 %v1601, 64
    %v1935 = vpop.permute.xlu0 %1934
    %1936 = vrot.lane.b32.xlu0 %v1602, 64
    %v1937 = vpop.permute.xlu0 %1936
    %1938 = vrot.lane.b32.xlu0 %v1603, 64
    %v1939 = vpop.permute.xlu0 %1938
    %1940 = vrot.lane.b32.xlu0 %v1604, 64
    %v1941 = vpop.permute.xlu0 %1940
    %v1947 = vsel %vm212, %v1930, 0
    %v1950 = vsel %vm212, %v1931, 0
    %v1953 = vsel %vm212, %v1932, 0
    %v1956 = vsel %vm212, %v1933, 0
    %1958 = vmatprep.subr.bf16.mxu0 0
    %1959 = vmatpush1.bf16.msra.mxu0 0
    %1960 = vmatprep.subr.bf16.mxu0 0
    %1961 = vmatpush1.bf16.msra.mxu0 0
    %1962 = vmatprep.subr.bf16.mxu0 0
    %1963 = vmatpush1.bf16.msra.mxu0 0
    %1964 = vmatprep.subr.bf16.mxu0 0
    %1965 = vmatpush1.bf16.msra.mxu0 0
    %1966 = vmatprep.subr.bf16.mxu0 0
    %1967 = vmatpush1.bf16.msra.mxu0 %v1941
    %1968 = vmatprep.subr.bf16.mxu0 0
    %1969 = vmatpush1.bf16.msra.mxu0 %v1939
    %1970 = vmatprep.subr.bf16.mxu0 0
    %1971 = vmatpush1.bf16.msra.mxu0 %v1937
    %1972 = vmatprep.subr.bf16.mxu0 0
    %1973 = vmatpush1.bf16.msra.mxu0 %v1935
    %1974 = vmatprep.subr.bf16.mxu0 0
    %1975 = vmatpush2.bf16.msra.mxu0 0
    %1976 = vmatprep.subr.bf16.mxu0 0
    %1977 = vmatpush2.bf16.msra.mxu0 0
    %1978 = vmatprep.subr.bf16.mxu0 0
    %1979 = vmatpush2.bf16.msra.mxu0 0
    %1980 = vmatprep.subr.bf16.mxu0 0
    %1981 = vmatpush2.bf16.msra.mxu0 0
    %1982 = vmatprep.subr.bf16.mxu0 0
    %1983 = vmatpush2.bf16.msra.mxu0 0
    %1984 = vmatprep.subr.bf16.mxu0 0
    %1985 = vmatpush2.bf16.msra.mxu0 0
    %1986 = vmatprep.subr.bf16.mxu0 0
    %1987 = vmatpush2.bf16.msra.mxu0 0
    %1988 = vmatprep.subr.bf16.mxu0 0
    %1989 = vmatpush2.bf16.msra.mxu0 0
    %1990 = vmatprep.mubr.bf16.mxu0 0
    %1991 = vmatmul.mubr.bf16.gmra.mxu0 %v1947
    %v1992 = vpop.f32.mrf.mxu0
    %v1993 = vadd.f32 0.0, %v1992
    %v1994 = vpop.f32.mrf.mxu0
    %v1995 = vpop.f32.mrf.mxu0
    %v1996 = vadd.f32 0.0, %v1995
    %v1997 = vpop.f32.mrf.mxu0
    %1998 = vmatprep.mubr.bf16.mxu0 0
    %1999 = vmatmul.mubr.bf16.gmra.mxu0 %v1950
    %v2000 = vpop.f32.mrf.mxu0
    %v2001 = vadd.f32 0.0, %v2000
    %v2002 = vpop.f32.mrf.mxu0
    %v2003 = vpop.f32.mrf.mxu0
    %v2004 = vadd.f32 0.0, %v2003
    %v2005 = vpop.f32.mrf.mxu0
    %2006 = vmatprep.mubr.bf16.mxu0 0
    %2007 = vmatmul.mubr.bf16.gmra.mxu0 %v1953
    %v2008 = vpop.f32.mrf.mxu0
    %v2009 = vadd.f32 0.0, %v2008
    %v2010 = vpop.f32.mrf.mxu0
    %v2011 = vpop.f32.mrf.mxu0
    %v2012 = vadd.f32 0.0, %v2011
    %v2013 = vpop.f32.mrf.mxu0
    %2014 = vmatprep.mubr.bf16.mxu0 0
    %2015 = vmatmul.mubr.bf16.gmra.mxu0 %v1956
    %v2016 = vpop.f32.mrf.mxu0
    %v2017 = vadd.f32 0.0, %v2016
    %v2018 = vpop.f32.mrf.mxu0
    %v2019 = vpop.f32.mrf.mxu0
    %v2020 = vadd.f32 0.0, %v2019
    %v2021 = vpop.f32.mrf.mxu0
    %2022 = vdwg.mxu0
    %v2023 = vadd.f32 %v1686, %v1993
    %v2024 = vadd.f32 %v1687, %v1996
    %v2025 = vadd.f32 %v1688, %v2001
    %v2026 = vadd.f32 %v1689, %v2004
    %v2027 = vadd.f32 %v1690, %v2009
    %v2028 = vadd.f32 %v1691, %v2012
    %v2029 = vadd.f32 %v1692, %v2017
    %v2030 = vadd.f32 %v1693, %v2020
    %v2031 = vld [vmem:[%s4] sm:$0x1]
    %v2033 = vlaneseq
    %v2034 = vshrl.u32 %v2033, 7
    %v2035 = vsub.s32 0, %v2034
    %v2036 = vrot.slane %v2031, %v2035
    %v2038 = vadd.f32 %v2023, %v2036
    %v2039 = vadd.f32 %v2024, %v2036
    %v2040 = vadd.f32 %v2025, %v2036
    %v2041 = vadd.f32 %v2026, %v2036
    %v2042 = vadd.f32 %v2027, %v2036
    %v2043 = vadd.f32 %v2028, %v2036
    %v2044 = vadd.f32 %v2029, %v2036
    %v2045 = vadd.f32 %v2030, %v2036
    %2046 = vst.msk [vmem:[#allocation11] sm:$0xff] %vm212, %v2038
    %2047 = vst.msk [vmem:[#allocation11 + $0x8] sm:$0xff] %vm212, %v2039
    %2048 = vst.msk [vmem:[#allocation11 + $0x10] sm:$0xff] %vm212, %v2040
    %2049 = vst.msk [vmem:[#allocation11 + $0x18] sm:$0xff] %vm212, %v2041
    %2050 = vst.msk [vmem:[#allocation11 + $0x20] sm:$0xff] %vm212, %v2042
    %2051 = vst.msk [vmem:[#allocation11 + $0x28] sm:$0xff] %vm212, %v2043
    %2052 = vst.msk [vmem:[#allocation11 + $0x30] sm:$0xff] %vm212, %v2044
    %2053 = vst.msk [vmem:[#allocation11 + $0x38] sm:$0xff] %vm212, %v2045
    %v2054 = vld [vmem:[#allocation2 + $0x60] sm:$0xf]
    %v2055 = vld [vmem:[#allocation2 + $0x6c] sm:$0xf]
    %v2056 = vld [vmem:[#allocation2 + $0x78] sm:$0xf]
    %v2057 = vld [vmem:[#allocation2 + $0x84] sm:$0xf]
    %v2058 = vld [vmem:[#allocation2 + $0x90] sm:$0xf]
    %v2059 = vld [vmem:[#allocation2 + $0x9c] sm:$0xf]
    %v2060 = vld [vmem:[#allocation2 + $0xa8] sm:$0xf]
    %v2061 = vld [vmem:[#allocation2 + $0xb4] sm:$0xf]
    %v2062 = vld [vmem:[#allocation2 + $0x64] sm:$0xf]
    %v2063 = vld [vmem:[#allocation2 + $0x70] sm:$0xf]
    %v2064 = vld [vmem:[#allocation2 + $0x7c] sm:$0xf]
    %v2065 = vld [vmem:[#allocation2 + $0x88] sm:$0xf]
    %v2066 = vld [vmem:[#allocation2 + $0x94] sm:$0xf]
    %v2067 = vld [vmem:[#allocation2 + $0xa0] sm:$0xf]
    %v2068 = vld [vmem:[#allocation2 + $0xac] sm:$0xf]
    %v2069 = vld [vmem:[#allocation2 + $0xb8] sm:$0xf]
    %v2078 = vunpack.c.l.b16 %v2054
    %v2079 = vunpack.c.l.b16 %v2055
    %v2080 = vunpack.c.l.b16 %v2056
    %v2081 = vunpack.c.l.b16 %v2057
    %v2082 = vunpack.c.l.b16 %v2058
    %v2083 = vunpack.c.l.b16 %v2059
    %v2084 = vunpack.c.l.b16 %v2060
    %v2085 = vunpack.c.l.b16 %v2061
    %v2086 = vpack.c.b16 %v2079, %v2078
    %v2087 = vpack.c.b16 %v2081, %v2080
    %v2088 = vpack.c.b16 %v2083, %v2082
    %v2089 = vpack.c.b16 %v2085, %v2084
    %2090 = vrot.lane.b32.xlu0 %v2086, 64
    %v2091 = vpop.permute.xlu0 %2090
    %2092 = vrot.lane.b32.xlu0 %v2087, 64
    %v2093 = vpop.permute.xlu0 %2092
    %2094 = vrot.lane.b32.xlu0 %v2088, 64
    %v2095 = vpop.permute.xlu0 %2094
    %2096 = vrot.lane.b32.xlu0 %v2089, 64
    %v2097 = vpop.permute.xlu0 %2096
    %v2099 = vsel %vm683, %v2086, 0
    %v2102 = vsel %vm683, %v2087, 0
    %v2105 = vsel %vm683, %v2088, 0
    %v2108 = vsel %vm683, %v2089, 0
    %v2111 = vsel %vm683, %v2091, 0
    %v2114 = vsel %vm683, %v2093, 0
    %v2117 = vsel %vm683, %v2095, 0
    %v2120 = vsel %vm683, %v2097, 0
    %2122 = vmatprep.subr.bf16.mxu0 0
    %2123 = vmatpush1.bf16.xpose.msra.mxu0 0
    %2124 = vmatprep.subr.bf16.mxu0 0
    %2125 = vmatpush1.bf16.xpose.msra.mxu0 0
    %2126 = vmatprep.subr.bf16.mxu0 0
    %2127 = vmatpush1.bf16.xpose.msra.mxu0 0
    %2128 = vmatprep.subr.bf16.mxu0 0
    %2129 = vmatpush1.bf16.xpose.msra.mxu0 0
    %2130 = vmatprep.subr.bf16.mxu0 0
    %2131 = vmatpush1.bf16.xpose.msra.mxu0 %v2120
    %2132 = vmatprep.subr.bf16.mxu0 0
    %2133 = vmatpush1.bf16.xpose.msra.mxu0 %v2117
    %2134 = vmatprep.subr.bf16.mxu0 0
    %2135 = vmatpush1.bf16.xpose.msra.mxu0 %v2114
    %2136 = vmatprep.subr.bf16.mxu0 0
    %2137 = vmatpush1.bf16.xpose.msra.mxu0 %v2111
    %2138 = vmatprep.subr.bf16.mxu0 0
    %2139 = vmatpush2.bf16.xpose.msra.mxu0 0
    %2140 = vmatprep.subr.bf16.mxu0 0
    %2141 = vmatpush2.bf16.xpose.msra.mxu0 0
    %2142 = vmatprep.subr.bf16.mxu0 0
    %2143 = vmatpush2.bf16.xpose.msra.mxu0 0
    %2144 = vmatprep.subr.bf16.mxu0 0
    %2145 = vmatpush2.bf16.xpose.msra.mxu0 0
    %2146 = vmatprep.subr.bf16.mxu0 0
    %2147 = vmatpush2.bf16.xpose.msra.mxu0 0
    %2148 = vmatprep.subr.bf16.mxu0 0
    %2149 = vmatpush2.bf16.xpose.msra.mxu0 0
    %2150 = vmatprep.subr.bf16.mxu0 0
    %2151 = vmatpush2.bf16.xpose.msra.mxu0 0
    %2152 = vmatprep.subr.bf16.mxu0 0
    %2153 = vmatpush2.bf16.xpose.msra.mxu0 0
    %2154 = vmatprep.mubr.bf16.mxu0 0
    %2155 = vmatmul.mubr.bf16.gmra.mxu0 %v2099
    %v2156 = vpop.f32.mrf.mxu0
    %v2157 = vadd.f32 0.0, %v2156
    %v2158 = vpop.f32.mrf.mxu0
    %v2159 = vpop.f32.mrf.mxu0
    %v2160 = vadd.f32 0.0, %v2159
    %v2161 = vpop.f32.mrf.mxu0
    %2162 = vmatprep.mubr.bf16.mxu0 0
    %2163 = vmatmul.mubr.bf16.gmra.mxu0 %v2102
    %v2164 = vpop.f32.mrf.mxu0
    %v2165 = vadd.f32 0.0, %v2164
    %v2166 = vpop.f32.mrf.mxu0
    %v2167 = vpop.f32.mrf.mxu0
    %v2168 = vadd.f32 0.0, %v2167
    %v2169 = vpop.f32.mrf.mxu0
    %2170 = vmatprep.mubr.bf16.mxu0 0
    %2171 = vmatmul.mubr.bf16.gmra.mxu0 %v2105
    %v2172 = vpop.f32.mrf.mxu0
    %v2173 = vadd.f32 0.0, %v2172
    %v2174 = vpop.f32.mrf.mxu0
    %v2175 = vpop.f32.mrf.mxu0
    %v2176 = vadd.f32 0.0, %v2175
    %v2177 = vpop.f32.mrf.mxu0
    %2178 = vmatprep.mubr.bf16.mxu0 0
    %2179 = vmatmul.mubr.bf16.gmra.mxu0 %v2108
    %v2180 = vpop.f32.mrf.mxu0
    %v2181 = vadd.f32 0.0, %v2180
    %v2182 = vpop.f32.mrf.mxu0
    %v2183 = vpop.f32.mrf.mxu0
    %v2184 = vadd.f32 0.0, %v2183
    %v2185 = vpop.f32.mrf.mxu0
    %2186 = vdwg.mxu0
    %v2187 = vmul.f32 %v2157, 0.25
    %v2188 = vmul.f32 %v2160, 0.25
    %v2189 = vmul.f32 %v2165, 0.25
    %v2190 = vmul.f32 %v2168, 0.25
    %v2191 = vmul.f32 %v2173, 0.25
    %v2192 = vmul.f32 %v2176, 0.25
    %v2193 = vmul.f32 %v2181, 0.25
    %v2194 = vmul.f32 %v2184, 0.25
    %v2195 = vsel %vm212, %v2187, -inf
    %2196 = vmax.xlane.f32.xlu0 %v2195
    %v2197 = vpop.xlane.xlu0 %2196
    %v2198 = vsel %vm212, %v2188, -inf
    %2199 = vmax.xlane.f32.xlu0 %v2198
    %v2200 = vpop.xlane.xlu0 %2199
    %v2201 = vsel %vm212, %v2189, -inf
    %2202 = vmax.xlane.f32.xlu0 %v2201
    %v2203 = vpop.xlane.xlu0 %2202
    %v2204 = vsel %vm212, %v2190, -inf
    %2205 = vmax.xlane.f32.xlu0 %v2204
    %v2206 = vpop.xlane.xlu0 %2205
    %v2207 = vsel %vm212, %v2191, -inf
    %2208 = vmax.xlane.f32.xlu0 %v2207
    %v2209 = vpop.xlane.xlu0 %2208
    %v2210 = vsel %vm212, %v2192, -inf
    %2211 = vmax.xlane.f32.xlu0 %v2210
    %v2212 = vpop.xlane.xlu0 %2211
    %v2213 = vsel %vm212, %v2193, -inf
    %2214 = vmax.xlane.f32.xlu0 %v2213
    %v2215 = vpop.xlane.xlu0 %2214
    %v2216 = vsel %vm212, %v2194, -inf
    %2217 = vmax.xlane.f32.xlu0 %v2216
    %v2218 = vpop.xlane.xlu0 %2217
    %v2219 = vsub.f32 %v2187, %v2197
    %v2220 = vsub.f32 %v2188, %v2200
    %v2221 = vsub.f32 %v2189, %v2203
    %v2222 = vsub.f32 %v2190, %v2206
    %v2223 = vsub.f32 %v2191, %v2209
    %v2224 = vsub.f32 %v2192, %v2212
    %v2225 = vsub.f32 %v2193, %v2215
    %v2226 = vsub.f32 %v2194, %v2218
    %v2227 = vmul.f32 %v2219, 1.442695
    %v2228 = vpow.pop %v2227
    %v2229 = vmul.f32 %v2220, 1.442695
    %v2230 = vpow.pop %v2229
    %v2231 = vmul.f32 %v2221, 1.442695
    %v2232 = vpow.pop %v2231
    %v2233 = vmul.f32 %v2222, 1.442695
    %v2234 = vpow.pop %v2233
    %v2235 = vmul.f32 %v2223, 1.442695
    %v2236 = vpow.pop %v2235
    %v2237 = vmul.f32 %v2224, 1.442695
    %v2238 = vpow.pop %v2237
    %v2239 = vmul.f32 %v2225, 1.442695
    %v2240 = vpow.pop %v2239
    %v2241 = vmul.f32 %v2226, 1.442695
    %v2242 = vpow.pop %v2241
    %v2243 = vsel %vm212, %v2228, 0.0
    %2244 = vadd.xlane.f32.xlu0 %v2243
    %v2245 = vpop.xlane.xlu0 %2244
    %v2246 = vsel %vm212, %v2230, 0.0
    %2247 = vadd.xlane.f32.xlu0 %v2246
    %v2248 = vpop.xlane.xlu0 %2247
    %v2249 = vsel %vm212, %v2232, 0.0
    %2250 = vadd.xlane.f32.xlu0 %v2249
    %v2251 = vpop.xlane.xlu0 %2250
    %v2252 = vsel %vm212, %v2234, 0.0
    %2253 = vadd.xlane.f32.xlu0 %v2252
    %v2254 = vpop.xlane.xlu0 %2253
    %v2255 = vsel %vm212, %v2236, 0.0
    %2256 = vadd.xlane.f32.xlu0 %v2255
    %v2257 = vpop.xlane.xlu0 %2256
    %v2258 = vsel %vm212, %v2238, 0.0
    %2259 = vadd.xlane.f32.xlu0 %v2258
    %v2260 = vpop.xlane.xlu0 %2259
    %v2261 = vsel %vm212, %v2240, 0.0
    %2262 = vadd.xlane.f32.xlu0 %v2261
    %v2263 = vpop.xlane.xlu0 %2262
    %v2264 = vsel %vm212, %v2242, 0.0
    %2265 = vadd.xlane.f32.xlu0 %v2264
    %v2266 = vpop.xlane.xlu0 %2265
    %v2267 = vrcp.pop %v2245
    %v2268 = vrcp.pop %v2248
    %v2269 = vrcp.pop %v2251
    %v2270 = vrcp.pop %v2254
    %v2271 = vrcp.pop %v2257
    %v2272 = vrcp.pop %v2260
    %v2273 = vrcp.pop %v2263
    %v2274 = vrcp.pop %v2266
    %s2275 = sld [smem:[#allocation9]]
    %v2276 = vstv %s2275
    %v2277 = vmul.f32 %v2276, %v2267
    %v2278 = vmul.f32 %v2276, %v2268
    %v2279 = vmul.f32 %v2276, %v2269
    %v2280 = vmul.f32 %v2276, %v2270
    %v2281 = vmul.f32 %v2276, %v2271
    %v2282 = vmul.f32 %v2276, %v2272
    %v2283 = vmul.f32 %v2276, %v2273
    %v2284 = vmul.f32 %v2276, %v2274
    %v2285 = vmul.f32 %v2277, %v2228
    %v2286 = vmul.f32 %v2278, %v2230
    %v2287 = vmul.f32 %v2279, %v2232
    %v2288 = vmul.f32 %v2280, %v2234
    %v2289 = vmul.f32 %v2281, %v2236
    %v2290 = vmul.f32 %v2282, %v2238
    %v2291 = vmul.f32 %v2283, %v2240
    %v2292 = vmul.f32 %v2284, %v2242
    %v2293 = vld [vmem:[#allocation10] sm:$0xf]
    %v2294 = vld [vmem:[#allocation10 + $0x4] sm:$0xf]
    %v2295 = vld [vmem:[#allocation10 + $0x8] sm:$0xf]
    %v2296 = vld [vmem:[#allocation10 + $0xc] sm:$0xf]
    %v2297 = vld [vmem:[#allocation10 + $0x10] sm:$0xf]
    %v2298 = vld [vmem:[#allocation10 + $0x14] sm:$0xf]
    %v2299 = vld [vmem:[#allocation10 + $0x18] sm:$0xf]
    %v2300 = vld [vmem:[#allocation10 + $0x1c] sm:$0xf]
    %v2301 = vunpack.c.l.bf16 %v2293
    %v2302 = vunpack.c.l.bf16 %v2294
    %v2303 = vunpack.c.l.bf16 %v2295
    %v2304 = vunpack.c.l.bf16 %v2296
    %v2305 = vunpack.c.l.bf16 %v2297
    %v2306 = vunpack.c.l.bf16 %v2298
    %v2307 = vunpack.c.l.bf16 %v2299
    %v2308 = vunpack.c.l.bf16 %v2300
    %v2309 = vadd.f32 %v2285, %v2301
    %v2310 = vadd.f32 %v2286, %v2302
    %v2311 = vadd.f32 %v2287, %v2303
    %v2312 = vadd.f32 %v2288, %v2304
    %v2313 = vadd.f32 %v2289, %v2305
    %v2314 = vadd.f32 %v2290, %v2306
    %v2315 = vadd.f32 %v2291, %v2307
    %v2316 = vadd.f32 %v2292, %v2308
    %v2317 = vpack.c.bf16 %v2310, %v2309
    %v2318 = vpack.c.bf16 %v2312, %v2311
    %v2319 = vpack.c.bf16 %v2314, %v2313
    %v2320 = vpack.c.bf16 %v2316, %v2315
    %2321 = vrot.lane.b32.xlu0 %v2086, 112
    %v2322 = vpop.permute.xlu0 %2321
    %2323 = vrot.lane.b32.xlu0 %v2087, 112
    %v2324 = vpop.permute.xlu0 %2323
    %2325 = vrot.lane.b32.xlu0 %v2088, 112
    %v2326 = vpop.permute.xlu0 %2325
    %2327 = vrot.lane.b32.xlu0 %v2089, 112
    %v2328 = vpop.permute.xlu0 %2327
    %2329 = vrot.lane.b32.xlu0 %v2086, 48
    %v2330 = vpop.permute.xlu0 %2329
    %2331 = vrot.lane.b32.xlu0 %v2087, 48
    %v2332 = vpop.permute.xlu0 %2331
    %2333 = vrot.lane.b32.xlu0 %v2088, 48
    %v2334 = vpop.permute.xlu0 %2333
    %2335 = vrot.lane.b32.xlu0 %v2089, 48
    %v2336 = vpop.permute.xlu0 %2335
    %v2338 = vsel %vm683, %v2322, 0
    %v2341 = vsel %vm683, %v2324, 0
    %v2344 = vsel %vm683, %v2326, 0
    %v2347 = vsel %vm683, %v2328, 0
    %v2350 = vsel %vm683, %v2330, 0
    %v2353 = vsel %vm683, %v2332, 0
    %v2356 = vsel %vm683, %v2334, 0
    %v2359 = vsel %vm683, %v2336, 0
    %2361 = vmatprep.subr.bf16.mxu0 0
    %2362 = vmatpush1.bf16.xpose.msra.mxu0 0
    %2363 = vmatprep.subr.bf16.mxu0 0
    %2364 = vmatpush1.bf16.xpose.msra.mxu0 0
    %2365 = vmatprep.subr.bf16.mxu0 0
    %2366 = vmatpush1.bf16.xpose.msra.mxu0 0
    %2367 = vmatprep.subr.bf16.mxu0 0
    %2368 = vmatpush1.bf16.xpose.msra.mxu0 0
    %2369 = vmatprep.subr.bf16.mxu0 0
    %2370 = vmatpush1.bf16.xpose.msra.mxu0 %v2359
    %2371 = vmatprep.subr.bf16.mxu0 0
    %2372 = vmatpush1.bf16.xpose.msra.mxu0 %v2356
    %2373 = vmatprep.subr.bf16.mxu0 0
    %2374 = vmatpush1.bf16.xpose.msra.mxu0 %v2353
    %2375 = vmatprep.subr.bf16.mxu0 0
    %2376 = vmatpush1.bf16.xpose.msra.mxu0 %v2350
    %2377 = vmatprep.subr.bf16.mxu0 0
    %2378 = vmatpush2.bf16.xpose.msra.mxu0 0
    %2379 = vmatprep.subr.bf16.mxu0 0
    %2380 = vmatpush2.bf16.xpose.msra.mxu0 0
    %2381 = vmatprep.subr.bf16.mxu0 0
    %2382 = vmatpush2.bf16.xpose.msra.mxu0 0
    %2383 = vmatprep.subr.bf16.mxu0 0
    %2384 = vmatpush2.bf16.xpose.msra.mxu0 0
    %2385 = vmatprep.subr.bf16.mxu0 0
    %2386 = vmatpush2.bf16.xpose.msra.mxu0 0
    %2387 = vmatprep.subr.bf16.mxu0 0
    %2388 = vmatpush2.bf16.xpose.msra.mxu0 0
    %2389 = vmatprep.subr.bf16.mxu0 0
    %2390 = vmatpush2.bf16.xpose.msra.mxu0 0
    %2391 = vmatprep.subr.bf16.mxu0 0
    %2392 = vmatpush2.bf16.xpose.msra.mxu0 0
    %2393 = vmatprep.mubr.bf16.mxu0 0
    %2394 = vmatmul.mubr.bf16.gmra.mxu0 %v2338
    %v2395 = vpop.f32.mrf.mxu0
    %v2396 = vadd.f32 0.0, %v2395
    %v2397 = vpop.f32.mrf.mxu0
    %v2398 = vpop.f32.mrf.mxu0
    %v2399 = vadd.f32 0.0, %v2398
    %v2400 = vpop.f32.mrf.mxu0
    %2401 = vmatprep.mubr.bf16.mxu0 0
    %2402 = vmatmul.mubr.bf16.gmra.mxu0 %v2341
    %v2403 = vpop.f32.mrf.mxu0
    %v2404 = vadd.f32 0.0, %v2403
    %v2405 = vpop.f32.mrf.mxu0
    %v2406 = vpop.f32.mrf.mxu0
    %v2407 = vadd.f32 0.0, %v2406
    %v2408 = vpop.f32.mrf.mxu0
    %2409 = vmatprep.mubr.bf16.mxu0 0
    %2410 = vmatmul.mubr.bf16.gmra.mxu0 %v2344
    %v2411 = vpop.f32.mrf.mxu0
    %v2412 = vadd.f32 0.0, %v2411
    %v2413 = vpop.f32.mrf.mxu0
    %v2414 = vpop.f32.mrf.mxu0
    %v2415 = vadd.f32 0.0, %v2414
    %v2416 = vpop.f32.mrf.mxu0
    %2417 = vmatprep.mubr.bf16.mxu0 0
    %2418 = vmatmul.mubr.bf16.gmra.mxu0 %v2347
    %v2419 = vpop.f32.mrf.mxu0
    %v2420 = vadd.f32 0.0, %v2419
    %v2421 = vpop.f32.mrf.mxu0
    %v2422 = vpop.f32.mrf.mxu0
    %v2423 = vadd.f32 0.0, %v2422
    %v2424 = vpop.f32.mrf.mxu0
    %2425 = vdwg.mxu0
    %v2426 = vmul.f32 %v2396, 0.25
    %v2427 = vmul.f32 %v2399, 0.25
    %v2428 = vmul.f32 %v2404, 0.25
    %v2429 = vmul.f32 %v2407, 0.25
    %v2430 = vmul.f32 %v2412, 0.25
    %v2431 = vmul.f32 %v2415, 0.25
    %v2432 = vmul.f32 %v2420, 0.25
    %v2433 = vmul.f32 %v2423, 0.25
    %v2434 = vsel %vm212, %v2426, -inf
    %2435 = vmax.xlane.f32.xlu0 %v2434
    %v2436 = vpop.xlane.xlu0 %2435
    %v2437 = vsel %vm212, %v2427, -inf
    %2438 = vmax.xlane.f32.xlu0 %v2437
    %v2439 = vpop.xlane.xlu0 %2438
    %v2440 = vsel %vm212, %v2428, -inf
    %2441 = vmax.xlane.f32.xlu0 %v2440
    %v2442 = vpop.xlane.xlu0 %2441
    %v2443 = vsel %vm212, %v2429, -inf
    %2444 = vmax.xlane.f32.xlu0 %v2443
    %v2445 = vpop.xlane.xlu0 %2444
    %v2446 = vsel %vm212, %v2430, -inf
    %2447 = vmax.xlane.f32.xlu0 %v2446
    %v2448 = vpop.xlane.xlu0 %2447
    %v2449 = vsel %vm212, %v2431, -inf
    %2450 = vmax.xlane.f32.xlu0 %v2449
    %v2451 = vpop.xlane.xlu0 %2450
    %v2452 = vsel %vm212, %v2432, -inf
    %2453 = vmax.xlane.f32.xlu0 %v2452
    %v2454 = vpop.xlane.xlu0 %2453
    %v2455 = vsel %vm212, %v2433, -inf
    %2456 = vmax.xlane.f32.xlu0 %v2455
    %v2457 = vpop.xlane.xlu0 %2456
    %v2458 = vsub.f32 %v2426, %v2436
    %v2459 = vsub.f32 %v2427, %v2439
    %v2460 = vsub.f32 %v2428, %v2442
    %v2461 = vsub.f32 %v2429, %v2445
    %v2462 = vsub.f32 %v2430, %v2448
    %v2463 = vsub.f32 %v2431, %v2451
    %v2464 = vsub.f32 %v2432, %v2454
    %v2465 = vsub.f32 %v2433, %v2457
    %v2466 = vmul.f32 %v2458, 1.442695
    %v2467 = vpow.pop %v2466
    %v2468 = vmul.f32 %v2459, 1.442695
    %v2469 = vpow.pop %v2468
    %v2470 = vmul.f32 %v2460, 1.442695
    %v2471 = vpow.pop %v2470
    %v2472 = vmul.f32 %v2461, 1.442695
    %v2473 = vpow.pop %v2472
    %v2474 = vmul.f32 %v2462, 1.442695
    %v2475 = vpow.pop %v2474
    %v2476 = vmul.f32 %v2463, 1.442695
    %v2477 = vpow.pop %v2476
    %v2478 = vmul.f32 %v2464, 1.442695
    %v2479 = vpow.pop %v2478
    %v2480 = vmul.f32 %v2465, 1.442695
    %v2481 = vpow.pop %v2480
    %v2482 = vsel %vm212, %v2467, 0.0
    %2483 = vadd.xlane.f32.xlu0 %v2482
    %v2484 = vpop.xlane.xlu0 %2483
    %v2485 = vsel %vm212, %v2469, 0.0
    %2486 = vadd.xlane.f32.xlu0 %v2485
    %v2487 = vpop.xlane.xlu0 %2486
    %v2488 = vsel %vm212, %v2471, 0.0
    %2489 = vadd.xlane.f32.xlu0 %v2488
    %v2490 = vpop.xlane.xlu0 %2489
    %v2491 = vsel %vm212, %v2473, 0.0
    %2492 = vadd.xlane.f32.xlu0 %v2491
    %v2493 = vpop.xlane.xlu0 %2492
    %v2494 = vsel %vm212, %v2475, 0.0
    %2495 = vadd.xlane.f32.xlu0 %v2494
    %v2496 = vpop.xlane.xlu0 %2495
    %v2497 = vsel %vm212, %v2477, 0.0
    %2498 = vadd.xlane.f32.xlu0 %v2497
    %v2499 = vpop.xlane.xlu0 %2498
    %v2500 = vsel %vm212, %v2479, 0.0
    %2501 = vadd.xlane.f32.xlu0 %v2500
    %v2502 = vpop.xlane.xlu0 %2501
    %v2503 = vsel %vm212, %v2481, 0.0
    %2504 = vadd.xlane.f32.xlu0 %v2503
    %v2505 = vpop.xlane.xlu0 %2504
    %v2506 = vrcp.pop %v2484
    %v2507 = vrcp.pop %v2487
    %v2508 = vrcp.pop %v2490
    %v2509 = vrcp.pop %v2493
    %v2510 = vrcp.pop %v2496
    %v2511 = vrcp.pop %v2499
    %v2512 = vrcp.pop %v2502
    %v2513 = vrcp.pop %v2505
    %s2514 = sld [smem:[#allocation9 + $0x1]]
    %v2515 = vstv %s2514
    %v2516 = vmul.f32 %v2515, %v2506
    %v2517 = vmul.f32 %v2515, %v2507
    %v2518 = vmul.f32 %v2515, %v2508
    %v2519 = vmul.f32 %v2515, %v2509
    %v2520 = vmul.f32 %v2515, %v2510
    %v2521 = vmul.f32 %v2515, %v2511
    %v2522 = vmul.f32 %v2515, %v2512
    %v2523 = vmul.f32 %v2515, %v2513
    %v2524 = vmul.f32 %v2516, %v2467
    %v2525 = vmul.f32 %v2517, %v2469
    %v2526 = vmul.f32 %v2518, %v2471
    %v2527 = vmul.f32 %v2519, %v2473
    %v2528 = vmul.f32 %v2520, %v2475
    %v2529 = vmul.f32 %v2521, %v2477
    %v2530 = vmul.f32 %v2522, %v2479
    %v2531 = vmul.f32 %v2523, %v2481
    %v2532 = vld [vmem:[%s1118] sm:$0xf]
    %v2533 = vld [vmem:[%s1118 + $0x4] sm:$0xf]
    %v2534 = vld [vmem:[%s1118 + $0x8] sm:$0xf]
    %v2535 = vld [vmem:[%s1118 + $0xc] sm:$0xf]
    %v2536 = vld [vmem:[%s1118 + $0x10] sm:$0xf]
    %v2537 = vld [vmem:[%s1118 + $0x14] sm:$0xf]
    %v2538 = vld [vmem:[%s1118 + $0x18] sm:$0xf]
    %v2539 = vld [vmem:[%s1118 + $0x1c] sm:$0xf]
    %v2540 = vunpack.c.l.bf16 %v2532
    %v2541 = vunpack.c.l.bf16 %v2533
    %v2542 = vunpack.c.l.bf16 %v2534
    %v2543 = vunpack.c.l.bf16 %v2535
    %v2544 = vunpack.c.l.bf16 %v2536
    %v2545 = vunpack.c.l.bf16 %v2537
    %v2546 = vunpack.c.l.bf16 %v2538
    %v2547 = vunpack.c.l.bf16 %v2539
    %v2548 = vadd.f32 %v2524, %v2540
    %v2549 = vadd.f32 %v2525, %v2541
    %v2550 = vadd.f32 %v2526, %v2542
    %v2551 = vadd.f32 %v2527, %v2543
    %v2552 = vadd.f32 %v2528, %v2544
    %v2553 = vadd.f32 %v2529, %v2545
    %v2554 = vadd.f32 %v2530, %v2546
    %v2555 = vadd.f32 %v2531, %v2547
    %v2556 = vpack.c.bf16 %v2549, %v2548
    %v2557 = vpack.c.bf16 %v2551, %v2550
    %v2558 = vpack.c.bf16 %v2553, %v2552
    %v2559 = vpack.c.bf16 %v2555, %v2554
    %v2568 = vunpack.c.l.b16 %v2062
    %v2569 = vunpack.c.l.b16 %v2063
    %v2570 = vunpack.c.l.b16 %v2064
    %v2571 = vunpack.c.l.b16 %v2065
    %v2572 = vunpack.c.l.b16 %v2066
    %v2573 = vunpack.c.l.b16 %v2067
    %v2574 = vunpack.c.l.b16 %v2068
    %v2575 = vunpack.c.l.b16 %v2069
    %v2576 = vpack.c.b16 %v2569, %v2568
    %v2577 = vpack.c.b16 %v2571, %v2570
    %v2578 = vpack.c.b16 %v2573, %v2572
    %v2579 = vpack.c.b16 %v2575, %v2574
    %2580 = vrot.lane.b32.xlu0 %v2576, 64
    %v2581 = vpop.permute.xlu0 %2580
    %2582 = vrot.lane.b32.xlu0 %v2577, 64
    %v2583 = vpop.permute.xlu0 %2582
    %2584 = vrot.lane.b32.xlu0 %v2578, 64
    %v2585 = vpop.permute.xlu0 %2584
    %2586 = vrot.lane.b32.xlu0 %v2579, 64
    %v2587 = vpop.permute.xlu0 %2586
    %v2593 = vsel %vm212, %v2556, 0
    %v2596 = vsel %vm212, %v2557, 0
    %v2599 = vsel %vm212, %v2558, 0
    %v2602 = vsel %vm212, %v2559, 0
    %2604 = vmatprep.subr.bf16.mxu0 0
    %2605 = vmatpush1.bf16.msra.mxu0 0
    %2606 = vmatprep.subr.bf16.mxu0 0
    %2607 = vmatpush1.bf16.msra.mxu0 0
    %2608 = vmatprep.subr.bf16.mxu0 0
    %2609 = vmatpush1.bf16.msra.mxu0 0
    %2610 = vmatprep.subr.bf16.mxu0 0
    %2611 = vmatpush1.bf16.msra.mxu0 0
    %2612 = vmatprep.subr.bf16.mxu0 0
    %2613 = vmatpush1.bf16.msra.mxu0 %v2587
    %2614 = vmatprep.subr.bf16.mxu0 0
    %2615 = vmatpush1.bf16.msra.mxu0 %v2585
    %2616 = vmatprep.subr.bf16.mxu0 0
    %2617 = vmatpush1.bf16.msra.mxu0 %v2583
    %2618 = vmatprep.subr.bf16.mxu0 0
    %2619 = vmatpush1.bf16.msra.mxu0 %v2581
    %2620 = vmatprep.subr.bf16.mxu0 0
    %2621 = vmatpush2.bf16.msra.mxu0 0
    %2622 = vmatprep.subr.bf16.mxu0 0
    %2623 = vmatpush2.bf16.msra.mxu0 0
    %2624 = vmatprep.subr.bf16.mxu0 0
    %2625 = vmatpush2.bf16.msra.mxu0 0
    %2626 = vmatprep.subr.bf16.mxu0 0
    %2627 = vmatpush2.bf16.msra.mxu0 0
    %2628 = vmatprep.subr.bf16.mxu0 0
    %2629 = vmatpush2.bf16.msra.mxu0 0
    %2630 = vmatprep.subr.bf16.mxu0 0
    %2631 = vmatpush2.bf16.msra.mxu0 0
    %2632 = vmatprep.subr.bf16.mxu0 0
    %2633 = vmatpush2.bf16.msra.mxu0 0
    %2634 = vmatprep.subr.bf16.mxu0 0
    %2635 = vmatpush2.bf16.msra.mxu0 0
    %2636 = vmatprep.mubr.bf16.mxu0 0
    %2637 = vmatmul.mubr.bf16.gmra.mxu0 %v2593
    %v2638 = vpop.f32.mrf.mxu0
    %v2639 = vadd.f32 0.0, %v2638
    %v2640 = vpop.f32.mrf.mxu0
    %v2641 = vpop.f32.mrf.mxu0
    %v2642 = vadd.f32 0.0, %v2641
    %v2643 = vpop.f32.mrf.mxu0
    %2644 = vmatprep.mubr.bf16.mxu0 0
    %2645 = vmatmul.mubr.bf16.gmra.mxu0 %v2596
    %v2646 = vpop.f32.mrf.mxu0
    %v2647 = vadd.f32 0.0, %v2646
    %v2648 = vpop.f32.mrf.mxu0
    %v2649 = vpop.f32.mrf.mxu0
    %v2650 = vadd.f32 0.0, %v2649
    %v2651 = vpop.f32.mrf.mxu0
    %2652 = vmatprep.mubr.bf16.mxu0 0
    %2653 = vmatmul.mubr.bf16.gmra.mxu0 %v2599
    %v2654 = vpop.f32.mrf.mxu0
    %v2655 = vadd.f32 0.0, %v2654
    %v2656 = vpop.f32.mrf.mxu0
    %v2657 = vpop.f32.mrf.mxu0
    %v2658 = vadd.f32 0.0, %v2657
    %v2659 = vpop.f32.mrf.mxu0
    %2660 = vmatprep.mubr.bf16.mxu0 0
    %2661 = vmatmul.mubr.bf16.gmra.mxu0 %v2602
    %v2662 = vpop.f32.mrf.mxu0
    %v2663 = vadd.f32 0.0, %v2662
    %v2664 = vpop.f32.mrf.mxu0
    %v2665 = vpop.f32.mrf.mxu0
    %v2666 = vadd.f32 0.0, %v2665
    %v2667 = vpop.f32.mrf.mxu0
    %2668 = vdwg.mxu0
    %v2674 = vsel %vm212, %v2317, 0
    %v2677 = vsel %vm212, %v2318, 0
    %v2680 = vsel %vm212, %v2319, 0
    %v2683 = vsel %vm212, %v2320, 0
    %2685 = vmatprep.subr.bf16.mxu0 0
    %2686 = vmatpush1.bf16.msra.mxu0 0
    %2687 = vmatprep.subr.bf16.mxu0 0
    %2688 = vmatpush1.bf16.msra.mxu0 0
    %2689 = vmatprep.subr.bf16.mxu0 0
    %2690 = vmatpush1.bf16.msra.mxu0 0
    %2691 = vmatprep.subr.bf16.mxu0 0
    %2692 = vmatpush1.bf16.msra.mxu0 0
    %2693 = vmatprep.subr.bf16.mxu0 0
    %2694 = vmatpush1.bf16.msra.mxu0 %v2579
    %2695 = vmatprep.subr.bf16.mxu0 0
    %2696 = vmatpush1.bf16.msra.mxu0 %v2578
    %2697 = vmatprep.subr.bf16.mxu0 0
    %2698 = vmatpush1.bf16.msra.mxu0 %v2577
    %2699 = vmatprep.subr.bf16.mxu0 0
    %2700 = vmatpush1.bf16.msra.mxu0 %v2576
    %2701 = vmatprep.subr.bf16.mxu0 0
    %2702 = vmatpush2.bf16.msra.mxu0 0
    %2703 = vmatprep.subr.bf16.mxu0 0
    %2704 = vmatpush2.bf16.msra.mxu0 0
    %2705 = vmatprep.subr.bf16.mxu0 0
    %2706 = vmatpush2.bf16.msra.mxu0 0
    %2707 = vmatprep.subr.bf16.mxu0 0
    %2708 = vmatpush2.bf16.msra.mxu0 0
    %2709 = vmatprep.subr.bf16.mxu0 0
    %2710 = vmatpush2.bf16.msra.mxu0 0
    %2711 = vmatprep.subr.bf16.mxu0 0
    %2712 = vmatpush2.bf16.msra.mxu0 0
    %2713 = vmatprep.subr.bf16.mxu0 0
    %2714 = vmatpush2.bf16.msra.mxu0 0
    %2715 = vmatprep.subr.bf16.mxu0 0
    %2716 = vmatpush2.bf16.msra.mxu0 0
    %2717 = vmatprep.mubr.bf16.mxu0 0
    %2718 = vmatmul.mubr.bf16.gmra.mxu0 %v2674
    %v2719 = vpop.f32.mrf.mxu0
    %v2720 = vadd.f32 %v2639, %v2719
    %v2721 = vpop.f32.mrf.mxu0
    %v2722 = vpop.f32.mrf.mxu0
    %v2723 = vadd.f32 %v2642, %v2722
    %v2724 = vpop.f32.mrf.mxu0
    %2725 = vmatprep.mubr.bf16.mxu0 0
    %2726 = vmatmul.mubr.bf16.gmra.mxu0 %v2677
    %v2727 = vpop.f32.mrf.mxu0
    %v2728 = vadd.f32 %v2647, %v2727
    %v2729 = vpop.f32.mrf.mxu0
    %v2730 = vpop.f32.mrf.mxu0
    %v2731 = vadd.f32 %v2650, %v2730
    %v2732 = vpop.f32.mrf.mxu0
    %2733 = vmatprep.mubr.bf16.mxu0 0
    %2734 = vmatmul.mubr.bf16.gmra.mxu0 %v2680
    %v2735 = vpop.f32.mrf.mxu0
    %v2736 = vadd.f32 %v2655, %v2735
    %v2737 = vpop.f32.mrf.mxu0
    %v2738 = vpop.f32.mrf.mxu0
    %v2739 = vadd.f32 %v2658, %v2738
    %v2740 = vpop.f32.mrf.mxu0
    %2741 = vmatprep.mubr.bf16.mxu0 0
    %2742 = vmatmul.mubr.bf16.gmra.mxu0 %v2683
    %v2743 = vpop.f32.mrf.mxu0
    %v2744 = vadd.f32 %v2663, %v2743
    %v2745 = vpop.f32.mrf.mxu0
    %v2746 = vpop.f32.mrf.mxu0
    %v2747 = vadd.f32 %v2666, %v2746
    %v2748 = vpop.f32.mrf.mxu0
    %2749 = vdwg.mxu0
    %v2750 = vld [vmem:[#allocation2 + $0x68] sm:$0xf]
    %v2751 = vld [vmem:[#allocation2 + $0x74] sm:$0xf]
    %v2752 = vld [vmem:[#allocation2 + $0x80] sm:$0xf]
    %v2753 = vld [vmem:[#allocation2 + $0x8c] sm:$0xf]
    %v2754 = vld [vmem:[#allocation2 + $0x98] sm:$0xf]
    %v2755 = vld [vmem:[#allocation2 + $0xa4] sm:$0xf]
    %v2756 = vld [vmem:[#allocation2 + $0xb0] sm:$0xf]
    %v2757 = vld [vmem:[#allocation2 + $0xbc] sm:$0xf]
    %2758 = vrot.lane.b32.xlu0 %v2086, 96
    %v2759 = vpop.permute.xlu0 %2758
    %2760 = vrot.lane.b32.xlu0 %v2087, 96
    %v2761 = vpop.permute.xlu0 %2760
    %2762 = vrot.lane.b32.xlu0 %v2088, 96
    %v2763 = vpop.permute.xlu0 %2762
    %2764 = vrot.lane.b32.xlu0 %v2089, 96
    %v2765 = vpop.permute.xlu0 %2764
    %2766 = vrot.lane.b32.xlu0 %v2086, 32
    %v2767 = vpop.permute.xlu0 %2766
    %2768 = vrot.lane.b32.xlu0 %v2087, 32
    %v2769 = vpop.permute.xlu0 %2768
    %2770 = vrot.lane.b32.xlu0 %v2088, 32
    %v2771 = vpop.permute.xlu0 %2770
    %2772 = vrot.lane.b32.xlu0 %v2089, 32
    %v2773 = vpop.permute.xlu0 %2772
    %v2775 = vsel %vm683, %v2759, 0
    %v2778 = vsel %vm683, %v2761, 0
    %v2781 = vsel %vm683, %v2763, 0
    %v2784 = vsel %vm683, %v2765, 0
    %v2787 = vsel %vm683, %v2767, 0
    %v2790 = vsel %vm683, %v2769, 0
    %v2793 = vsel %vm683, %v2771, 0
    %v2796 = vsel %vm683, %v2773, 0
    %2798 = vmatprep.subr.bf16.mxu0 0
    %2799 = vmatpush1.bf16.xpose.msra.mxu0 0
    %2800 = vmatprep.subr.bf16.mxu0 0
    %2801 = vmatpush1.bf16.xpose.msra.mxu0 0
    %2802 = vmatprep.subr.bf16.mxu0 0
    %2803 = vmatpush1.bf16.xpose.msra.mxu0 0
    %2804 = vmatprep.subr.bf16.mxu0 0
    %2805 = vmatpush1.bf16.xpose.msra.mxu0 0
    %2806 = vmatprep.subr.bf16.mxu0 0
    %2807 = vmatpush1.bf16.xpose.msra.mxu0 %v2796
    %2808 = vmatprep.subr.bf16.mxu0 0
    %2809 = vmatpush1.bf16.xpose.msra.mxu0 %v2793
    %2810 = vmatprep.subr.bf16.mxu0 0
    %2811 = vmatpush1.bf16.xpose.msra.mxu0 %v2790
    %2812 = vmatprep.subr.bf16.mxu0 0
    %2813 = vmatpush1.bf16.xpose.msra.mxu0 %v2787
    %2814 = vmatprep.subr.bf16.mxu0 0
    %2815 = vmatpush2.bf16.xpose.msra.mxu0 0
    %2816 = vmatprep.subr.bf16.mxu0 0
    %2817 = vmatpush2.bf16.xpose.msra.mxu0 0
    %2818 = vmatprep.subr.bf16.mxu0 0
    %2819 = vmatpush2.bf16.xpose.msra.mxu0 0
    %2820 = vmatprep.subr.bf16.mxu0 0
    %2821 = vmatpush2.bf16.xpose.msra.mxu0 0
    %2822 = vmatprep.subr.bf16.mxu0 0
    %2823 = vmatpush2.bf16.xpose.msra.mxu0 0
    %2824 = vmatprep.subr.bf16.mxu0 0
    %2825 = vmatpush2.bf16.xpose.msra.mxu0 0
    %2826 = vmatprep.subr.bf16.mxu0 0
    %2827 = vmatpush2.bf16.xpose.msra.mxu0 0
    %2828 = vmatprep.subr.bf16.mxu0 0
    %2829 = vmatpush2.bf16.xpose.msra.mxu0 0
    %2830 = vmatprep.mubr.bf16.mxu0 0
    %2831 = vmatmul.mubr.bf16.gmra.mxu0 %v2775
    %v2832 = vpop.f32.mrf.mxu0
    %v2833 = vadd.f32 0.0, %v2832
    %v2834 = vpop.f32.mrf.mxu0
    %v2835 = vpop.f32.mrf.mxu0
    %v2836 = vadd.f32 0.0, %v2835
    %v2837 = vpop.f32.mrf.mxu0
    %2838 = vmatprep.mubr.bf16.mxu0 0
    %2839 = vmatmul.mubr.bf16.gmra.mxu0 %v2778
    %v2840 = vpop.f32.mrf.mxu0
    %v2841 = vadd.f32 0.0, %v2840
    %v2842 = vpop.f32.mrf.mxu0
    %v2843 = vpop.f32.mrf.mxu0
    %v2844 = vadd.f32 0.0, %v2843
    %v2845 = vpop.f32.mrf.mxu0
    %2846 = vmatprep.mubr.bf16.mxu0 0
    %2847 = vmatmul.mubr.bf16.gmra.mxu0 %v2781
    %v2848 = vpop.f32.mrf.mxu0
    %v2849 = vadd.f32 0.0, %v2848
    %v2850 = vpop.f32.mrf.mxu0
    %v2851 = vpop.f32.mrf.mxu0
    %v2852 = vadd.f32 0.0, %v2851
    %v2853 = vpop.f32.mrf.mxu0
    %2854 = vmatprep.mubr.bf16.mxu0 0
    %2855 = vmatmul.mubr.bf16.gmra.mxu0 %v2784
    %v2856 = vpop.f32.mrf.mxu0
    %v2857 = vadd.f32 0.0, %v2856
    %v2858 = vpop.f32.mrf.mxu0
    %v2859 = vpop.f32.mrf.mxu0
    %v2860 = vadd.f32 0.0, %v2859
    %v2861 = vpop.f32.mrf.mxu0
    %2862 = vdwg.mxu0
    %v2863 = vmul.f32 %v2833, 0.25
    %v2864 = vmul.f32 %v2836, 0.25
    %v2865 = vmul.f32 %v2841, 0.25
    %v2866 = vmul.f32 %v2844, 0.25
    %v2867 = vmul.f32 %v2849, 0.25
    %v2868 = vmul.f32 %v2852, 0.25
    %v2869 = vmul.f32 %v2857, 0.25
    %v2870 = vmul.f32 %v2860, 0.25
    %v2871 = vsel %vm212, %v2863, -inf
    %2872 = vmax.xlane.f32.xlu0 %v2871
    %v2873 = vpop.xlane.xlu0 %2872
    %v2874 = vsel %vm212, %v2864, -inf
    %2875 = vmax.xlane.f32.xlu0 %v2874
    %v2876 = vpop.xlane.xlu0 %2875
    %v2877 = vsel %vm212, %v2865, -inf
    %2878 = vmax.xlane.f32.xlu0 %v2877
    %v2879 = vpop.xlane.xlu0 %2878
    %v2880 = vsel %vm212, %v2866, -inf
    %2881 = vmax.xlane.f32.xlu0 %v2880
    %v2882 = vpop.xlane.xlu0 %2881
    %v2883 = vsel %vm212, %v2867, -inf
    %2884 = vmax.xlane.f32.xlu0 %v2883
    %v2885 = vpop.xlane.xlu0 %2884
    %v2886 = vsel %vm212, %v2868, -inf
    %2887 = vmax.xlane.f32.xlu0 %v2886
    %v2888 = vpop.xlane.xlu0 %2887
    %v2889 = vsel %vm212, %v2869, -inf
    %2890 = vmax.xlane.f32.xlu0 %v2889
    %v2891 = vpop.xlane.xlu0 %2890
    %v2892 = vsel %vm212, %v2870, -inf
    %2893 = vmax.xlane.f32.xlu0 %v2892
    %v2894 = vpop.xlane.xlu0 %2893
    %v2895 = vsub.f32 %v2863, %v2873
    %v2896 = vsub.f32 %v2864, %v2876
    %v2897 = vsub.f32 %v2865, %v2879
    %v2898 = vsub.f32 %v2866, %v2882
    %v2899 = vsub.f32 %v2867, %v2885
    %v2900 = vsub.f32 %v2868, %v2888
    %v2901 = vsub.f32 %v2869, %v2891
    %v2902 = vsub.f32 %v2870, %v2894
    %v2903 = vmul.f32 %v2895, 1.442695
    %v2904 = vpow.pop %v2903
    %v2905 = vmul.f32 %v2896, 1.442695
    %v2906 = vpow.pop %v2905
    %v2907 = vmul.f32 %v2897, 1.442695
    %v2908 = vpow.pop %v2907
    %v2909 = vmul.f32 %v2898, 1.442695
    %v2910 = vpow.pop %v2909
    %v2911 = vmul.f32 %v2899, 1.442695
    %v2912 = vpow.pop %v2911
    %v2913 = vmul.f32 %v2900, 1.442695
    %v2914 = vpow.pop %v2913
    %v2915 = vmul.f32 %v2901, 1.442695
    %v2916 = vpow.pop %v2915
    %v2917 = vmul.f32 %v2902, 1.442695
    %v2918 = vpow.pop %v2917
    %v2919 = vsel %vm212, %v2904, 0.0
    %2920 = vadd.xlane.f32.xlu0 %v2919
    %v2921 = vpop.xlane.xlu0 %2920
    %v2922 = vsel %vm212, %v2906, 0.0
    %2923 = vadd.xlane.f32.xlu0 %v2922
    %v2924 = vpop.xlane.xlu0 %2923
    %v2925 = vsel %vm212, %v2908, 0.0
    %2926 = vadd.xlane.f32.xlu0 %v2925
    %v2927 = vpop.xlane.xlu0 %2926
    %v2928 = vsel %vm212, %v2910, 0.0
    %2929 = vadd.xlane.f32.xlu0 %v2928
    %v2930 = vpop.xlane.xlu0 %2929
    %v2931 = vsel %vm212, %v2912, 0.0
    %2932 = vadd.xlane.f32.xlu0 %v2931
    %v2933 = vpop.xlane.xlu0 %2932
    %v2934 = vsel %vm212, %v2914, 0.0
    %2935 = vadd.xlane.f32.xlu0 %v2934
    %v2936 = vpop.xlane.xlu0 %2935
    %v2937 = vsel %vm212, %v2916, 0.0
    %2938 = vadd.xlane.f32.xlu0 %v2937
    %v2939 = vpop.xlane.xlu0 %2938
    %v2940 = vsel %vm212, %v2918, 0.0
    %2941 = vadd.xlane.f32.xlu0 %v2940
    %v2942 = vpop.xlane.xlu0 %2941
    %v2943 = vrcp.pop %v2921
    %v2944 = vrcp.pop %v2924
    %v2945 = vrcp.pop %v2927
    %v2946 = vrcp.pop %v2930
    %v2947 = vrcp.pop %v2933
    %v2948 = vrcp.pop %v2936
    %v2949 = vrcp.pop %v2939
    %v2950 = vrcp.pop %v2942
    %s2951 = sld [smem:[#allocation9 + $0x2]]
    %v2952 = vstv %s2951
    %v2953 = vmul.f32 %v2952, %v2943
    %v2954 = vmul.f32 %v2952, %v2944
    %v2955 = vmul.f32 %v2952, %v2945
    %v2956 = vmul.f32 %v2952, %v2946
    %v2957 = vmul.f32 %v2952, %v2947
    %v2958 = vmul.f32 %v2952, %v2948
    %v2959 = vmul.f32 %v2952, %v2949
    %v2960 = vmul.f32 %v2952, %v2950
    %v2961 = vmul.f32 %v2953, %v2904
    %v2962 = vmul.f32 %v2954, %v2906
    %v2963 = vmul.f32 %v2955, %v2908
    %v2964 = vmul.f32 %v2956, %v2910
    %v2965 = vmul.f32 %v2957, %v2912
    %v2966 = vmul.f32 %v2958, %v2914
    %v2967 = vmul.f32 %v2959, %v2916
    %v2968 = vmul.f32 %v2960, %v2918
    %v2969 = vld [vmem:[%s1556] sm:$0xf]
    %v2970 = vld [vmem:[%s1556 + $0x4] sm:$0xf]
    %v2971 = vld [vmem:[%s1556 + $0x8] sm:$0xf]
    %v2972 = vld [vmem:[%s1556 + $0xc] sm:$0xf]
    %v2973 = vld [vmem:[%s1556 + $0x10] sm:$0xf]
    %v2974 = vld [vmem:[%s1556 + $0x14] sm:$0xf]
    %v2975 = vld [vmem:[%s1556 + $0x18] sm:$0xf]
    %v2976 = vld [vmem:[%s1556 + $0x1c] sm:$0xf]
    %v2977 = vunpack.c.l.bf16 %v2969
    %v2978 = vunpack.c.l.bf16 %v2970
    %v2979 = vunpack.c.l.bf16 %v2971
    %v2980 = vunpack.c.l.bf16 %v2972
    %v2981 = vunpack.c.l.bf16 %v2973
    %v2982 = vunpack.c.l.bf16 %v2974
    %v2983 = vunpack.c.l.bf16 %v2975
    %v2984 = vunpack.c.l.bf16 %v2976
    %v2985 = vadd.f32 %v2961, %v2977
    %v2986 = vadd.f32 %v2962, %v2978
    %v2987 = vadd.f32 %v2963, %v2979
    %v2988 = vadd.f32 %v2964, %v2980
    %v2989 = vadd.f32 %v2965, %v2981
    %v2990 = vadd.f32 %v2966, %v2982
    %v2991 = vadd.f32 %v2967, %v2983
    %v2992 = vadd.f32 %v2968, %v2984
    %v2993 = vpack.c.bf16 %v2986, %v2985
    %v2994 = vpack.c.bf16 %v2988, %v2987
    %v2995 = vpack.c.bf16 %v2990, %v2989
    %v2996 = vpack.c.bf16 %v2992, %v2991
    %v3005 = vunpack.c.l.b16 %v2750
    %v3006 = vunpack.c.l.b16 %v2751
    %v3007 = vunpack.c.l.b16 %v2752
    %v3008 = vunpack.c.l.b16 %v2753
    %v3009 = vunpack.c.l.b16 %v2754
    %v3010 = vunpack.c.l.b16 %v2755
    %v3011 = vunpack.c.l.b16 %v2756
    %v3012 = vunpack.c.l.b16 %v2757
    %v3013 = vpack.c.b16 %v3006, %v3005
    %v3014 = vpack.c.b16 %v3008, %v3007
    %v3015 = vpack.c.b16 %v3010, %v3009
    %v3016 = vpack.c.b16 %v3012, %v3011
    %v3022 = vsel %vm212, %v2993, 0
    %v3025 = vsel %vm212, %v2994, 0
    %v3028 = vsel %vm212, %v2995, 0
    %v3031 = vsel %vm212, %v2996, 0
    %3033 = vmatprep.subr.bf16.mxu0 0
    %3034 = vmatpush1.bf16.msra.mxu0 0
    %3035 = vmatprep.subr.bf16.mxu0 0
    %3036 = vmatpush1.bf16.msra.mxu0 0
    %3037 = vmatprep.subr.bf16.mxu0 0
    %3038 = vmatpush1.bf16.msra.mxu0 0
    %3039 = vmatprep.subr.bf16.mxu0 0
    %3040 = vmatpush1.bf16.msra.mxu0 0
    %3041 = vmatprep.subr.bf16.mxu0 0
    %3042 = vmatpush1.bf16.msra.mxu0 %v3016
    %3043 = vmatprep.subr.bf16.mxu0 0
    %3044 = vmatpush1.bf16.msra.mxu0 %v3015
    %3045 = vmatprep.subr.bf16.mxu0 0
    %3046 = vmatpush1.bf16.msra.mxu0 %v3014
    %3047 = vmatprep.subr.bf16.mxu0 0
    %3048 = vmatpush1.bf16.msra.mxu0 %v3013
    %3049 = vmatprep.subr.bf16.mxu0 0
    %3050 = vmatpush2.bf16.msra.mxu0 0
    %3051 = vmatprep.subr.bf16.mxu0 0
    %3052 = vmatpush2.bf16.msra.mxu0 0
    %3053 = vmatprep.subr.bf16.mxu0 0
    %3054 = vmatpush2.bf16.msra.mxu0 0
    %3055 = vmatprep.subr.bf16.mxu0 0
    %3056 = vmatpush2.bf16.msra.mxu0 0
    %3057 = vmatprep.subr.bf16.mxu0 0
    %3058 = vmatpush2.bf16.msra.mxu0 0
    %3059 = vmatprep.subr.bf16.mxu0 0
    %3060 = vmatpush2.bf16.msra.mxu0 0
    %3061 = vmatprep.subr.bf16.mxu0 0
    %3062 = vmatpush2.bf16.msra.mxu0 0
    %3063 = vmatprep.subr.bf16.mxu0 0
    %3064 = vmatpush2.bf16.msra.mxu0 0
    %3065 = vmatprep.mubr.bf16.mxu0 0
    %3066 = vmatmul.mubr.bf16.gmra.mxu0 %v3022
    %v3067 = vpop.f32.mrf.mxu0
    %v3068 = vadd.f32 0.0, %v3067
    %v3069 = vpop.f32.mrf.mxu0
    %v3070 = vpop.f32.mrf.mxu0
    %v3071 = vadd.f32 0.0, %v3070
    %v3072 = vpop.f32.mrf.mxu0
    %3073 = vmatprep.mubr.bf16.mxu0 0
    %3074 = vmatmul.mubr.bf16.gmra.mxu0 %v3025
    %v3075 = vpop.f32.mrf.mxu0
    %v3076 = vadd.f32 0.0, %v3075
    %v3077 = vpop.f32.mrf.mxu0
    %v3078 = vpop.f32.mrf.mxu0
    %v3079 = vadd.f32 0.0, %v3078
    %v3080 = vpop.f32.mrf.mxu0
    %3081 = vmatprep.mubr.bf16.mxu0 0
    %3082 = vmatmul.mubr.bf16.gmra.mxu0 %v3028
    %v3083 = vpop.f32.mrf.mxu0
    %v3084 = vadd.f32 0.0, %v3083
    %v3085 = vpop.f32.mrf.mxu0
    %v3086 = vpop.f32.mrf.mxu0
    %v3087 = vadd.f32 0.0, %v3086
    %v3088 = vpop.f32.mrf.mxu0
    %3089 = vmatprep.mubr.bf16.mxu0 0
    %3090 = vmatmul.mubr.bf16.gmra.mxu0 %v3031
    %v3091 = vpop.f32.mrf.mxu0
    %v3092 = vadd.f32 0.0, %v3091
    %v3093 = vpop.f32.mrf.mxu0
    %v3094 = vpop.f32.mrf.mxu0
    %v3095 = vadd.f32 0.0, %v3094
    %v3096 = vpop.f32.mrf.mxu0
    %3097 = vdwg.mxu0
    %v3098 = vadd.f32 %v2720, %v3068
    %v3099 = vadd.f32 %v2723, %v3071
    %v3100 = vadd.f32 %v2728, %v3076
    %v3101 = vadd.f32 %v2731, %v3079
    %v3102 = vadd.f32 %v2736, %v3084
    %v3103 = vadd.f32 %v2739, %v3087
    %v3104 = vadd.f32 %v2744, %v3092
    %v3105 = vadd.f32 %v2747, %v3095
    %3106 = vrot.lane.b32.xlu0 %v2086, 80
    %v3107 = vpop.permute.xlu0 %3106
    %3108 = vrot.lane.b32.xlu0 %v2087, 80
    %v3109 = vpop.permute.xlu0 %3108
    %3110 = vrot.lane.b32.xlu0 %v2088, 80
    %v3111 = vpop.permute.xlu0 %3110
    %3112 = vrot.lane.b32.xlu0 %v2089, 80
    %v3113 = vpop.permute.xlu0 %3112
    %3114 = vrot.lane.b32.xlu0 %v2086, 16
    %v3115 = vpop.permute.xlu0 %3114
    %3116 = vrot.lane.b32.xlu0 %v2087, 16
    %v3117 = vpop.permute.xlu0 %3116
    %3118 = vrot.lane.b32.xlu0 %v2088, 16
    %v3119 = vpop.permute.xlu0 %3118
    %3120 = vrot.lane.b32.xlu0 %v2089, 16
    %v3121 = vpop.permute.xlu0 %3120
    %v3123 = vsel %vm683, %v3107, 0
    %v3126 = vsel %vm683, %v3109, 0
    %v3129 = vsel %vm683, %v3111, 0
    %v3132 = vsel %vm683, %v3113, 0
    %v3135 = vsel %vm683, %v3115, 0
    %v3138 = vsel %vm683, %v3117, 0
    %v3141 = vsel %vm683, %v3119, 0
    %v3144 = vsel %vm683, %v3121, 0
    %3146 = vmatprep.subr.bf16.mxu0 0
    %3147 = vmatpush1.bf16.xpose.msra.mxu0 0
    %3148 = vmatprep.subr.bf16.mxu0 0
    %3149 = vmatpush1.bf16.xpose.msra.mxu0 0
    %3150 = vmatprep.subr.bf16.mxu0 0
    %3151 = vmatpush1.bf16.xpose.msra.mxu0 0
    %3152 = vmatprep.subr.bf16.mxu0 0
    %3153 = vmatpush1.bf16.xpose.msra.mxu0 0
    %3154 = vmatprep.subr.bf16.mxu0 0
    %3155 = vmatpush1.bf16.xpose.msra.mxu0 %v3144
    %3156 = vmatprep.subr.bf16.mxu0 0
    %3157 = vmatpush1.bf16.xpose.msra.mxu0 %v3141
    %3158 = vmatprep.subr.bf16.mxu0 0
    %3159 = vmatpush1.bf16.xpose.msra.mxu0 %v3138
    %3160 = vmatprep.subr.bf16.mxu0 0
    %3161 = vmatpush1.bf16.xpose.msra.mxu0 %v3135
    %3162 = vmatprep.subr.bf16.mxu0 0
    %3163 = vmatpush2.bf16.xpose.msra.mxu0 0
    %3164 = vmatprep.subr.bf16.mxu0 0
    %3165 = vmatpush2.bf16.xpose.msra.mxu0 0
    %3166 = vmatprep.subr.bf16.mxu0 0
    %3167 = vmatpush2.bf16.xpose.msra.mxu0 0
    %3168 = vmatprep.subr.bf16.mxu0 0
    %3169 = vmatpush2.bf16.xpose.msra.mxu0 0
    %3170 = vmatprep.subr.bf16.mxu0 0
    %3171 = vmatpush2.bf16.xpose.msra.mxu0 0
    %3172 = vmatprep.subr.bf16.mxu0 0
    %3173 = vmatpush2.bf16.xpose.msra.mxu0 0
    %3174 = vmatprep.subr.bf16.mxu0 0
    %3175 = vmatpush2.bf16.xpose.msra.mxu0 0
    %3176 = vmatprep.subr.bf16.mxu0 0
    %3177 = vmatpush2.bf16.xpose.msra.mxu0 0
    %3178 = vmatprep.mubr.bf16.mxu0 0
    %3179 = vmatmul.mubr.bf16.gmra.mxu0 %v3123
    %v3180 = vpop.f32.mrf.mxu0
    %v3181 = vadd.f32 0.0, %v3180
    %v3182 = vpop.f32.mrf.mxu0
    %v3183 = vpop.f32.mrf.mxu0
    %v3184 = vadd.f32 0.0, %v3183
    %v3185 = vpop.f32.mrf.mxu0
    %3186 = vmatprep.mubr.bf16.mxu0 0
    %3187 = vmatmul.mubr.bf16.gmra.mxu0 %v3126
    %v3188 = vpop.f32.mrf.mxu0
    %v3189 = vadd.f32 0.0, %v3188
    %v3190 = vpop.f32.mrf.mxu0
    %v3191 = vpop.f32.mrf.mxu0
    %v3192 = vadd.f32 0.0, %v3191
    %v3193 = vpop.f32.mrf.mxu0
    %3194 = vmatprep.mubr.bf16.mxu0 0
    %3195 = vmatmul.mubr.bf16.gmra.mxu0 %v3129
    %v3196 = vpop.f32.mrf.mxu0
    %v3197 = vadd.f32 0.0, %v3196
    %v3198 = vpop.f32.mrf.mxu0
    %v3199 = vpop.f32.mrf.mxu0
    %v3200 = vadd.f32 0.0, %v3199
    %v3201 = vpop.f32.mrf.mxu0
    %3202 = vmatprep.mubr.bf16.mxu0 0
    %3203 = vmatmul.mubr.bf16.gmra.mxu0 %v3132
    %v3204 = vpop.f32.mrf.mxu0
    %v3205 = vadd.f32 0.0, %v3204
    %v3206 = vpop.f32.mrf.mxu0
    %v3207 = vpop.f32.mrf.mxu0
    %v3208 = vadd.f32 0.0, %v3207
    %v3209 = vpop.f32.mrf.mxu0
    %3210 = vdwg.mxu0
    %v3211 = vmul.f32 %v3181, 0.25
    %v3212 = vmul.f32 %v3184, 0.25
    %v3213 = vmul.f32 %v3189, 0.25
    %v3214 = vmul.f32 %v3192, 0.25
    %v3215 = vmul.f32 %v3197, 0.25
    %v3216 = vmul.f32 %v3200, 0.25
    %v3217 = vmul.f32 %v3205, 0.25
    %v3218 = vmul.f32 %v3208, 0.25
    %v3219 = vsel %vm212, %v3211, -inf
    %3220 = vmax.xlane.f32.xlu0 %v3219
    %v3221 = vpop.xlane.xlu0 %3220
    %v3222 = vsel %vm212, %v3212, -inf
    %3223 = vmax.xlane.f32.xlu0 %v3222
    %v3224 = vpop.xlane.xlu0 %3223
    %v3225 = vsel %vm212, %v3213, -inf
    %3226 = vmax.xlane.f32.xlu0 %v3225
    %v3227 = vpop.xlane.xlu0 %3226
    %v3228 = vsel %vm212, %v3214, -inf
    %3229 = vmax.xlane.f32.xlu0 %v3228
    %v3230 = vpop.xlane.xlu0 %3229
    %v3231 = vsel %vm212, %v3215, -inf
    %3232 = vmax.xlane.f32.xlu0 %v3231
    %v3233 = vpop.xlane.xlu0 %3232
    %v3234 = vsel %vm212, %v3216, -inf
    %3235 = vmax.xlane.f32.xlu0 %v3234
    %v3236 = vpop.xlane.xlu0 %3235
    %v3237 = vsel %vm212, %v3217, -inf
    %3238 = vmax.xlane.f32.xlu0 %v3237
    %v3239 = vpop.xlane.xlu0 %3238
    %v3240 = vsel %vm212, %v3218, -inf
    %3241 = vmax.xlane.f32.xlu0 %v3240
    %v3242 = vpop.xlane.xlu0 %3241
    %v3243 = vsub.f32 %v3211, %v3221
    %v3244 = vsub.f32 %v3212, %v3224
    %v3245 = vsub.f32 %v3213, %v3227
    %v3246 = vsub.f32 %v3214, %v3230
    %v3247 = vsub.f32 %v3215, %v3233
    %v3248 = vsub.f32 %v3216, %v3236
    %v3249 = vsub.f32 %v3217, %v3239
    %v3250 = vsub.f32 %v3218, %v3242
    %v3251 = vmul.f32 %v3243, 1.442695
    %v3252 = vpow.pop %v3251
    %v3253 = vmul.f32 %v3244, 1.442695
    %v3254 = vpow.pop %v3253
    %v3255 = vmul.f32 %v3245, 1.442695
    %v3256 = vpow.pop %v3255
    %v3257 = vmul.f32 %v3246, 1.442695
    %v3258 = vpow.pop %v3257
    %v3259 = vmul.f32 %v3247, 1.442695
    %v3260 = vpow.pop %v3259
    %v3261 = vmul.f32 %v3248, 1.442695
    %v3262 = vpow.pop %v3261
    %v3263 = vmul.f32 %v3249, 1.442695
    %v3264 = vpow.pop %v3263
    %v3265 = vmul.f32 %v3250, 1.442695
    %v3266 = vpow.pop %v3265
    %v3267 = vsel %vm212, %v3252, 0.0
    %3268 = vadd.xlane.f32.xlu0 %v3267
    %v3269 = vpop.xlane.xlu0 %3268
    %v3270 = vsel %vm212, %v3254, 0.0
    %3271 = vadd.xlane.f32.xlu0 %v3270
    %v3272 = vpop.xlane.xlu0 %3271
    %v3273 = vsel %vm212, %v3256, 0.0
    %3274 = vadd.xlane.f32.xlu0 %v3273
    %v3275 = vpop.xlane.xlu0 %3274
    %v3276 = vsel %vm212, %v3258, 0.0
    %3277 = vadd.xlane.f32.xlu0 %v3276
    %v3278 = vpop.xlane.xlu0 %3277
    %v3279 = vsel %vm212, %v3260, 0.0
    %3280 = vadd.xlane.f32.xlu0 %v3279
    %v3281 = vpop.xlane.xlu0 %3280
    %v3282 = vsel %vm212, %v3262, 0.0
    %3283 = vadd.xlane.f32.xlu0 %v3282
    %v3284 = vpop.xlane.xlu0 %3283
    %v3285 = vsel %vm212, %v3264, 0.0
    %3286 = vadd.xlane.f32.xlu0 %v3285
    %v3287 = vpop.xlane.xlu0 %3286
    %v3288 = vsel %vm212, %v3266, 0.0
    %3289 = vadd.xlane.f32.xlu0 %v3288
    %v3290 = vpop.xlane.xlu0 %3289
    %v3291 = vrcp.pop %v3269
    %v3292 = vrcp.pop %v3272
    %v3293 = vrcp.pop %v3275
    %v3294 = vrcp.pop %v3278
    %v3295 = vrcp.pop %v3281
    %v3296 = vrcp.pop %v3284
    %v3297 = vrcp.pop %v3287
    %v3298 = vrcp.pop %v3290
    %s3299 = sld [smem:[#allocation9 + $0x3]]
    %v3300 = vstv %s3299
    %v3301 = vmul.f32 %v3300, %v3291
    %v3302 = vmul.f32 %v3300, %v3292
    %v3303 = vmul.f32 %v3300, %v3293
    %v3304 = vmul.f32 %v3300, %v3294
    %v3305 = vmul.f32 %v3300, %v3295
    %v3306 = vmul.f32 %v3300, %v3296
    %v3307 = vmul.f32 %v3300, %v3297
    %v3308 = vmul.f32 %v3300, %v3298
    %v3309 = vmul.f32 %v3301, %v3252
    %v3310 = vmul.f32 %v3302, %v3254
    %v3311 = vmul.f32 %v3303, %v3256
    %v3312 = vmul.f32 %v3304, %v3258
    %v3313 = vmul.f32 %v3305, %v3260
    %v3314 = vmul.f32 %v3306, %v3262
    %v3315 = vmul.f32 %v3307, %v3264
    %v3316 = vmul.f32 %v3308, %v3266
    %v3317 = vld [vmem:[%s1905] sm:$0xf]
    %v3318 = vld [vmem:[%s1905 + $0x4] sm:$0xf]
    %v3319 = vld [vmem:[%s1905 + $0x8] sm:$0xf]
    %v3320 = vld [vmem:[%s1905 + $0xc] sm:$0xf]
    %v3321 = vld [vmem:[%s1905 + $0x10] sm:$0xf]
    %v3322 = vld [vmem:[%s1905 + $0x14] sm:$0xf]
    %v3323 = vld [vmem:[%s1905 + $0x18] sm:$0xf]
    %v3324 = vld [vmem:[%s1905 + $0x1c] sm:$0xf]
    %v3325 = vunpack.c.l.bf16 %v3317
    %v3326 = vunpack.c.l.bf16 %v3318
    %v3327 = vunpack.c.l.bf16 %v3319
    %v3328 = vunpack.c.l.bf16 %v3320
    %v3329 = vunpack.c.l.bf16 %v3321
    %v3330 = vunpack.c.l.bf16 %v3322
    %v3331 = vunpack.c.l.bf16 %v3323
    %v3332 = vunpack.c.l.bf16 %v3324
    %v3333 = vadd.f32 %v3309, %v3325
    %v3334 = vadd.f32 %v3310, %v3326
    %v3335 = vadd.f32 %v3311, %v3327
    %v3336 = vadd.f32 %v3312, %v3328
    %v3337 = vadd.f32 %v3313, %v3329
    %v3338 = vadd.f32 %v3314, %v3330
    %v3339 = vadd.f32 %v3315, %v3331
    %v3340 = vadd.f32 %v3316, %v3332
    %v3341 = vpack.c.bf16 %v3334, %v3333
    %v3342 = vpack.c.bf16 %v3336, %v3335
    %v3343 = vpack.c.bf16 %v3338, %v3337
    %v3344 = vpack.c.bf16 %v3340, %v3339
    %3345 = vrot.lane.b32.xlu0 %v3013, 64
    %v3346 = vpop.permute.xlu0 %3345
    %3347 = vrot.lane.b32.xlu0 %v3014, 64
    %v3348 = vpop.permute.xlu0 %3347
    %3349 = vrot.lane.b32.xlu0 %v3015, 64
    %v3350 = vpop.permute.xlu0 %3349
    %3351 = vrot.lane.b32.xlu0 %v3016, 64
    %v3352 = vpop.permute.xlu0 %3351
    %v3358 = vsel %vm212, %v3341, 0
    %v3361 = vsel %vm212, %v3342, 0
    %v3364 = vsel %vm212, %v3343, 0
    %v3367 = vsel %vm212, %v3344, 0
    %3369 = vmatprep.subr.bf16.mxu0 0
    %3370 = vmatpush1.bf16.msra.mxu0 0
    %3371 = vmatprep.subr.bf16.mxu0 0
    %3372 = vmatpush1.bf16.msra.mxu0 0
    %3373 = vmatprep.subr.bf16.mxu0 0
    %3374 = vmatpush1.bf16.msra.mxu0 0
    %3375 = vmatprep.subr.bf16.mxu0 0
    %3376 = vmatpush1.bf16.msra.mxu0 0
    %3377 = vmatprep.subr.bf16.mxu0 0
    %3378 = vmatpush1.bf16.msra.mxu0 %v3352
    %3379 = vmatprep.subr.bf16.mxu0 0
    %3380 = vmatpush1.bf16.msra.mxu0 %v3350
    %3381 = vmatprep.subr.bf16.mxu0 0
    %3382 = vmatpush1.bf16.msra.mxu0 %v3348
    %3383 = vmatprep.subr.bf16.mxu0 0
    %3384 = vmatpush1.bf16.msra.mxu0 %v3346
    %3385 = vmatprep.subr.bf16.mxu0 0
    %3386 = vmatpush2.bf16.msra.mxu0 0
    %3387 = vmatprep.subr.bf16.mxu0 0
    %3388 = vmatpush2.bf16.msra.mxu0 0
    %3389 = vmatprep.subr.bf16.mxu0 0
    %3390 = vmatpush2.bf16.msra.mxu0 0
    %3391 = vmatprep.subr.bf16.mxu0 0
    %3392 = vmatpush2.bf16.msra.mxu0 0
    %3393 = vmatprep.subr.bf16.mxu0 0
    %3394 = vmatpush2.bf16.msra.mxu0 0
    %3395 = vmatprep.subr.bf16.mxu0 0
    %3396 = vmatpush2.bf16.msra.mxu0 0
    %3397 = vmatprep.subr.bf16.mxu0 0
    %3398 = vmatpush2.bf16.msra.mxu0 0
    %3399 = vmatprep.subr.bf16.mxu0 0
    %3400 = vmatpush2.bf16.msra.mxu0 0
    %3401 = vmatprep.mubr.bf16.mxu0 0
    %3402 = vmatmul.mubr.bf16.gmra.mxu0 %v3358
    %v3403 = vpop.f32.mrf.mxu0
    %v3404 = vadd.f32 0.0, %v3403
    %v3405 = vpop.f32.mrf.mxu0
    %v3406 = vpop.f32.mrf.mxu0
    %v3407 = vadd.f32 0.0, %v3406
    %v3408 = vpop.f32.mrf.mxu0
    %3409 = vmatprep.mubr.bf16.mxu0 0
    %3410 = vmatmul.mubr.bf16.gmra.mxu0 %v3361
    %v3411 = vpop.f32.mrf.mxu0
    %v3412 = vadd.f32 0.0, %v3411
    %v3413 = vpop.f32.mrf.mxu0
    %v3414 = vpop.f32.mrf.mxu0
    %v3415 = vadd.f32 0.0, %v3414
    %v3416 = vpop.f32.mrf.mxu0
    %3417 = vmatprep.mubr.bf16.mxu0 0
    %3418 = vmatmul.mubr.bf16.gmra.mxu0 %v3364
    %v3419 = vpop.f32.mrf.mxu0
    %v3420 = vadd.f32 0.0, %v3419
    %v3421 = vpop.f32.mrf.mxu0
    %v3422 = vpop.f32.mrf.mxu0
    %v3423 = vadd.f32 0.0, %v3422
    %v3424 = vpop.f32.mrf.mxu0
    %3425 = vmatprep.mubr.bf16.mxu0 0
    %3426 = vmatmul.mubr.bf16.gmra.mxu0 %v3367
    %v3427 = vpop.f32.mrf.mxu0
    %v3428 = vadd.f32 0.0, %v3427
    %v3429 = vpop.f32.mrf.mxu0
    %v3430 = vpop.f32.mrf.mxu0
    %v3431 = vadd.f32 0.0, %v3430
    %v3432 = vpop.f32.mrf.mxu0
    %3433 = vdwg.mxu0
    %v3434 = vadd.f32 %v3098, %v3404
    %v3435 = vadd.f32 %v3099, %v3407
    %v3436 = vadd.f32 %v3100, %v3412
    %v3437 = vadd.f32 %v3101, %v3415
    %v3438 = vadd.f32 %v3102, %v3420
    %v3439 = vadd.f32 %v3103, %v3423
    %v3440 = vadd.f32 %v3104, %v3428
    %v3441 = vadd.f32 %v3105, %v3431
    %v3442 = vld [vmem:[%s4] sm:$0x1]
    %v3444 = vlaneseq
    %v3445 = vshrl.u32 %v3444, 7
    %v3446 = vsub.s32 0, %v3445
    %v3447 = vrot.slane %v3442, %v3446
    %v3449 = vadd.f32 %v3434, %v3447
    %v3450 = vadd.f32 %v3435, %v3447
    %v3451 = vadd.f32 %v3436, %v3447
    %v3452 = vadd.f32 %v3437, %v3447
    %v3453 = vadd.f32 %v3438, %v3447
    %v3454 = vadd.f32 %v3439, %v3447
    %v3455 = vadd.f32 %v3440, %v3447
    %v3456 = vadd.f32 %v3441, %v3447
    %s3457 = scalar_lea.vmem [#allocation11], 64
    %3458 = vst.msk [vmem:[%s3457] sm:$0xff] %vm212, %v3449
    %3459 = vst.msk [vmem:[%s3457 + $0x8] sm:$0xff] %vm212, %v3450
    %3460 = vst.msk [vmem:[%s3457 + $0x10] sm:$0xff] %vm212, %v3451
    %3461 = vst.msk [vmem:[%s3457 + $0x18] sm:$0xff] %vm212, %v3452
    %3462 = vst.msk [vmem:[%s3457 + $0x20] sm:$0xff] %vm212, %v3453
    %3463 = vst.msk [vmem:[%s3457 + $0x28] sm:$0xff] %vm212, %v3454
    %3464 = vst.msk [vmem:[%s3457 + $0x30] sm:$0xff] %vm212, %v3455
    %3465 = vst.msk [vmem:[%s3457 + $0x38] sm:$0xff] %vm212, %v3456
    // Predicated region
    $region38: #{tpu_custom_call.1} parent=1 // pred_check
      _
    $region39: #{tpu_custom_call.1} parent=1 // pred_check_branch
      %3467 = sbr.rel (0) target = $region41
    $region40: #{tpu_custom_call.1} parent=1 // pred_region
      %s3469 = ssub.s32 2048, 2048
      %3470 = vsyncadd [#allocation5], %s3469
      %s3471 = sshll.u32 [#allocation11], 4
      %s3472 = int_to_ptr.vmem [resolvable:$true] %s3471
      %3477 = dma.vmem_to_hbm [thread:$0]  %s3472, 2048, %s5, [#allocation5], 128, 128, 8
    $region41: #{tpu_custom_call.1} parent=1 // pred_fallthru
      _
    // Predicated region
    $region42: #{tpu_custom_call.1} parent=1 // pred_check
      _
    $region43: #{tpu_custom_call.1} parent=1 // pred_check_branch
      %3479 = sbr.rel (0) target = $region45
    $region44: #{tpu_custom_call.1} parent=1 // pred_region
      %3480 = dma.done [#allocation5], 2048
    $region45: #{tpu_custom_call.1} parent=1 // pred_fallthru
      _
    %3481 = vsyncpa [#allocation4], 1
    %3482 = vsyncpa [#allocation8], 1
    %3483 = vsyncpa [#allocation5], 1
    %3484 = vsyncpa [#allocation6], 1

</llo_original>
